<compile_context>
chip_gen: v7x
topology: tpu7x:2x2x1
jax: 0.10.0
libtpu: 0.0.40
codegen_flags: <defaults>
</compile_context>

<pallas_src>
import functools
import math

import jax
import jax.numpy as jnp
from jax.experimental import pallas as pl
from jax.experimental.pallas import tpu as pltpu


_TIME_CHUNK = 8  # in-kernel unrolled LSTM steps per grid step (bounded unroll)


# ----------------------------------------------------------------------------
# helpers
# ----------------------------------------------------------------------------
def _round_up(x, m):
    return ((x + m - 1) // m) * m


def _pick_batch_block(b_pad):
    """Two batch blocks (parallel grid axis -> v7x megacore) when blocks keep >=8 rows."""
    if b_pad % 16 == 0:
        return b_pad // 2
    # TODO(synk): on v7x, pad small batches to 16 so n_b=2 and both TensorCores engage.
    return b_pad


@functools.lru_cache(maxsize=1)
def _single_buffer_supported():
    """Probe whether pl.Buffered(1) (no double-buffering of resident weights) lowers."""
    try:
        def _probe(x_ref, w_ref, o_ref):
            o_ref[...] = x_ref[...] + w_ref[...]

        out = pl.pallas_call(
            _probe,
            out_shape=jax.ShapeDtypeStruct((16, 128), jnp.float32),
            grid=(2,),
            in_specs=[
                pl.BlockSpec((8, 128), lambda i: (i, 0)),
                pl.BlockSpec((8, 128), lambda i: (0, 0),
                             pipeline_mode=pl.Buffered(1)),
            ],
            out_specs=pl.BlockSpec((8, 128), lambda i: (i, 0)),
        )(jnp.ones((16, 128), jnp.float32), jnp.ones((8, 128), jnp.float32))
        jax.block_until_ready(out)
        return True
    except Exception:
        return False


def _const_spec(shape):
    """BlockSpec for a grid-invariant (weight/bias) operand kept resident in VMEM."""
    ndim = len(shape)
    index_map = lambda b, c: (0,) * ndim
    if _single_buffer_supported():
        return pl.BlockSpec(tuple(shape), index_map, pipeline_mode=pl.Buffered(1))
    return pl.BlockSpec(tuple(shape), index_map)  # fallback: default double-buffering


# ----------------------------------------------------------------------------
# Pallas kernel
# ----------------------------------------------------------------------------
def _make_lstm_kernel(*, t_chunk, h_pad, t_valid, batch_major, is_final):
    """LSTM recurrence over one (b_blk, t_chunk) tile with the input projection fused.

    Both MXU dots use bf16 operands with f32 accumulation; gate math stays f32.
    Padded tail timesteps (global index >= t_valid) are computed but discarded via a
    cheap select so T does not have to divide into chunks.
    """

    def kernel(x_ref, wih_ref, whh_ref, b_ref, *rest):
        if is_final:
            wh_ref, bh_ref, out_ref, h_scr, c_scr = rest
        else:
            out_ref, h_scr, c_scr = rest

        c_idx = pl.program_id(1)

        @pl.when(c_idx == 0)
        def _():
            h_scr[...] = jnp.zeros_like(h_scr)
            c_scr[...] = jnp.zeros_like(c_scr)

        wih = wih_ref[...]        # (d_in, 4*h_pad) bf16, VMEM-resident
        whh = whh_ref[...]        # (h_pad, 4*h_pad) bf16, VMEM-resident
        bias = b_ref[...]         # (1, 4*h_pad) f32  (= b_ih + b_hh, pre-folded)
        h = h_scr[...]
        c = c_scr[...]

        for t in range(t_chunk):  # bounded static unroll (t_chunk == 8)
            # fused input projection: read the input slice and project in-kernel
            x_t = x_ref[:, t, :] if batch_major else x_ref[t]
            z = (
                jnp.dot(x_t.astype(jnp.bfloat16), wih,
                        preferred_element_type=jnp.float32)
                + jnp.dot(h.astype(jnp.bfloat16), whh,
                          preferred_element_type=jnp.float32)
                + bias
            )
            i_g = jax.nn.sigmoid(z[:, 0 * h_pad:1 * h_pad])   # lane-aligned gate slices
            f_g = jax.nn.sigmoid(z[:, 1 * h_pad:2 * h_pad])
            g_g = jnp.tanh(z[:, 2 * h_pad:3 * h_pad])
            o_g = jax.nn.sigmoid(z[:, 3 * h_pad:4 * h_pad])
            c_new = f_g * c + i_g * g_g
            h_new = o_g * jnp.tanh(c_new)
            valid = (c_idx * t_chunk + t) < t_valid            # mask padded tail steps
            c = jnp.where(valid, c_new, c)
            h = jnp.where(valid, h_new, h)
            if not is_final:
                out_ref[t] = h.astype(out_ref.dtype)           # lane-dense bf16 store

        h_scr[...] = h
        c_scr[...] = c

        if is_final:
            # 6 sigmoid heads fused at the last chunk; h here is h at timestep T-1.
            @pl.when(c_idx == pl.num_programs(1) - 1)
            def _():
                logits = (
                    jnp.dot(h_scr[...].astype(jnp.bfloat16), wh_ref[...],
                            preferred_element_type=jnp.float32)
                    + bh_ref[...]
                )
                out_ref[...] = jax.nn.sigmoid(logits)

    return kernel


# ----------------------------------------------------------------------------
# pallas_call wrapper (one call per LSTM layer)
# ----------------------------------------------------------------------------
def _run_lstm_layer(x_in, wih, whh, bias, head_w, head_b, *,
                    h_pad, t_chunk, b_blk, t_valid, batch_major, is_final):
    if batch_major:   # layer 0: (B_pad, T_pad, D) batch_first, read directly
        b_tot, t_tot, d_in = x_in.shape
        x_spec = pl.BlockSpec((b_blk, t_chunk, d_in), lambda b, c: (b, c, 0))
    else:             # layers >= 1: (T_pad, B_pad, h_pad) time-major bf16 h_seq
        t_tot, b_tot, d_in = x_in.shape
        x_spec = pl.BlockSpec((t_chunk, b_blk, d_in), lambda b, c: (c, b, 0))
    n_b = b_tot // b_blk
    n_c = t_tot // t_chunk

    const_inputs = [wih, whh, bias]
    if is_final:
        const_inputs += [head_w, head_b]
    in_specs = [x_spec] + [_const_spec(a.shape) for a in const_inputs]
    inputs = [x_in] + const_inputs

    if is_final:
        p_pad = head_w.shape[1]
        out_shape = jax.ShapeDtypeStruct((b_tot, p_pad), jnp.float32)
        out_spec = pl.BlockSpec((b_blk, p_pad), lambda b, c: (b, 0))
        out_block_bytes = b_blk * p_pad * 4
    else:
        out_shape = jax.ShapeDtypeStruct((t_tot, b_tot, h_pad), jnp.bfloat16)
        out_spec = pl.BlockSpec((t_chunk, b_blk, h_pad), lambda b, c: (c, b, 0))
        out_block_bytes = t_chunk * b_blk * h_pad * 2

    # Explicit scoped-VMEM budget sized from the real block footprints
    # (defaults are only 16 MiB on v5e / 32 MiB on v6e,v7x). Capped at 64 MiB so it is
    # valid on v7x; v5e/v6e have 128 MiB physical so this is always safe.
    weight_bufs = 1 if _single_buffer_supported() else 2
    const_bytes = sum(math.prod(a.shape) * jnp.dtype(a.dtype).itemsize
                      for a in const_inputs)
    x_block_bytes = t_chunk * b_blk * d_in * jnp.dtype(x_in.dtype).itemsize
    scratch_bytes = 2 * b_blk * h_pad * 4
    est = (weight_bufs * const_bytes + 2 * x_block_bytes + 2 * out_block_bytes
           + scratch_bytes)
    vmem_limit = int(min(max(2 * est + (8 << 20), 32 << 20), 64 << 20))

    kernel = _make_lstm_kernel(t_chunk=t_chunk, h_pad=h_pad, t_valid=t_valid,
                               batch_major=batch_major, is_final=is_final)

    return pl.pallas_call(
        kernel,
        out_shape=out_shape,
        grid=(n_b, n_c),
        in_specs=in_specs,
        out_specs=out_spec,
        scratch_shapes=[pltpu.VMEM((b_blk, h_pad), jnp.float32),
                        pltpu.VMEM((b_blk, h_pad), jnp.float32)],
        compiler_params=pltpu.CompilerParams(
            dimension_semantics=("parallel", "arbitrary"),  # chunk axis must stay ordered
            vmem_limit_bytes=vmem_limit),
    )(*inputs)


# ----------------------------------------------------------------------------
# parameter preparation (done ONCE, outside jit)
# ----------------------------------------------------------------------------
def init_params(key, input_dim, hidden_dim, num_layers, output_dim):
    """Deterministic synthetic parameters mirroring nn.LSTM / nn.Linear shapes."""
    params = {"lstm": [], "heads": []}
    k = 1.0 / jnp.sqrt(hidden_dim)
    for layer in range(num_layers):
        d_in = input_dim if layer == 0 else hidden_dim
        key, k1, k2, k3, k4 = jax.random.split(key, 5)
        w_ih = jax.random.uniform(k1, (4 * hidden_dim, d_in), jnp.float32, -k, k)
        w_hh = jax.random.uniform(k2, (4 * hidden_dim, hidden_dim), jnp.float32, -k, k)
        b_ih = jax.random.uniform(k3, (4 * hidden_dim,), jnp.float32, -k, k)
        b_hh = jax.random.uniform(k4, (4 * hidden_dim,), jnp.float32, -k, k)
        params["lstm"].append((w_ih, w_hh, b_ih, b_hh))
    for _ in range(6):
        key, k1, k2 = jax.random.split(key, 3)
        w = jax.random.uniform(k1, (output_dim, hidden_dim), jnp.float32, -k, k)
        b = jax.random.uniform(k2, (output_dim,), jnp.float32, -k, k)
        params["heads"].append((w, b))
    return params


def prepare_params(params, hidden_dim, output_dim):
    """Transpose / fold biases / zero-pad to 128 lanes / cast weights to bf16 (once)."""
    _single_buffer_supported()  # warm the Buffered(1) feature probe outside of jit
    H = hidden_dim
    h_pad = _round_up(max(H, 128), 128)
    layers = []
    for layer_idx, (w_ih, w_hh, b_ih, b_hh) in enumerate(params["lstm"]):
        d_in = w_ih.shape[1]
        d_blk = d_in if layer_idx == 0 else h_pad   # layer>0 consumes padded bf16 h_seq
        wih_g = w_ih.T.reshape(d_in, 4, H)          # gate-major layout (i,f,g,o)
        whh_g = w_hh.T.reshape(H, 4, H)
        b_g = (b_ih + b_hh).reshape(4, H)
        wih_p = jnp.zeros((d_blk, 4, h_pad), jnp.float32).at[:d_in, :, :H].set(wih_g)
        whh_p = jnp.zeros((h_pad, 4, h_pad), jnp.float32).at[:H, :, :H].set(whh_g)
        b_p = jnp.zeros((4, h_pad), jnp.float32).at[:, :H].set(b_g)
        layers.append((wih_p.reshape(d_blk, 4 * h_pad).astype(jnp.bfloat16),
                       whh_p.reshape(h_pad, 4 * h_pad).astype(jnp.bfloat16),
                       b_p.reshape(1, 4 * h_pad)))                      # bias stays f32
    # fuse the 6 heads into one lane-padded (h_pad, P) bf16 matmul
    w_all = jnp.concatenate([w.T for (w, _) in params["heads"]], axis=1)   # (H, 6*O)
    b_all = jnp.concatenate([b for (_, b) in params["heads"]], axis=0)     # (6*O,)
    p_pad = _round_up(max(6 * output_dim, 128), 128)
    w_heads = (jnp.zeros((h_pad, p_pad), jnp.float32)
               .at[:H, :6 * output_dim].set(w_all).astype(jnp.bfloat16))
    b_heads = jnp.zeros((1, p_pad), jnp.float32).at[0, :6 * output_dim].set(b_all)
    return tuple(layers), (w_heads, b_heads), h_pad


# ----------------------------------------------------------------------------
# forward
# ----------------------------------------------------------------------------
@functools.partial(jax.jit, static_argnames=("output_dim", "h_pad"))
def forward(layer_params, head_params, x_btd, *, output_dim, h_pad):
    """Full LongShortTermMemory.forward (eval mode, unidirectional, batch_first).

    x_btd: (B, T, D) batch_first like the PyTorch module.
    Returns a 6-tuple of (B, output_dim) sigmoid outputs.
    """
    x = x_btd.astype(jnp.float32)
    B, T, D = x.shape
    t_chunk = _TIME_CHUNK
    t_pad = _round_up(T, t_chunk)
    b_pad = _round_up(B, 8)
    if (b_pad, t_pad) != (B, T):
        x = jnp.pad(x, ((0, b_pad - B), (0, t_pad - T), (0, 0)))
    b_blk = _pick_batch_block(b_pad)
    w_heads, b_heads = head_params
    n_layers = len(layer_params)

    layer_in = x            # layer 0 consumed batch-major: no host transpose of x
    batch_major = True
    out_padded = None
    for li, (wih, whh, bias) in enumerate(layer_params):
        is_final = li == n_layers - 1
        res = _run_lstm_layer(
            layer_in, wih, whh, bias,
            w_heads if is_final else None,
            b_heads if is_final else None,
            h_pad=h_pad, t_chunk=t_chunk, b_blk=b_blk, t_valid=T,
            batch_major=batch_major, is_final=is_final)
        if is_final:
            out_padded = res                   # (b_pad, p_pad) f32, heads fused
        else:
            layer_in = res                     # (t_pad, b_pad, h_pad) time-major bf16
            batch_major = False
        # TODO(synk): nn.LSTM inter-layer dropout (train-mode only) not applied — eval semantics.
    return tuple(out_padded[:B, k * output_dim:(k + 1) * output_dim] for k in range(6))


# ----------------------------------------------------------------------------
# Pure-JAX f32 reference (for correctness check)
# ----------------------------------------------------------------------------
def forward_ref(params, x_btd, output_dim):
    B, T, D = x_btd.shape
    h_seq = x_btd.astype(jnp.float32)
    for (w_ih, w_hh, b_ih, b_hh) in params["lstm"]:
        H = w_hh.shape[1]
        h = jnp.zeros((B, H), jnp.float32)
        c = jnp.zeros((B, H), jnp.float32)
        outs = []
        for t in range(T):
            z = h_seq[:, t, :] @ w_ih.T + h @ w_hh.T + b_ih + b_hh
            i = jax.nn.sigmoid(z[:, 0 * H:1 * H])
            f = jax.nn.sigmoid(z[:, 1 * H:2 * H])
            g = jnp.tanh(z[:, 2 * H:3 * H])
            o = jax.nn.sigmoid(z[:, 3 * H:4 * H])
            c = f * c + i * g
            h = o * jnp.tanh(c)
            outs.append(h)
        h_seq = jnp.stack(outs, axis=1)
    last = h_seq[:, -1, :]
    return tuple(jax.nn.sigmoid(last @ w.T + b) for (w, b) in params["heads"])


if __name__ == "__main__":
    B, T, D = 2, 8, 8          # batch, seq, input_dim
    H, L, O = 32, 2, 1         # hidden_dim, num_layers, output_dim

    key = jax.random.PRNGKey(0)
    key, pkey, xkey = jax.random.split(key, 3)
    params = init_params(pkey, D, H, L, O)
    x = jax.random.normal(xkey, (B, T, D), jnp.float32)

    layer_params, head_params, h_pad = prepare_params(params, H, O)
    outs = forward(layer_params, head_params, x, output_dim=O, h_pad=h_pad)
    outs = jax.block_until_ready(outs)

    refs = forward_ref(params, x, O)
    for a, r in zip(outs, refs):
        assert a.shape == (B, O)
        # bf16 weight/activation matmul path -> loosened tolerance vs pure-f32 reference
        assert float(jnp.max(jnp.abs(a - r))) < 3e-2, (a, r)

    print("KERNEL_OK")
</pallas_src>

<mosaic_0001>
module attributes {stable_mosaic.version = 11 : i64} {
  func.func @_probe(%arg0: i32, %arg1: memref<8x128xf32, #tpu.memory_space<vmem>>, %arg2: memref<8x128xf32, #tpu.memory_space<vmem>>, %arg3: memref<8x128xf32, #tpu.memory_space<vmem>>) attributes {dimension_semantics = [#tpu.dimension_semantics<arbitrary>], iteration_bounds = array<i64: 2>, scalar_prefetch = 0 : i64, scratch_operands = 0 : i64, tpu.core_type = #tpu.core_type<tc>, window_params = [{transform_indices = @transform_0, window_bounds = array<i64: 8, 128>}, {pipeline_mode = #tpu.pipeline_mode<synchronous>, transform_indices = @transform_1, window_bounds = array<i64: 8, 128>}, {transform_indices = @transform_2, window_bounds = array<i64: 8, 128>}]} {
    %c0 = arith.constant 0 : index
    %c0_0 = arith.constant 0 : index
    %0 = vector.load %arg1[%c0, %c0_0] : memref<8x128xf32, #tpu.memory_space<vmem>>, vector<8x128xf32>
    %c0_1 = arith.constant 0 : index
    %c0_2 = arith.constant 0 : index
    %1 = vector.load %arg2[%c0_1, %c0_2] : memref<8x128xf32, #tpu.memory_space<vmem>>, vector<8x128xf32>
    %2 = arith.addf %0, %1 : vector<8x128xf32>
    %c0_3 = arith.constant 0 : index
    %c0_4 = arith.constant 0 : index
    %3 = vector.load %arg3[%c0_3, %c0_4] : memref<8x128xf32, #tpu.memory_space<vmem>>, vector<8x128xf32>
    tpu.vector_store %arg3[%c0_3, %c0_4], %2 {strides = array<i32>} : memref<8x128xf32, #tpu.memory_space<vmem>>, vector<8x128xf32>,
    return
  }
  func.func @transform_0(%arg0: i32) -> (i32, i32) {
    %c0_i32 = arith.constant 0 : i32
    %c0_i32_0 = arith.constant 0 : i32
    return %arg0, %c0_i32 : i32, i32
  }
  func.func @transform_1(%arg0: i32) -> (i32, i32) {
    %c0_i32 = arith.constant 0 : i32
    %c0_i32_0 = arith.constant 0 : i32
    %c0_i32_1 = arith.constant 0 : i32
    return %c0_i32, %c0_i32_0 : i32, i32
  }
  func.func @transform_2(%arg0: i32) -> (i32, i32) {
    %c0_i32 = arith.constant 0 : i32
    %c0_i32_0 = arith.constant 0 : i32
    return %arg0, %c0_i32 : i32, i32
  }
}

module attributes {stable_mosaic.version = 11 : i64} {
  func.func @kernel(%arg0: i32, %arg1: i32, %arg2: memref<8x8x128xbf16, #tpu.memory_space<vmem>>, %arg3: memref<128x512xbf16, #tpu.memory_space<vmem>>, %arg4: memref<128x512xbf16, #tpu.memory_space<vmem>>, %arg5: memref<1x512xf32, #tpu.memory_space<vmem>>, %arg6: memref<128x128xbf16, #tpu.memory_space<vmem>>, %arg7: memref<1x128xf32, #tpu.memory_space<vmem>>, %arg8: memref<8x128xf32, #tpu.memory_space<vmem>>, %arg9: memref<8x128xf32, #tpu.memory_space<vmem>>, %arg10: memref<8x128xf32, #tpu.memory_space<vmem>>) attributes {dimension_semantics = [#tpu.dimension_semantics<parallel>, #tpu.dimension_semantics<arbitrary>], iteration_bounds = array<i64: 1, 1>, scalar_prefetch = 0 : i64, scratch_operands = 2 : i64, tpu.core_type = #tpu.core_type<tc>, window_params = [{transform_indices = @transform_0, window_bounds = array<i64: 8, 8, 128>}, {pipeline_mode = #tpu.pipeline_mode<synchronous>, transform_indices = @transform_1, window_bounds = array<i64: 128, 512>}, {pipeline_mode = #tpu.pipeline_mode<synchronous>, transform_indices = @transform_2, window_bounds = array<i64: 128, 512>}, {pipeline_mode = #tpu.pipeline_mode<synchronous>, transform_indices = @transform_3, window_bounds = array<i64: 1, 512>}, {pipeline_mode = #tpu.pipeline_mode<synchronous>, transform_indices = @transform_4, window_bounds = array<i64: 128, 128>}, {pipeline_mode = #tpu.pipeline_mode<synchronous>, transform_indices = @transform_5, window_bounds = array<i64: 1, 128>}, {transform_indices = @transform_6, window_bounds = array<i64: 8, 128>}]} {
    %c0_i32 = arith.constant 0 : i32
    %0 = arith.cmpi eq, %arg1, %c0_i32 : i32
    %1 = arith.extui %0 : i1 to i32
    %c0_i32_0 = arith.constant 0 : i32
    %2 = arith.cmpi ne, %1, %c0_i32_0 : i32
    scf.if %2 {
      %cst_88 = arith.constant 0.000000e+00 : f32
      %317 = vector.broadcast %cst_88 : f32 to vector<8x128xf32>
      %c0_89 = arith.constant 0 : index
      %c0_90 = arith.constant 0 : index
      %318 = vector.load %arg9[%c0_89, %c0_90] : memref<8x128xf32, #tpu.memory_space<vmem>>, vector<8x128xf32>
      tpu.vector_store %arg9[%c0_89, %c0_90], %317 {strides = array<i32>} : memref<8x128xf32, #tpu.memory_space<vmem>>, vector<8x128xf32>,
      %cst_91 = arith.constant 0.000000e+00 : f32
      %319 = vector.broadcast %cst_91 : f32 to vector<8x128xf32>
      %c0_92 = arith.constant 0 : index
      %c0_93 = arith.constant 0 : index
      %320 = vector.load %arg10[%c0_92, %c0_93] : memref<8x128xf32, #tpu.memory_space<vmem>>, vector<8x128xf32>
      tpu.vector_store %arg10[%c0_92, %c0_93], %319 {strides = array<i32>} : memref<8x128xf32, #tpu.memory_space<vmem>>, vector<8x128xf32>,
    } else {
    }
    %c0 = arith.constant 0 : index
    %c0_1 = arith.constant 0 : index
    %3 = vector.load %arg3[%c0, %c0_1] : memref<128x512xbf16, #tpu.memory_space<vmem>>, vector<128x512xbf16>
    %c0_2 = arith.constant 0 : index
    %c0_3 = arith.constant 0 : index
    %4 = vector.load %arg4[%c0_2, %c0_3] : memref<128x512xbf16, #tpu.memory_space<vmem>>, vector<128x512xbf16>
    %c0_4 = arith.constant 0 : index
    %c0_5 = arith.constant 0 : index
    %5 = vector.load %arg5[%c0_4, %c0_5] : memref<1x512xf32, #tpu.memory_space<vmem>>, vector<1x512xf32>
    %c0_6 = arith.constant 0 : index
    %c0_7 = arith.constant 0 : index
    %6 = vector.load %arg9[%c0_6, %c0_7] : memref<8x128xf32, #tpu.memory_space<vmem>>, vector<8x128xf32>
    %c0_8 = arith.constant 0 : index
    %c0_9 = arith.constant 0 : index
    %7 = vector.load %arg10[%c0_8, %c0_9] : memref<8x128xf32, #tpu.memory_space<vmem>>, vector<8x128xf32>
    %c0_10 = arith.constant 0 : index
    %c0_11 = arith.constant 0 : index
    %c0_12 = arith.constant 0 : index
    %8 = vector.load %arg2[%c0_10, %c0_11, %c0_12] : memref<8x8x128xbf16, #tpu.memory_space<vmem>>, vector<1x8x128xbf16>
    %9 = vector.shape_cast %8 : vector<1x8x128xbf16> to vector<8x128xbf16>
    %cst = arith.constant dense<0.000000e+00> : vector<8x512xf32>
    %10 = tpu.matmul %9, %3, %cst {dimension_numbers = #tpu.dot_dimension_numbers<[1], [0], [0], [1], [0, 0, 1, 1], [], []>} : vector<8x128xbf16>, vector<128x512xbf16>, vector<8x512xf32> -> vector<8x512xf32>
    %11 = arith.truncf %6 : vector<8x128xf32> to vector<8x128xbf16>
    %cst_13 = arith.constant dense<0.000000e+00> : vector<8x512xf32>
    %12 = tpu.matmul %11, %4, %cst_13 {dimension_numbers = #tpu.dot_dimension_numbers<[1], [0], [0], [1], [0, 0, 1, 1], [], []>} : vector<8x128xbf16>, vector<128x512xbf16>, vector<8x512xf32> -> vector<8x512xf32>
    %13 = arith.addf %10, %12 : vector<8x512xf32>
    %14 = vector.broadcast %5 : vector<1x512xf32> to vector<8x512xf32>
    %15 = arith.addf %13, %14 : vector<8x512xf32>
    %16 = vector.extract_strided_slice %15 {offsets = [0, 0], sizes = [8, 128], strides = [1, 1]} : vector<8x512xf32> to vector<8x128xf32>
    %17 = arith.negf %16 : vector<8x128xf32>
    %18 = math.exp %17 : vector<8x128xf32>
    %cst_14 = arith.constant 1.000000e+00 : f32
    %19 = vector.broadcast %cst_14 : f32 to vector<8x128xf32>
    %20 = arith.addf %19, %18 : vector<8x128xf32>
    %21 = arith.divf %19, %20 : vector<8x128xf32>
    %22 = vector.extract_strided_slice %15 {offsets = [0, 128], sizes = [8, 128], strides = [1, 1]} : vector<8x512xf32> to vector<8x128xf32>
    %23 = arith.negf %22 : vector<8x128xf32>
    %24 = math.exp %23 : vector<8x128xf32>
    %cst_15 = arith.constant 1.000000e+00 : f32
    %25 = vector.broadcast %cst_15 : f32 to vector<8x128xf32>
    %26 = arith.addf %25, %24 : vector<8x128xf32>
    %27 = arith.divf %25, %26 : vector<8x128xf32>
    %28 = vector.extract_strided_slice %15 {offsets = [0, 256], sizes = [8, 128], strides = [1, 1]} : vector<8x512xf32> to vector<8x128xf32>
    %29 = math.tanh %28 : vector<8x128xf32>
    %30 = vector.extract_strided_slice %15 {offsets = [0, 384], sizes = [8, 128], strides = [1, 1]} : vector<8x512xf32> to vector<8x128xf32>
    %31 = arith.negf %30 : vector<8x128xf32>
    %32 = math.exp %31 : vector<8x128xf32>
    %cst_16 = arith.constant 1.000000e+00 : f32
    %33 = vector.broadcast %cst_16 : f32 to vector<8x128xf32>
    %34 = arith.addf %33, %32 : vector<8x128xf32>
    %35 = arith.divf %33, %34 : vector<8x128xf32>
    %36 = arith.mulf %27, %7 : vector<8x128xf32>
    %37 = arith.mulf %21, %29 : vector<8x128xf32>
    %38 = arith.addf %36, %37 : vector<8x128xf32>
    %39 = math.tanh %38 : vector<8x128xf32>
    %40 = arith.mulf %35, %39 : vector<8x128xf32>
    %c8_i32 = arith.constant 8 : i32
    %41 = arith.muli %arg1, %c8_i32 : i32
    %c0_i32_17 = arith.constant 0 : i32
    %42 = arith.addi %41, %c0_i32_17 : i32
    %c8_i32_18 = arith.constant 8 : i32
    %43 = arith.cmpi slt, %42, %c8_i32_18 : i32
    %44 = arith.select %43, %38, %7 : vector<8x128xf32>
    %45 = arith.select %43, %40, %6 : vector<8x128xf32>
    %c1 = arith.constant 1 : index
    %c0_19 = arith.constant 0 : index
    %c0_20 = arith.constant 0 : index
    %46 = vector.load %arg2[%c1, %c0_19, %c0_20] : memref<8x8x128xbf16, #tpu.memory_space<vmem>>, vector<1x8x128xbf16>
    %47 = vector.shape_cast %46 : vector<1x8x128xbf16> to vector<8x128xbf16>
    %cst_21 = arith.constant dense<0.000000e+00> : vector<8x512xf32>
    %48 = tpu.matmul %47, %3, %cst_21 {dimension_numbers = #tpu.dot_dimension_numbers<[1], [0], [0], [1], [0, 0, 1, 1], [], []>} : vector<8x128xbf16>, vector<128x512xbf16>, vector<8x512xf32> -> vector<8x512xf32>
    %49 = arith.truncf %45 : vector<8x128xf32> to vector<8x128xbf16>
    %cst_22 = arith.constant dense<0.000000e+00> : vector<8x512xf32>
    %50 = tpu.matmul %49, %4, %cst_22 {dimension_numbers = #tpu.dot_dimension_numbers<[1], [0], [0], [1], [0, 0, 1, 1], [], []>} : vector<8x128xbf16>, vector<128x512xbf16>, vector<8x512xf32> -> vector<8x512xf32>
    %51 = arith.addf %48, %50 : vector<8x512xf32>
    %52 = vector.broadcast %5 : vector<1x512xf32> to vector<8x512xf32>
    %53 = arith.addf %51, %52 : vector<8x512xf32>
    %54 = vector.extract_strided_slice %53 {offsets = [0, 0], sizes = [8, 128], strides = [1, 1]} : vector<8x512xf32> to vector<8x128xf32>
    %55 = arith.negf %54 : vector<8x128xf32>
    %56 = math.exp %55 : vector<8x128xf32>
    %cst_23 = arith.constant 1.000000e+00 : f32
    %57 = vector.broadcast %cst_23 : f32 to vector<8x128xf32>
    %58 = arith.addf %57, %56 : vector<8x128xf32>
    %59 = arith.divf %57, %58 : vector<8x128xf32>
    %60 = vector.extract_strided_slice %53 {offsets = [0, 128], sizes = [8, 128], strides = [1, 1]} : vector<8x512xf32> to vector<8x128xf32>
    %61 = arith.negf %60 : vector<8x128xf32>
    %62 = math.exp %61 : vector<8x128xf32>
    %cst_24 = arith.constant 1.000000e+00 : f32
    %63 = vector.broadcast %cst_24 : f32 to vector<8x128xf32>
    %64 = arith.addf %63, %62 : vector<8x128xf32>
    %65 = arith.divf %63, %64 : vector<8x128xf32>
    %66 = vector.extract_strided_slice %53 {offsets = [0, 256], sizes = [8, 128], strides = [1, 1]} : vector<8x512xf32> to vector<8x128xf32>
    %67 = math.tanh %66 : vector<8x128xf32>
    %68 = vector.extract_strided_slice %53 {offsets = [0, 384], sizes = [8, 128], strides = [1, 1]} : vector<8x512xf32> to vector<8x128xf32>
    %69 = arith.negf %68 : vector<8x128xf32>
    %70 = math.exp %69 : vector<8x128xf32>
    %cst_25 = arith.constant 1.000000e+00 : f32
    %71 = vector.broadcast %cst_25 : f32 to vector<8x128xf32>
    %72 = arith.addf %71, %70 : vector<8x128xf32>
    %73 = arith.divf %71, %72 : vector<8x128xf32>
    %74 = arith.mulf %65, %44 : vector<8x128xf32>
    %75 = arith.mulf %59, %67 : vector<8x128xf32>
    %76 = arith.addf %74, %75 : vector<8x128xf32>
    %77 = math.tanh %76 : vector<8x128xf32>
    %78 = arith.mulf %73, %77 : vector<8x128xf32>
    %c8_i32_26 = arith.constant 8 : i32
    %79 = arith.muli %arg1, %c8_i32_26 : i32
    %c1_i32 = arith.constant 1 : i32
    %80 = arith.addi %79, %c1_i32 : i32
    %c8_i32_27 = arith.constant 8 : i32
    %81 = arith.cmpi slt, %80, %c8_i32_27 : i32
    %82 = arith.select %81, %76, %44 : vector<8x128xf32>
    %83 = arith.select %81, %78, %45 : vector<8x128xf32>
    %c2 = arith.constant 2 : index
    %c0_28 = arith.constant 0 : index
    %c0_29 = arith.constant 0 : index
    %84 = vector.load %arg2[%c2, %c0_28, %c0_29] : memref<8x8x128xbf16, #tpu.memory_space<vmem>>, vector<1x8x128xbf16>
    %85 = vector.shape_cast %84 : vector<1x8x128xbf16> to vector<8x128xbf16>
    %cst_30 = arith.constant dense<0.000000e+00> : vector<8x512xf32>
    %86 = tpu.matmul %85, %3, %cst_30 {dimension_numbers = #tpu.dot_dimension_numbers<[1], [0], [0], [1], [0, 0, 1, 1], [], []>} : vector<8x128xbf16>, vector<128x512xbf16>, vector<8x512xf32> -> vector<8x512xf32>
    %87 = arith.truncf %83 : vector<8x128xf32> to vector<8x128xbf16>
    %cst_31 = arith.constant dense<0.000000e+00> : vector<8x512xf32>
    %88 = tpu.matmul %87, %4, %cst_31 {dimension_numbers = #tpu.dot_dimension_numbers<[1], [0], [0], [1], [0, 0, 1, 1], [], []>} : vector<8x128xbf16>, vector<128x512xbf16>, vector<8x512xf32> -> vector<8x512xf32>
    %89 = arith.addf %86, %88 : vector<8x512xf32>
    %90 = vector.broadcast %5 : vector<1x512xf32> to vector<8x512xf32>
    %91 = arith.addf %89, %90 : vector<8x512xf32>
    %92 = vector.extract_strided_slice %91 {offsets = [0, 0], sizes = [8, 128], strides = [1, 1]} : vector<8x512xf32> to vector<8x128xf32>
    %93 = arith.negf %92 : vector<8x128xf32>
    %94 = math.exp %93 : vector<8x128xf32>
    %cst_32 = arith.constant 1.000000e+00 : f32
    %95 = vector.broadcast %cst_32 : f32 to vector<8x128xf32>
    %96 = arith.addf %95, %94 : vector<8x128xf32>
    %97 = arith.divf %95, %96 : vector<8x128xf32>
    %98 = vector.extract_strided_slice %91 {offsets = [0, 128], sizes = [8, 128], strides = [1, 1]} : vector<8x512xf32> to vector<8x128xf32>
    %99 = arith.negf %98 : vector<8x128xf32>
    %100 = math.exp %99 : vector<8x128xf32>
    %cst_33 = arith.constant 1.000000e+00 : f32
    %101 = vector.broadcast %cst_33 : f32 to vector<8x128xf32>
    %102 = arith.addf %101, %100 : vector<8x128xf32>
    %103 = arith.divf %101, %102 : vector<8x128xf32>
    %104 = vector.extract_strided_slice %91 {offsets = [0, 256], sizes = [8, 128], strides = [1, 1]} : vector<8x512xf32> to vector<8x128xf32>
    %105 = math.tanh %104 : vector<8x128xf32>
    %106 = vector.extract_strided_slice %91 {offsets = [0, 384], sizes = [8, 128], strides = [1, 1]} : vector<8x512xf32> to vector<8x128xf32>
    %107 = arith.negf %106 : vector<8x128xf32>
    %108 = math.exp %107 : vector<8x128xf32>
    %cst_34 = arith.constant 1.000000e+00 : f32
    %109 = vector.broadcast %cst_34 : f32 to vector<8x128xf32>
    %110 = arith.addf %109, %108 : vector<8x128xf32>
    %111 = arith.divf %109, %110 : vector<8x128xf32>
    %112 = arith.mulf %103, %82 : vector<8x128xf32>
    %113 = arith.mulf %97, %105 : vector<8x128xf32>
    %114 = arith.addf %112, %113 : vector<8x128xf32>
    %115 = math.tanh %114 : vector<8x128xf32>
    %116 = arith.mulf %111, %115 : vector<8x128xf32>
    %c8_i32_35 = arith.constant 8 : i32
    %117 = arith.muli %arg1, %c8_i32_35 : i32
    %c2_i32 = arith.constant 2 : i32
    %118 = arith.addi %117, %c2_i32 : i32
    %c8_i32_36 = arith.constant 8 : i32
    %119 = arith.cmpi slt, %118, %c8_i32_36 : i32
    %120 = arith.select %119, %114, %82 : vector<8x128xf32>
    %121 = arith.select %119, %116, %83 : vector<8x128xf32>
    %c3 = arith.constant 3 : index
    %c0_37 = arith.constant 0 : index
    %c0_38 = arith.constant 0 : index
    %122 = vector.load %arg2[%c3, %c0_37, %c0_38] : memref<8x8x128xbf16, #tpu.memory_space<vmem>>, vector<1x8x128xbf16>
    %123 = vector.shape_cast %122 : vector<1x8x128xbf16> to vector<8x128xbf16>
    %cst_39 = arith.constant dense<0.000000e+00> : vector<8x512xf32>
    %124 = tpu.matmul %123, %3, %cst_39 {dimension_numbers = #tpu.dot_dimension_numbers<[1], [0], [0], [1], [0, 0, 1, 1], [], []>} : vector<8x128xbf16>, vector<128x512xbf16>, vector<8x512xf32> -> vector<8x512xf32>
    %125 = arith.truncf %121 : vector<8x128xf32> to vector<8x128xbf16>
    %cst_40 = arith.constant dense<0.000000e+00> : vector<8x512xf32>
    %126 = tpu.matmul %125, %4, %cst_40 {dimension_numbers = #tpu.dot_dimension_numbers<[1], [0], [0], [1], [0, 0, 1, 1], [], []>} : vector<8x128xbf16>, vector<128x512xbf16>, vector<8x512xf32> -> vector<8x512xf32>
    %127 = arith.addf %124, %126 : vector<8x512xf32>
    %128 = vector.broadcast %5 : vector<1x512xf32> to vector<8x512xf32>
    %129 = arith.addf %127, %128 : vector<8x512xf32>
    %130 = vector.extract_strided_slice %129 {offsets = [0, 0], sizes = [8, 128], strides = [1, 1]} : vector<8x512xf32> to vector<8x128xf32>
    %131 = arith.negf %130 : vector<8x128xf32>
    %132 = math.exp %131 : vector<8x128xf32>
    %cst_41 = arith.constant 1.000000e+00 : f32
    %133 = vector.broadcast %cst_41 : f32 to vector<8x128xf32>
    %134 = arith.addf %133, %132 : vector<8x128xf32>
    %135 = arith.divf %133, %134 : vector<8x128xf32>
    %136 = vector.extract_strided_slice %129 {offsets = [0, 128], sizes = [8, 128], strides = [1, 1]} : vector<8x512xf32> to vector<8x128xf32>
    %137 = arith.negf %136 : vector<8x128xf32>
    %138 = math.exp %137 : vector<8x128xf32>
    %cst_42 = arith.constant 1.000000e+00 : f32
    %139 = vector.broadcast %cst_42 : f32 to vector<8x128xf32>
    %140 = arith.addf %139, %138 : vector<8x128xf32>
    %141 = arith.divf %139, %140 : vector<8x128xf32>
    %142 = vector.extract_strided_slice %129 {offsets = [0, 256], sizes = [8, 128], strides = [1, 1]} : vector<8x512xf32> to vector<8x128xf32>
    %143 = math.tanh %142 : vector<8x128xf32>
    %144 = vector.extract_strided_slice %129 {offsets = [0, 384], sizes = [8, 128], strides = [1, 1]} : vector<8x512xf32> to vector<8x128xf32>
    %145 = arith.negf %144 : vector<8x128xf32>
    %146 = math.exp %145 : vector<8x128xf32>
    %cst_43 = arith.constant 1.000000e+00 : f32
    %147 = vector.broadcast %cst_43 : f32 to vector<8x128xf32>
    %148 = arith.addf %147, %146 : vector<8x128xf32>
    %149 = arith.divf %147, %148 : vector<8x128xf32>
    %150 = arith.mulf %141, %120 : vector<8x128xf32>
    %151 = arith.mulf %135, %143 : vector<8x128xf32>
    %152 = arith.addf %150, %151 : vector<8x128xf32>
    %153 = math.tanh %152 : vector<8x128xf32>
    %154 = arith.mulf %149, %153 : vector<8x128xf32>
    %c8_i32_44 = arith.constant 8 : i32
    %155 = arith.muli %arg1, %c8_i32_44 : i32
    %c3_i32 = arith.constant 3 : i32
    %156 = arith.addi %155, %c3_i32 : i32
    %c8_i32_45 = arith.constant 8 : i32
    %157 = arith.cmpi slt, %156, %c8_i32_45 : i32
    %158 = arith.select %157, %152, %120 : vector<8x128xf32>
    %159 = arith.select %157, %154, %121 : vector<8x128xf32>
    %c4 = arith.constant 4 : index
    %c0_46 = arith.constant 0 : index
    %c0_47 = arith.constant 0 : index
    %160 = vector.load %arg2[%c4, %c0_46, %c0_47] : memref<8x8x128xbf16, #tpu.memory_space<vmem>>, vector<1x8x128xbf16>
    %161 = vector.shape_cast %160 : vector<1x8x128xbf16> to vector<8x128xbf16>
    %cst_48 = arith.constant dense<0.000000e+00> : vector<8x512xf32>
    %162 = tpu.matmul %161, %3, %cst_48 {dimension_numbers = #tpu.dot_dimension_numbers<[1], [0], [0], [1], [0, 0, 1, 1], [], []>} : vector<8x128xbf16>, vector<128x512xbf16>, vector<8x512xf32> -> vector<8x512xf32>
    %163 = arith.truncf %159 : vector<8x128xf32> to vector<8x128xbf16>
    %cst_49 = arith.constant dense<0.000000e+00> : vector<8x512xf32>
    %164 = tpu.matmul %163, %4, %cst_49 {dimension_numbers = #tpu.dot_dimension_numbers<[1], [0], [0], [1], [0, 0, 1, 1], [], []>} : vector<8x128xbf16>, vector<128x512xbf16>, vector<8x512xf32> -> vector<8x512xf32>
    %165 = arith.addf %162, %164 : vector<8x512xf32>
    %166 = vector.broadcast %5 : vector<1x512xf32> to vector<8x512xf32>
    %167 = arith.addf %165, %166 : vector<8x512xf32>
    %168 = vector.extract_strided_slice %167 {offsets = [0, 0], sizes = [8, 128], strides = [1, 1]} : vector<8x512xf32> to vector<8x128xf32>
    %169 = arith.negf %168 : vector<8x128xf32>
    %170 = math.exp %169 : vector<8x128xf32>
    %cst_50 = arith.constant 1.000000e+00 : f32
    %171 = vector.broadcast %cst_50 : f32 to vector<8x128xf32>
    %172 = arith.addf %171, %170 : vector<8x128xf32>
    %173 = arith.divf %171, %172 : vector<8x128xf32>
    %174 = vector.extract_strided_slice %167 {offsets = [0, 128], sizes = [8, 128], strides = [1, 1]} : vector<8x512xf32> to vector<8x128xf32>
    %175 = arith.negf %174 : vector<8x128xf32>
    %176 = math.exp %175 : vector<8x128xf32>
    %cst_51 = arith.constant 1.000000e+00 : f32
    %177 = vector.broadcast %cst_51 : f32 to vector<8x128xf32>
    %178 = arith.addf %177, %176 : vector<8x128xf32>
    %179 = arith.divf %177, %178 : vector<8x128xf32>
    %180 = vector.extract_strided_slice %167 {offsets = [0, 256], sizes = [8, 128], strides = [1, 1]} : vector<8x512xf32> to vector<8x128xf32>
    %181 = math.tanh %180 : vector<8x128xf32>
    %182 = vector.extract_strided_slice %167 {offsets = [0, 384], sizes = [8, 128], strides = [1, 1]} : vector<8x512xf32> to vector<8x128xf32>
    %183 = arith.negf %182 : vector<8x128xf32>
    %184 = math.exp %183 : vector<8x128xf32>
    %cst_52 = arith.constant 1.000000e+00 : f32
    %185 = vector.broadcast %cst_52 : f32 to vector<8x128xf32>
    %186 = arith.addf %185, %184 : vector<8x128xf32>
    %187 = arith.divf %185, %186 : vector<8x128xf32>
    %188 = arith.mulf %179, %158 : vector<8x128xf32>
    %189 = arith.mulf %173, %181 : vector<8x128xf32>
    %190 = arith.addf %188, %189 : vector<8x128xf32>
    %191 = math.tanh %190 : vector<8x128xf32>
    %192 = arith.mulf %187, %191 : vector<8x128xf32>
    %c8_i32_53 = arith.constant 8 : i32
    %193 = arith.muli %arg1, %c8_i32_53 : i32
    %c4_i32 = arith.constant 4 : i32
    %194 = arith.addi %193, %c4_i32 : i32
    %c8_i32_54 = arith.constant 8 : i32
    %195 = arith.cmpi slt, %194, %c8_i32_54 : i32
    %196 = arith.select %195, %190, %158 : vector<8x128xf32>
    %197 = arith.select %195, %192, %159 : vector<8x128xf32>
    %c5 = arith.constant 5 : index
    %c0_55 = arith.constant 0 : index
    %c0_56 = arith.constant 0 : index
    %198 = vector.load %arg2[%c5, %c0_55, %c0_56] : memref<8x8x128xbf16, #tpu.memory_space<vmem>>, vector<1x8x128xbf16>
    %199 = vector.shape_cast %198 : vector<1x8x128xbf16> to vector<8x128xbf16>
    %cst_57 = arith.constant dense<0.000000e+00> : vector<8x512xf32>
    %200 = tpu.matmul %199, %3, %cst_57 {dimension_numbers = #tpu.dot_dimension_numbers<[1], [0], [0], [1], [0, 0, 1, 1], [], []>} : vector<8x128xbf16>, vector<128x512xbf16>, vector<8x512xf32> -> vector<8x512xf32>
    %201 = arith.truncf %197 : vector<8x128xf32> to vector<8x128xbf16>
    %cst_58 = arith.constant dense<0.000000e+00> : vector<8x512xf32>
    %202 = tpu.matmul %201, %4, %cst_58 {dimension_numbers = #tpu.dot_dimension_numbers<[1], [0], [0], [1], [0, 0, 1, 1], [], []>} : vector<8x128xbf16>, vector<128x512xbf16>, vector<8x512xf32> -> vector<8x512xf32>
    %203 = arith.addf %200, %202 : vector<8x512xf32>
    %204 = vector.broadcast %5 : vector<1x512xf32> to vector<8x512xf32>
    %205 = arith.addf %203, %204 : vector<8x512xf32>
    %206 = vector.extract_strided_slice %205 {offsets = [0, 0], sizes = [8, 128], strides = [1, 1]} : vector<8x512xf32> to vector<8x128xf32>
    %207 = arith.negf %206 : vector<8x128xf32>
    %208 = math.exp %207 : vector<8x128xf32>
    %cst_59 = arith.constant 1.000000e+00 : f32
    %209 = vector.broadcast %cst_59 : f32 to vector<8x128xf32>
    %210 = arith.addf %209, %208 : vector<8x128xf32>
    %211 = arith.divf %209, %210 : vector<8x128xf32>
    %212 = vector.extract_strided_slice %205 {offsets = [0, 128], sizes = [8, 128], strides = [1, 1]} : vector<8x512xf32> to vector<8x128xf32>
    %213 = arith.negf %212 : vector<8x128xf32>
    %214 = math.exp %213 : vector<8x128xf32>
    %cst_60 = arith.constant 1.000000e+00 : f32
    %215 = vector.broadcast %cst_60 : f32 to vector<8x128xf32>
    %216 = arith.addf %215, %214 : vector<8x128xf32>
    %217 = arith.divf %215, %216 : vector<8x128xf32>
    %218 = vector.extract_strided_slice %205 {offsets = [0, 256], sizes = [8, 128], strides = [1, 1]} : vector<8x512xf32> to vector<8x128xf32>
    %219 = math.tanh %218 : vector<8x128xf32>
    %220 = vector.extract_strided_slice %205 {offsets = [0, 384], sizes = [8, 128], strides = [1, 1]} : vector<8x512xf32> to vector<8x128xf32>
    %221 = arith.negf %220 : vector<8x128xf32>
    %222 = math.exp %221 : vector<8x128xf32>
    %cst_61 = arith.constant 1.000000e+00 : f32
    %223 = vector.broadcast %cst_61 : f32 to vector<8x128xf32>
    %224 = arith.addf %223, %222 : vector<8x128xf32>
    %225 = arith.divf %223, %224 : vector<8x128xf32>
    %226 = arith.mulf %217, %196 : vector<8x128xf32>
    %227 = arith.mulf %211, %219 : vector<8x128xf32>
    %228 = arith.addf %226, %227 : vector<8x128xf32>
    %229 = math.tanh %228 : vector<8x128xf32>
    %230 = arith.mulf %225, %229 : vector<8x128xf32>
    %c8_i32_62 = arith.constant 8 : i32
    %231 = arith.muli %arg1, %c8_i32_62 : i32
    %c5_i32 = arith.constant 5 : i32
    %232 = arith.addi %231, %c5_i32 : i32
    %c8_i32_63 = arith.constant 8 : i32
    %233 = arith.cmpi slt, %232, %c8_i32_63 : i32
    %234 = arith.select %233, %228, %196 : vector<8x128xf32>
    %235 = arith.select %233, %230, %197 : vector<8x128xf32>
    %c6 = arith.constant 6 : index
    %c0_64 = arith.constant 0 : index
    %c0_65 = arith.constant 0 : index
    %236 = vector.load %arg2[%c6, %c0_64, %c0_65] : memref<8x8x128xbf16, #tpu.memory_space<vmem>>, vector<1x8x128xbf16>
    %237 = vector.shape_cast %236 : vector<1x8x128xbf16> to vector<8x128xbf16>
    %cst_66 = arith.constant dense<0.000000e+00> : vector<8x512xf32>
    %238 = tpu.matmul %237, %3, %cst_66 {dimension_numbers = #tpu.dot_dimension_numbers<[1], [0], [0], [1], [0, 0, 1, 1], [], []>} : vector<8x128xbf16>, vector<128x512xbf16>, vector<8x512xf32> -> vector<8x512xf32>
    %239 = arith.truncf %235 : vector<8x128xf32> to vector<8x128xbf16>
    %cst_67 = arith.constant dense<0.000000e+00> : vector<8x512xf32>
    %240 = tpu.matmul %239, %4, %cst_67 {dimension_numbers = #tpu.dot_dimension_numbers<[1], [0], [0], [1], [0, 0, 1, 1], [], []>} : vector<8x128xbf16>, vector<128x512xbf16>, vector<8x512xf32> -> vector<8x512xf32>
    %241 = arith.addf %238, %240 : vector<8x512xf32>
    %242 = vector.broadcast %5 : vector<1x512xf32> to vector<8x512xf32>
    %243 = arith.addf %241, %242 : vector<8x512xf32>
    %244 = vector.extract_strided_slice %243 {offsets = [0, 0], sizes = [8, 128], strides = [1, 1]} : vector<8x512xf32> to vector<8x128xf32>
    %245 = arith.negf %244 : vector<8x128xf32>
    %246 = math.exp %245 : vector<8x128xf32>
    %cst_68 = arith.constant 1.000000e+00 : f32
    %247 = vector.broadcast %cst_68 : f32 to vector<8x128xf32>
    %248 = arith.addf %247, %246 : vector<8x128xf32>
    %249 = arith.divf %247, %248 : vector<8x128xf32>
    %250 = vector.extract_strided_slice %243 {offsets = [0, 128], sizes = [8, 128], strides = [1, 1]} : vector<8x512xf32> to vector<8x128xf32>
    %251 = arith.negf %250 : vector<8x128xf32>
    %252 = math.exp %251 : vector<8x128xf32>
    %cst_69 = arith.constant 1.000000e+00 : f32
    %253 = vector.broadcast %cst_69 : f32 to vector<8x128xf32>
    %254 = arith.addf %253, %252 : vector<8x128xf32>
    %255 = arith.divf %253, %254 : vector<8x128xf32>
    %256 = vector.extract_strided_slice %243 {offsets = [0, 256], sizes = [8, 128], strides = [1, 1]} : vector<8x512xf32> to vector<8x128xf32>
    %257 = math.tanh %256 : vector<8x128xf32>
    %258 = vector.extract_strided_slice %243 {offsets = [0, 384], sizes = [8, 128], strides = [1, 1]} : vector<8x512xf32> to vector<8x128xf32>
    %259 = arith.negf %258 : vector<8x128xf32>
    %260 = math.exp %259 : vector<8x128xf32>
    %cst_70 = arith.constant 1.000000e+00 : f32
    %261 = vector.broadcast %cst_70 : f32 to vector<8x128xf32>
    %262 = arith.addf %261, %260 : vector<8x128xf32>
    %263 = arith.divf %261, %262 : vector<8x128xf32>
    %264 = arith.mulf %255, %234 : vector<8x128xf32>
    %265 = arith.mulf %249, %257 : vector<8x128xf32>
    %266 = arith.addf %264, %265 : vector<8x128xf32>
    %267 = math.tanh %266 : vector<8x128xf32>
    %268 = arith.mulf %263, %267 : vector<8x128xf32>
    %c8_i32_71 = arith.constant 8 : i32
    %269 = arith.muli %arg1, %c8_i32_71 : i32
    %c6_i32 = arith.constant 6 : i32
    %270 = arith.addi %269, %c6_i32 : i32
    %c8_i32_72 = arith.constant 8 : i32
    %271 = arith.cmpi slt, %270, %c8_i32_72 : i32
    %272 = arith.select %271, %266, %234 : vector<8x128xf32>
    %273 = arith.select %271, %268, %235 : vector<8x128xf32>
    %c7 = arith.constant 7 : index
    %c0_73 = arith.constant 0 : index
    %c0_74 = arith.constant 0 : index
    %274 = vector.load %arg2[%c7, %c0_73, %c0_74] : memref<8x8x128xbf16, #tpu.memory_space<vmem>>, vector<1x8x128xbf16>
    %275 = vector.shape_cast %274 : vector<1x8x128xbf16> to vector<8x128xbf16>
    %cst_75 = arith.constant dense<0.000000e+00> : vector<8x512xf32>
    %276 = tpu.matmul %275, %3, %cst_75 {dimension_numbers = #tpu.dot_dimension_numbers<[1], [0], [0], [1], [0, 0, 1, 1], [], []>} : vector<8x128xbf16>, vector<128x512xbf16>, vector<8x512xf32> -> vector<8x512xf32>
    %277 = arith.truncf %273 : vector<8x128xf32> to vector<8x128xbf16>
    %cst_76 = arith.constant dense<0.000000e+00> : vector<8x512xf32>
    %278 = tpu.matmul %277, %4, %cst_76 {dimension_numbers = #tpu.dot_dimension_numbers<[1], [0], [0], [1], [0, 0, 1, 1], [], []>} : vector<8x128xbf16>, vector<128x512xbf16>, vector<8x512xf32> -> vector<8x512xf32>
    %279 = arith.addf %276, %278 : vector<8x512xf32>
    %280 = vector.broadcast %5 : vector<1x512xf32> to vector<8x512xf32>
    %281 = arith.addf %279, %280 : vector<8x512xf32>
    %282 = vector.extract_strided_slice %281 {offsets = [0, 0], sizes = [8, 128], strides = [1, 1]} : vector<8x512xf32> to vector<8x128xf32>
    %283 = arith.negf %282 : vector<8x128xf32>
    %284 = math.exp %283 : vector<8x128xf32>
    %cst_77 = arith.constant 1.000000e+00 : f32
    %285 = vector.broadcast %cst_77 : f32 to vector<8x128xf32>
    %286 = arith.addf %285, %284 : vector<8x128xf32>
    %287 = arith.divf %285, %286 : vector<8x128xf32>
    %288 = vector.extract_strided_slice %281 {offsets = [0, 128], sizes = [8, 128], strides = [1, 1]} : vector<8x512xf32> to vector<8x128xf32>
    %289 = arith.negf %288 : vector<8x128xf32>
    %290 = math.exp %289 : vector<8x128xf32>
    %cst_78 = arith.constant 1.000000e+00 : f32
    %291 = vector.broadcast %cst_78 : f32 to vector<8x128xf32>
    %292 = arith.addf %291, %290 : vector<8x128xf32>
    %293 = arith.divf %291, %292 : vector<8x128xf32>
    %294 = vector.extract_strided_slice %281 {offsets = [0, 256], sizes = [8, 128], strides = [1, 1]} : vector<8x512xf32> to vector<8x128xf32>
    %295 = math.tanh %294 : vector<8x128xf32>
    %296 = vector.extract_strided_slice %281 {offsets = [0, 384], sizes = [8, 128], strides = [1, 1]} : vector<8x512xf32> to vector<8x128xf32>
    %297 = arith.negf %296 : vector<8x128xf32>
    %298 = math.exp %297 : vector<8x128xf32>
    %cst_79 = arith.constant 1.000000e+00 : f32
    %299 = vector.broadcast %cst_79 : f32 to vector<8x128xf32>
    %300 = arith.addf %299, %298 : vector<8x128xf32>
    %301 = arith.divf %299, %300 : vector<8x128xf32>
    %302 = arith.mulf %293, %272 : vector<8x128xf32>
    %303 = arith.mulf %287, %295 : vector<8x128xf32>
    %304 = arith.addf %302, %303 : vector<8x128xf32>
    %305 = math.tanh %304 : vector<8x128xf32>
    %306 = arith.mulf %301, %305 : vector<8x128xf32>
    %c8_i32_80 = arith.constant 8 : i32
    %307 = arith.muli %arg1, %c8_i32_80 : i32
    %c7_i32 = arith.constant 7 : i32
    %308 = arith.addi %307, %c7_i32 : i32
    %c8_i32_81 = arith.constant 8 : i32
    %309 = arith.cmpi slt, %308, %c8_i32_81 : i32
    %310 = arith.select %309, %304, %272 : vector<8x128xf32>
    %311 = arith.select %309, %306, %273 : vector<8x128xf32>
    %c0_82 = arith.constant 0 : index
    %c0_83 = arith.constant 0 : index
    %312 = vector.load %arg9[%c0_82, %c0_83] : memref<8x128xf32, #tpu.memory_space<vmem>>, vector<8x128xf32>
    tpu.vector_store %arg9[%c0_82, %c0_83], %311 {strides = array<i32>} : memref<8x128xf32, #tpu.memory_space<vmem>>, vector<8x128xf32>,
    %c0_84 = arith.constant 0 : index
    %c0_85 = arith.constant 0 : index
    %313 = vector.load %arg10[%c0_84, %c0_85] : memref<8x128xf32, #tpu.memory_space<vmem>>, vector<8x128xf32>
    tpu.vector_store %arg10[%c0_84, %c0_85], %310 {strides = array<i32>} : memref<8x128xf32, #tpu.memory_space<vmem>>, vector<8x128xf32>,
    %c0_i32_86 = arith.constant 0 : i32
    %314 = arith.cmpi eq, %arg1, %c0_i32_86 : i32
    %315 = arith.extui %314 : i1 to i32
    %c0_i32_87 = arith.constant 0 : i32
    %316 = arith.cmpi ne, %315, %c0_i32_87 : i32
    scf.if %316 {
      %c0_88 = arith.constant 0 : index
      %c0_89 = arith.constant 0 : index
      %317 = vector.load %arg9[%c0_88, %c0_89] : memref<8x128xf32, #tpu.memory_space<vmem>>, vector<8x128xf32>
      %318 = arith.truncf %317 : vector<8x128xf32> to vector<8x128xbf16>
      %c0_90 = arith.constant 0 : index
      %c0_91 = arith.constant 0 : index
      %319 = vector.load %arg6[%c0_90, %c0_91] : memref<128x128xbf16, #tpu.memory_space<vmem>>, vector<128x128xbf16>
      %cst_92 = arith.constant dense<0.000000e+00> : vector<8x128xf32>
      %320 = tpu.matmul %318, %319, %cst_92 {dimension_numbers = #tpu.dot_dimension_numbers<[1], [0], [0], [1], [0, 0, 1, 1], [], []>} : vector<8x128xbf16>, vector<128x128xbf16>, vector<8x128xf32> -> vector<8x128xf32>
      %c0_93 = arith.constant 0 : index
      %c0_94 = arith.constant 0 : index
      %321 = vector.load %arg7[%c0_93, %c0_94] : memref<1x128xf32, #tpu.memory_space<vmem>>, vector<1x128xf32>
      %322 = vector.broadcast %321 : vector<1x128xf32> to vector<8x128xf32>
      %323 = arith.addf %320, %322 : vector<8x128xf32>
      %324 = arith.negf %323 : vector<8x128xf32>
      %325 = math.exp %324 : vector<8x128xf32>
      %cst_95 = arith.constant 1.000000e+00 : f32
      %326 = vector.broadcast %cst_95 : f32 to vector<8x128xf32>
      %327 = arith.addf %326, %325 : vector<8x128xf32>
      %328 = arith.divf %326, %327 : vector<8x128xf32>
      %c0_96 = arith.constant 0 : index
      %c0_97 = arith.constant 0 : index
      %329 = vector.load %arg8[%c0_96, %c0_97] : memref<8x128xf32, #tpu.memory_space<vmem>>, vector<8x128xf32>
      tpu.vector_store %arg8[%c0_96, %c0_97], %328 {strides = array<i32>} : memref<8x128xf32, #tpu.memory_space<vmem>>, vector<8x128xf32>,
    } else {
    }
    return
  }
  func.func @transform_0(%arg0: i32, %arg1: i32) -> (i32, i32, i32) {
    %c0_i32 = arith.constant 0 : i32
    %c0_i32_0 = arith.constant 0 : i32
    return %arg1, %arg0, %c0_i32 : i32, i32, i32
  }
  func.func @transform_1(%arg0: i32, %arg1: i32) -> (i32, i32) {
    %c0_i32 = arith.constant 0 : i32
    %c0_i32_0 = arith.constant 0 : i32
    %c0_i32_1 = arith.constant 0 : i32
    return %c0_i32, %c0_i32_0 : i32, i32
  }
  func.func @transform_2(%arg0: i32, %arg1: i32) -> (i32, i32) {
    %c0_i32 = arith.constant 0 : i32
    %c0_i32_0 = arith.constant 0 : i32
    %c0_i32_1 = arith.constant 0 : i32
    return %c0_i32, %c0_i32_0 : i32, i32
  }
  func.func @transform_3(%arg0: i32, %arg1: i32) -> (i32, i32) {
    %c0_i32 = arith.constant 0 : i32
    %c0_i32_0 = arith.constant 0 : i32
    %c0_i32_1 = arith.constant 0 : i32
    return %c0_i32, %c0_i32_0 : i32, i32
  }
  func.func @transform_4(%arg0: i32, %arg1: i32) -> (i32, i32) {
    %c0_i32 = arith.constant 0 : i32
    %c0_i32_0 = arith.constant 0 : i32
    %c0_i32_1 = arith.constant 0 : i32
    return %c0_i32, %c0_i32_0 : i32, i32
  }
  func.func @transform_5(%arg0: i32, %arg1: i32) -> (i32, i32) {
    %c0_i32 = arith.constant 0 : i32
    %c0_i32_0 = arith.constant 0 : i32
    %c0_i32_1 = arith.constant 0 : i32
    return %c0_i32, %c0_i32_0 : i32, i32
  }
  func.func @transform_6(%arg0: i32, %arg1: i32) -> (i32, i32) {
    %c0_i32 = arith.constant 0 : i32
    %c0_i32_0 = arith.constant 0 : i32
    return %arg0, %c0_i32 : i32, i32
  }
}

module attributes {stable_mosaic.version = 11 : i64} {
  func.func @kernel(%arg0: i32, %arg1: i32, %arg2: memref<8x8x8xf32, #tpu.memory_space<vmem>>, %arg3: memref<8x512xbf16, #tpu.memory_space<vmem>>, %arg4: memref<128x512xbf16, #tpu.memory_space<vmem>>, %arg5: memref<1x512xf32, #tpu.memory_space<vmem>>, %arg6: memref<8x8x128xbf16, #tpu.memory_space<vmem>>, %arg7: memref<8x128xf32, #tpu.memory_space<vmem>>, %arg8: memref<8x128xf32, #tpu.memory_space<vmem>>) attributes {dimension_semantics = [#tpu.dimension_semantics<parallel>, #tpu.dimension_semantics<arbitrary>], iteration_bounds = array<i64: 1, 1>, scalar_prefetch = 0 : i64, scratch_operands = 2 : i64, tpu.core_type = #tpu.core_type<tc>, window_params = [{transform_indices = @transform_0, window_bounds = array<i64: 8, 8, 8>}, {pipeline_mode = #tpu.pipeline_mode<synchronous>, transform_indices = @transform_1, window_bounds = array<i64: 8, 512>}, {pipeline_mode = #tpu.pipeline_mode<synchronous>, transform_indices = @transform_2, window_bounds = array<i64: 128, 512>}, {pipeline_mode = #tpu.pipeline_mode<synchronous>, transform_indices = @transform_3, window_bounds = array<i64: 1, 512>}, {transform_indices = @transform_4, window_bounds = array<i64: 8, 8, 128>}]} {
    %c0_i32 = arith.constant 0 : i32
    %0 = arith.cmpi eq, %arg1, %c0_i32 : i32
    %1 = arith.extui %0 : i1 to i32
    %c0_i32_0 = arith.constant 0 : i32
    %2 = arith.cmpi ne, %1, %c0_i32_0 : i32
    scf.if %2 {
      %cst_110 = arith.constant 0.000000e+00 : f32
      %354 = vector.broadcast %cst_110 : f32 to vector<8x128xf32>
      %c0_111 = arith.constant 0 : index
      %c0_112 = arith.constant 0 : index
      %355 = vector.load %arg7[%c0_111, %c0_112] : memref<8x128xf32, #tpu.memory_space<vmem>>, vector<8x128xf32>
      tpu.vector_store %arg7[%c0_111, %c0_112], %354 {strides = array<i32>} : memref<8x128xf32, #tpu.memory_space<vmem>>, vector<8x128xf32>,
      %cst_113 = arith.constant 0.000000e+00 : f32
      %356 = vector.broadcast %cst_113 : f32 to vector<8x128xf32>
      %c0_114 = arith.constant 0 : index
      %c0_115 = arith.constant 0 : index
      %357 = vector.load %arg8[%c0_114, %c0_115] : memref<8x128xf32, #tpu.memory_space<vmem>>, vector<8x128xf32>
      tpu.vector_store %arg8[%c0_114, %c0_115], %356 {strides = array<i32>} : memref<8x128xf32, #tpu.memory_space<vmem>>, vector<8x128xf32>,
    } else {
    }
    %c0 = arith.constant 0 : index
    %c0_1 = arith.constant 0 : index
    %3 = vector.load %arg3[%c0, %c0_1] : memref<8x512xbf16, #tpu.memory_space<vmem>>, vector<8x512xbf16>
    %c0_2 = arith.constant 0 : index
    %c0_3 = arith.constant 0 : index
    %4 = vector.load %arg4[%c0_2, %c0_3] : memref<128x512xbf16, #tpu.memory_space<vmem>>, vector<128x512xbf16>
    %c0_4 = arith.constant 0 : index
    %c0_5 = arith.constant 0 : index
    %5 = vector.load %arg5[%c0_4, %c0_5] : memref<1x512xf32, #tpu.memory_space<vmem>>, vector<1x512xf32>
    %c0_6 = arith.constant 0 : index
    %c0_7 = arith.constant 0 : index
    %6 = vector.load %arg7[%c0_6, %c0_7] : memref<8x128xf32, #tpu.memory_space<vmem>>, vector<8x128xf32>
    %c0_8 = arith.constant 0 : index
    %c0_9 = arith.constant 0 : index
    %7 = vector.load %arg8[%c0_8, %c0_9] : memref<8x128xf32, #tpu.memory_space<vmem>>, vector<8x128xf32>
    %c0_10 = arith.constant 0 : index
    %c0_11 = arith.constant 0 : index
    %c0_12 = arith.constant 0 : index
    %8 = vector.load %arg2[%c0_10, %c0_11, %c0_12] : memref<8x8x8xf32, #tpu.memory_space<vmem>>, vector<8x1x8xf32>
    %9 = vector.shape_cast %8 : vector<8x1x8xf32> to vector<8x8xf32>
    %10 = arith.truncf %9 : vector<8x8xf32> to vector<8x8xbf16>
    %cst = arith.constant dense<0.000000e+00> : vector<8x512xf32>
    %11 = tpu.matmul %10, %3, %cst {dimension_numbers = #tpu.dot_dimension_numbers<[1], [0], [0], [1], [0, 0, 1, 1], [], []>} : vector<8x8xbf16>, vector<8x512xbf16>, vector<8x512xf32> -> vector<8x512xf32>
    %12 = arith.truncf %6 : vector<8x128xf32> to vector<8x128xbf16>
    %cst_13 = arith.constant dense<0.000000e+00> : vector<8x512xf32>
    %13 = tpu.matmul %12, %4, %cst_13 {dimension_numbers = #tpu.dot_dimension_numbers<[1], [0], [0], [1], [0, 0, 1, 1], [], []>} : vector<8x128xbf16>, vector<128x512xbf16>, vector<8x512xf32> -> vector<8x512xf32>
    %14 = arith.addf %11, %13 : vector<8x512xf32>
    %15 = vector.broadcast %5 : vector<1x512xf32> to vector<8x512xf32>
    %16 = arith.addf %14, %15 : vector<8x512xf32>
    %17 = vector.extract_strided_slice %16 {offsets = [0, 0], sizes = [8, 128], strides = [1, 1]} : vector<8x512xf32> to vector<8x128xf32>
    %18 = arith.negf %17 : vector<8x128xf32>
    %19 = math.exp %18 : vector<8x128xf32>
    %cst_14 = arith.constant 1.000000e+00 : f32
    %20 = vector.broadcast %cst_14 : f32 to vector<8x128xf32>
    %21 = arith.addf %20, %19 : vector<8x128xf32>
    %22 = arith.divf %20, %21 : vector<8x128xf32>
    %23 = vector.extract_strided_slice %16 {offsets = [0, 128], sizes = [8, 128], strides = [1, 1]} : vector<8x512xf32> to vector<8x128xf32>
    %24 = arith.negf %23 : vector<8x128xf32>
    %25 = math.exp %24 : vector<8x128xf32>
    %cst_15 = arith.constant 1.000000e+00 : f32
    %26 = vector.broadcast %cst_15 : f32 to vector<8x128xf32>
    %27 = arith.addf %26, %25 : vector<8x128xf32>
    %28 = arith.divf %26, %27 : vector<8x128xf32>
    %29 = vector.extract_strided_slice %16 {offsets = [0, 256], sizes = [8, 128], strides = [1, 1]} : vector<8x512xf32> to vector<8x128xf32>
    %30 = math.tanh %29 : vector<8x128xf32>
    %31 = vector.extract_strided_slice %16 {offsets = [0, 384], sizes = [8, 128], strides = [1, 1]} : vector<8x512xf32> to vector<8x128xf32>
    %32 = arith.negf %31 : vector<8x128xf32>
    %33 = math.exp %32 : vector<8x128xf32>
    %cst_16 = arith.constant 1.000000e+00 : f32
    %34 = vector.broadcast %cst_16 : f32 to vector<8x128xf32>
    %35 = arith.addf %34, %33 : vector<8x128xf32>
    %36 = arith.divf %34, %35 : vector<8x128xf32>
    %37 = arith.mulf %28, %7 : vector<8x128xf32>
    %38 = arith.mulf %22, %30 : vector<8x128xf32>
    %39 = arith.addf %37, %38 : vector<8x128xf32>
    %40 = math.tanh %39 : vector<8x128xf32>
    %41 = arith.mulf %36, %40 : vector<8x128xf32>
    %c8_i32 = arith.constant 8 : i32
    %42 = arith.muli %arg1, %c8_i32 : i32
    %c0_i32_17 = arith.constant 0 : i32
    %43 = arith.addi %42, %c0_i32_17 : i32
    %c8_i32_18 = arith.constant 8 : i32
    %44 = arith.cmpi slt, %43, %c8_i32_18 : i32
    %45 = arith.select %44, %39, %7 : vector<8x128xf32>
    %46 = arith.select %44, %41, %6 : vector<8x128xf32>
    %47 = arith.truncf %46 : vector<8x128xf32> to vector<8x128xbf16>
    %c0_19 = arith.constant 0 : index
    %c0_20 = arith.constant 0 : index
    %c0_21 = arith.constant 0 : index
    %48 = vector.load %arg6[%c0_19, %c0_20, %c0_21] : memref<8x8x128xbf16, #tpu.memory_space<vmem>>, vector<1x8x128xbf16>
    %49 = vector.shape_cast %48 : vector<1x8x128xbf16> to vector<8x128xbf16>
    %50 = vector.shape_cast %47 : vector<8x128xbf16> to vector<1x8x128xbf16>
    tpu.vector_store %arg6[%c0_19, %c0_20, %c0_21], %50 {strides = array<i32>} : memref<8x8x128xbf16, #tpu.memory_space<vmem>>, vector<1x8x128xbf16>,
    %c0_22 = arith.constant 0 : index
    %c1 = arith.constant 1 : index
    %c0_23 = arith.constant 0 : index
    %51 = vector.load %arg2[%c0_22, %c1, %c0_23] : memref<8x8x8xf32, #tpu.memory_space<vmem>>, vector<8x1x8xf32>
    %52 = vector.shape_cast %51 : vector<8x1x8xf32> to vector<8x8xf32>
    %53 = arith.truncf %52 : vector<8x8xf32> to vector<8x8xbf16>
    %cst_24 = arith.constant dense<0.000000e+00> : vector<8x512xf32>
    %54 = tpu.matmul %53, %3, %cst_24 {dimension_numbers = #tpu.dot_dimension_numbers<[1], [0], [0], [1], [0, 0, 1, 1], [], []>} : vector<8x8xbf16>, vector<8x512xbf16>, vector<8x512xf32> -> vector<8x512xf32>
    %55 = arith.truncf %46 : vector<8x128xf32> to vector<8x128xbf16>
    %cst_25 = arith.constant dense<0.000000e+00> : vector<8x512xf32>
    %56 = tpu.matmul %55, %4, %cst_25 {dimension_numbers = #tpu.dot_dimension_numbers<[1], [0], [0], [1], [0, 0, 1, 1], [], []>} : vector<8x128xbf16>, vector<128x512xbf16>, vector<8x512xf32> -> vector<8x512xf32>
    %57 = arith.addf %54, %56 : vector<8x512xf32>
    %58 = vector.broadcast %5 : vector<1x512xf32> to vector<8x512xf32>
    %59 = arith.addf %57, %58 : vector<8x512xf32>
    %60 = vector.extract_strided_slice %59 {offsets = [0, 0], sizes = [8, 128], strides = [1, 1]} : vector<8x512xf32> to vector<8x128xf32>
    %61 = arith.negf %60 : vector<8x128xf32>
    %62 = math.exp %61 : vector<8x128xf32>
    %cst_26 = arith.constant 1.000000e+00 : f32
    %63 = vector.broadcast %cst_26 : f32 to vector<8x128xf32>
    %64 = arith.addf %63, %62 : vector<8x128xf32>
    %65 = arith.divf %63, %64 : vector<8x128xf32>
    %66 = vector.extract_strided_slice %59 {offsets = [0, 128], sizes = [8, 128], strides = [1, 1]} : vector<8x512xf32> to vector<8x128xf32>
    %67 = arith.negf %66 : vector<8x128xf32>
    %68 = math.exp %67 : vector<8x128xf32>
    %cst_27 = arith.constant 1.000000e+00 : f32
    %69 = vector.broadcast %cst_27 : f32 to vector<8x128xf32>
    %70 = arith.addf %69, %68 : vector<8x128xf32>
    %71 = arith.divf %69, %70 : vector<8x128xf32>
    %72 = vector.extract_strided_slice %59 {offsets = [0, 256], sizes = [8, 128], strides = [1, 1]} : vector<8x512xf32> to vector<8x128xf32>
    %73 = math.tanh %72 : vector<8x128xf32>
    %74 = vector.extract_strided_slice %59 {offsets = [0, 384], sizes = [8, 128], strides = [1, 1]} : vector<8x512xf32> to vector<8x128xf32>
    %75 = arith.negf %74 : vector<8x128xf32>
    %76 = math.exp %75 : vector<8x128xf32>
    %cst_28 = arith.constant 1.000000e+00 : f32
    %77 = vector.broadcast %cst_28 : f32 to vector<8x128xf32>
    %78 = arith.addf %77, %76 : vector<8x128xf32>
    %79 = arith.divf %77, %78 : vector<8x128xf32>
    %80 = arith.mulf %71, %45 : vector<8x128xf32>
    %81 = arith.mulf %65, %73 : vector<8x128xf32>
    %82 = arith.addf %80, %81 : vector<8x128xf32>
    %83 = math.tanh %82 : vector<8x128xf32>
    %84 = arith.mulf %79, %83 : vector<8x128xf32>
    %c8_i32_29 = arith.constant 8 : i32
    %85 = arith.muli %arg1, %c8_i32_29 : i32
    %c1_i32 = arith.constant 1 : i32
    %86 = arith.addi %85, %c1_i32 : i32
    %c8_i32_30 = arith.constant 8 : i32
    %87 = arith.cmpi slt, %86, %c8_i32_30 : i32
    %88 = arith.select %87, %82, %45 : vector<8x128xf32>
    %89 = arith.select %87, %84, %46 : vector<8x128xf32>
    %90 = arith.truncf %89 : vector<8x128xf32> to vector<8x128xbf16>
    %c1_31 = arith.constant 1 : index
    %c0_32 = arith.constant 0 : index
    %c0_33 = arith.constant 0 : index
    %91 = vector.load %arg6[%c1_31, %c0_32, %c0_33] : memref<8x8x128xbf16, #tpu.memory_space<vmem>>, vector<1x8x128xbf16>
    %92 = vector.shape_cast %91 : vector<1x8x128xbf16> to vector<8x128xbf16>
    %93 = vector.shape_cast %90 : vector<8x128xbf16> to vector<1x8x128xbf16>
    tpu.vector_store %arg6[%c1_31, %c0_32, %c0_33], %93 {strides = array<i32>} : memref<8x8x128xbf16, #tpu.memory_space<vmem>>, vector<1x8x128xbf16>,
    %c0_34 = arith.constant 0 : index
    %c2 = arith.constant 2 : index
    %c0_35 = arith.constant 0 : index
    %94 = vector.load %arg2[%c0_34, %c2, %c0_35] : memref<8x8x8xf32, #tpu.memory_space<vmem>>, vector<8x1x8xf32>
    %95 = vector.shape_cast %94 : vector<8x1x8xf32> to vector<8x8xf32>
    %96 = arith.truncf %95 : vector<8x8xf32> to vector<8x8xbf16>
    %cst_36 = arith.constant dense<0.000000e+00> : vector<8x512xf32>
    %97 = tpu.matmul %96, %3, %cst_36 {dimension_numbers = #tpu.dot_dimension_numbers<[1], [0], [0], [1], [0, 0, 1, 1], [], []>} : vector<8x8xbf16>, vector<8x512xbf16>, vector<8x512xf32> -> vector<8x512xf32>
    %98 = arith.truncf %89 : vector<8x128xf32> to vector<8x128xbf16>
    %cst_37 = arith.constant dense<0.000000e+00> : vector<8x512xf32>
    %99 = tpu.matmul %98, %4, %cst_37 {dimension_numbers = #tpu.dot_dimension_numbers<[1], [0], [0], [1], [0, 0, 1, 1], [], []>} : vector<8x128xbf16>, vector<128x512xbf16>, vector<8x512xf32> -> vector<8x512xf32>
    %100 = arith.addf %97, %99 : vector<8x512xf32>
    %101 = vector.broadcast %5 : vector<1x512xf32> to vector<8x512xf32>
    %102 = arith.addf %100, %101 : vector<8x512xf32>
    %103 = vector.extract_strided_slice %102 {offsets = [0, 0], sizes = [8, 128], strides = [1, 1]} : vector<8x512xf32> to vector<8x128xf32>
    %104 = arith.negf %103 : vector<8x128xf32>
    %105 = math.exp %104 : vector<8x128xf32>
    %cst_38 = arith.constant 1.000000e+00 : f32
    %106 = vector.broadcast %cst_38 : f32 to vector<8x128xf32>
    %107 = arith.addf %106, %105 : vector<8x128xf32>
    %108 = arith.divf %106, %107 : vector<8x128xf32>
    %109 = vector.extract_strided_slice %102 {offsets = [0, 128], sizes = [8, 128], strides = [1, 1]} : vector<8x512xf32> to vector<8x128xf32>
    %110 = arith.negf %109 : vector<8x128xf32>
    %111 = math.exp %110 : vector<8x128xf32>
    %cst_39 = arith.constant 1.000000e+00 : f32
    %112 = vector.broadcast %cst_39 : f32 to vector<8x128xf32>
    %113 = arith.addf %112, %111 : vector<8x128xf32>
    %114 = arith.divf %112, %113 : vector<8x128xf32>
    %115 = vector.extract_strided_slice %102 {offsets = [0, 256], sizes = [8, 128], strides = [1, 1]} : vector<8x512xf32> to vector<8x128xf32>
    %116 = math.tanh %115 : vector<8x128xf32>
    %117 = vector.extract_strided_slice %102 {offsets = [0, 384], sizes = [8, 128], strides = [1, 1]} : vector<8x512xf32> to vector<8x128xf32>
    %118 = arith.negf %117 : vector<8x128xf32>
    %119 = math.exp %118 : vector<8x128xf32>
    %cst_40 = arith.constant 1.000000e+00 : f32
    %120 = vector.broadcast %cst_40 : f32 to vector<8x128xf32>
    %121 = arith.addf %120, %119 : vector<8x128xf32>
    %122 = arith.divf %120, %121 : vector<8x128xf32>
    %123 = arith.mulf %114, %88 : vector<8x128xf32>
    %124 = arith.mulf %108, %116 : vector<8x128xf32>
    %125 = arith.addf %123, %124 : vector<8x128xf32>
    %126 = math.tanh %125 : vector<8x128xf32>
    %127 = arith.mulf %122, %126 : vector<8x128xf32>
    %c8_i32_41 = arith.constant 8 : i32
    %128 = arith.muli %arg1, %c8_i32_41 : i32
    %c2_i32 = arith.constant 2 : i32
    %129 = arith.addi %128, %c2_i32 : i32
    %c8_i32_42 = arith.constant 8 : i32
    %130 = arith.cmpi slt, %129, %c8_i32_42 : i32
    %131 = arith.select %130, %125, %88 : vector<8x128xf32>
    %132 = arith.select %130, %127, %89 : vector<8x128xf32>
    %133 = arith.truncf %132 : vector<8x128xf32> to vector<8x128xbf16>
    %c2_43 = arith.constant 2 : index
    %c0_44 = arith.constant 0 : index
    %c0_45 = arith.constant 0 : index
    %134 = vector.load %arg6[%c2_43, %c0_44, %c0_45] : memref<8x8x128xbf16, #tpu.memory_space<vmem>>, vector<1x8x128xbf16>
    %135 = vector.shape_cast %134 : vector<1x8x128xbf16> to vector<8x128xbf16>
    %136 = vector.shape_cast %133 : vector<8x128xbf16> to vector<1x8x128xbf16>
    tpu.vector_store %arg6[%c2_43, %c0_44, %c0_45], %136 {strides = array<i32>} : memref<8x8x128xbf16, #tpu.memory_space<vmem>>, vector<1x8x128xbf16>,
    %c0_46 = arith.constant 0 : index
    %c3 = arith.constant 3 : index
    %c0_47 = arith.constant 0 : index
    %137 = vector.load %arg2[%c0_46, %c3, %c0_47] : memref<8x8x8xf32, #tpu.memory_space<vmem>>, vector<8x1x8xf32>
    %138 = vector.shape_cast %137 : vector<8x1x8xf32> to vector<8x8xf32>
    %139 = arith.truncf %138 : vector<8x8xf32> to vector<8x8xbf16>
    %cst_48 = arith.constant dense<0.000000e+00> : vector<8x512xf32>
    %140 = tpu.matmul %139, %3, %cst_48 {dimension_numbers = #tpu.dot_dimension_numbers<[1], [0], [0], [1], [0, 0, 1, 1], [], []>} : vector<8x8xbf16>, vector<8x512xbf16>, vector<8x512xf32> -> vector<8x512xf32>
    %141 = arith.truncf %132 : vector<8x128xf32> to vector<8x128xbf16>
    %cst_49 = arith.constant dense<0.000000e+00> : vector<8x512xf32>
    %142 = tpu.matmul %141, %4, %cst_49 {dimension_numbers = #tpu.dot_dimension_numbers<[1], [0], [0], [1], [0, 0, 1, 1], [], []>} : vector<8x128xbf16>, vector<128x512xbf16>, vector<8x512xf32> -> vector<8x512xf32>
    %143 = arith.addf %140, %142 : vector<8x512xf32>
    %144 = vector.broadcast %5 : vector<1x512xf32> to vector<8x512xf32>
    %145 = arith.addf %143, %144 : vector<8x512xf32>
    %146 = vector.extract_strided_slice %145 {offsets = [0, 0], sizes = [8, 128], strides = [1, 1]} : vector<8x512xf32> to vector<8x128xf32>
    %147 = arith.negf %146 : vector<8x128xf32>
    %148 = math.exp %147 : vector<8x128xf32>
    %cst_50 = arith.constant 1.000000e+00 : f32
    %149 = vector.broadcast %cst_50 : f32 to vector<8x128xf32>
    %150 = arith.addf %149, %148 : vector<8x128xf32>
    %151 = arith.divf %149, %150 : vector<8x128xf32>
    %152 = vector.extract_strided_slice %145 {offsets = [0, 128], sizes = [8, 128], strides = [1, 1]} : vector<8x512xf32> to vector<8x128xf32>
    %153 = arith.negf %152 : vector<8x128xf32>
    %154 = math.exp %153 : vector<8x128xf32>
    %cst_51 = arith.constant 1.000000e+00 : f32
    %155 = vector.broadcast %cst_51 : f32 to vector<8x128xf32>
    %156 = arith.addf %155, %154 : vector<8x128xf32>
    %157 = arith.divf %155, %156 : vector<8x128xf32>
    %158 = vector.extract_strided_slice %145 {offsets = [0, 256], sizes = [8, 128], strides = [1, 1]} : vector<8x512xf32> to vector<8x128xf32>
    %159 = math.tanh %158 : vector<8x128xf32>
    %160 = vector.extract_strided_slice %145 {offsets = [0, 384], sizes = [8, 128], strides = [1, 1]} : vector<8x512xf32> to vector<8x128xf32>
    %161 = arith.negf %160 : vector<8x128xf32>
    %162 = math.exp %161 : vector<8x128xf32>
    %cst_52 = arith.constant 1.000000e+00 : f32
    %163 = vector.broadcast %cst_52 : f32 to vector<8x128xf32>
    %164 = arith.addf %163, %162 : vector<8x128xf32>
    %165 = arith.divf %163, %164 : vector<8x128xf32>
    %166 = arith.mulf %157, %131 : vector<8x128xf32>
    %167 = arith.mulf %151, %159 : vector<8x128xf32>
    %168 = arith.addf %166, %167 : vector<8x128xf32>
    %169 = math.tanh %168 : vector<8x128xf32>
    %170 = arith.mulf %165, %169 : vector<8x128xf32>
    %c8_i32_53 = arith.constant 8 : i32
    %171 = arith.muli %arg1, %c8_i32_53 : i32
    %c3_i32 = arith.constant 3 : i32
    %172 = arith.addi %171, %c3_i32 : i32
    %c8_i32_54 = arith.constant 8 : i32
    %173 = arith.cmpi slt, %172, %c8_i32_54 : i32
    %174 = arith.select %173, %168, %131 : vector<8x128xf32>
    %175 = arith.select %173, %170, %132 : vector<8x128xf32>
    %176 = arith.truncf %175 : vector<8x128xf32> to vector<8x128xbf16>
    %c3_55 = arith.constant 3 : index
    %c0_56 = arith.constant 0 : index
    %c0_57 = arith.constant 0 : index
    %177 = vector.load %arg6[%c3_55, %c0_56, %c0_57] : memref<8x8x128xbf16, #tpu.memory_space<vmem>>, vector<1x8x128xbf16>
    %178 = vector.shape_cast %177 : vector<1x8x128xbf16> to vector<8x128xbf16>
    %179 = vector.shape_cast %176 : vector<8x128xbf16> to vector<1x8x128xbf16>
    tpu.vector_store %arg6[%c3_55, %c0_56, %c0_57], %179 {strides = array<i32>} : memref<8x8x128xbf16, #tpu.memory_space<vmem>>, vector<1x8x128xbf16>,
    %c0_58 = arith.constant 0 : index
    %c4 = arith.constant 4 : index
    %c0_59 = arith.constant 0 : index
    %180 = vector.load %arg2[%c0_58, %c4, %c0_59] : memref<8x8x8xf32, #tpu.memory_space<vmem>>, vector<8x1x8xf32>
    %181 = vector.shape_cast %180 : vector<8x1x8xf32> to vector<8x8xf32>
    %182 = arith.truncf %181 : vector<8x8xf32> to vector<8x8xbf16>
    %cst_60 = arith.constant dense<0.000000e+00> : vector<8x512xf32>
    %183 = tpu.matmul %182, %3, %cst_60 {dimension_numbers = #tpu.dot_dimension_numbers<[1], [0], [0], [1], [0, 0, 1, 1], [], []>} : vector<8x8xbf16>, vector<8x512xbf16>, vector<8x512xf32> -> vector<8x512xf32>
    %184 = arith.truncf %175 : vector<8x128xf32> to vector<8x128xbf16>
    %cst_61 = arith.constant dense<0.000000e+00> : vector<8x512xf32>
    %185 = tpu.matmul %184, %4, %cst_61 {dimension_numbers = #tpu.dot_dimension_numbers<[1], [0], [0], [1], [0, 0, 1, 1], [], []>} : vector<8x128xbf16>, vector<128x512xbf16>, vector<8x512xf32> -> vector<8x512xf32>
    %186 = arith.addf %183, %185 : vector<8x512xf32>
    %187 = vector.broadcast %5 : vector<1x512xf32> to vector<8x512xf32>
    %188 = arith.addf %186, %187 : vector<8x512xf32>
    %189 = vector.extract_strided_slice %188 {offsets = [0, 0], sizes = [8, 128], strides = [1, 1]} : vector<8x512xf32> to vector<8x128xf32>
    %190 = arith.negf %189 : vector<8x128xf32>
    %191 = math.exp %190 : vector<8x128xf32>
    %cst_62 = arith.constant 1.000000e+00 : f32
    %192 = vector.broadcast %cst_62 : f32 to vector<8x128xf32>
    %193 = arith.addf %192, %191 : vector<8x128xf32>
    %194 = arith.divf %192, %193 : vector<8x128xf32>
    %195 = vector.extract_strided_slice %188 {offsets = [0, 128], sizes = [8, 128], strides = [1, 1]} : vector<8x512xf32> to vector<8x128xf32>
    %196 = arith.negf %195 : vector<8x128xf32>
    %197 = math.exp %196 : vector<8x128xf32>
    %cst_63 = arith.constant 1.000000e+00 : f32
    %198 = vector.broadcast %cst_63 : f32 to vector<8x128xf32>
    %199 = arith.addf %198, %197 : vector<8x128xf32>
    %200 = arith.divf %198, %199 : vector<8x128xf32>
    %201 = vector.extract_strided_slice %188 {offsets = [0, 256], sizes = [8, 128], strides = [1, 1]} : vector<8x512xf32> to vector<8x128xf32>
    %202 = math.tanh %201 : vector<8x128xf32>
    %203 = vector.extract_strided_slice %188 {offsets = [0, 384], sizes = [8, 128], strides = [1, 1]} : vector<8x512xf32> to vector<8x128xf32>
    %204 = arith.negf %203 : vector<8x128xf32>
    %205 = math.exp %204 : vector<8x128xf32>
    %cst_64 = arith.constant 1.000000e+00 : f32
    %206 = vector.broadcast %cst_64 : f32 to vector<8x128xf32>
    %207 = arith.addf %206, %205 : vector<8x128xf32>
    %208 = arith.divf %206, %207 : vector<8x128xf32>
    %209 = arith.mulf %200, %174 : vector<8x128xf32>
    %210 = arith.mulf %194, %202 : vector<8x128xf32>
    %211 = arith.addf %209, %210 : vector<8x128xf32>
    %212 = math.tanh %211 : vector<8x128xf32>
    %213 = arith.mulf %208, %212 : vector<8x128xf32>
    %c8_i32_65 = arith.constant 8 : i32
    %214 = arith.muli %arg1, %c8_i32_65 : i32
    %c4_i32 = arith.constant 4 : i32
    %215 = arith.addi %214, %c4_i32 : i32
    %c8_i32_66 = arith.constant 8 : i32
    %216 = arith.cmpi slt, %215, %c8_i32_66 : i32
    %217 = arith.select %216, %211, %174 : vector<8x128xf32>
    %218 = arith.select %216, %213, %175 : vector<8x128xf32>
    %219 = arith.truncf %218 : vector<8x128xf32> to vector<8x128xbf16>
    %c4_67 = arith.constant 4 : index
    %c0_68 = arith.constant 0 : index
    %c0_69 = arith.constant 0 : index
    %220 = vector.load %arg6[%c4_67, %c0_68, %c0_69] : memref<8x8x128xbf16, #tpu.memory_space<vmem>>, vector<1x8x128xbf16>
    %221 = vector.shape_cast %220 : vector<1x8x128xbf16> to vector<8x128xbf16>
    %222 = vector.shape_cast %219 : vector<8x128xbf16> to vector<1x8x128xbf16>
    tpu.vector_store %arg6[%c4_67, %c0_68, %c0_69], %222 {strides = array<i32>} : memref<8x8x128xbf16, #tpu.memory_space<vmem>>, vector<1x8x128xbf16>,
    %c0_70 = arith.constant 0 : index
    %c5 = arith.constant 5 : index
    %c0_71 = arith.constant 0 : index
    %223 = vector.load %arg2[%c0_70, %c5, %c0_71] : memref<8x8x8xf32, #tpu.memory_space<vmem>>, vector<8x1x8xf32>
    %224 = vector.shape_cast %223 : vector<8x1x8xf32> to vector<8x8xf32>
    %225 = arith.truncf %224 : vector<8x8xf32> to vector<8x8xbf16>
    %cst_72 = arith.constant dense<0.000000e+00> : vector<8x512xf32>
    %226 = tpu.matmul %225, %3, %cst_72 {dimension_numbers = #tpu.dot_dimension_numbers<[1], [0], [0], [1], [0, 0, 1, 1], [], []>} : vector<8x8xbf16>, vector<8x512xbf16>, vector<8x512xf32> -> vector<8x512xf32>
    %227 = arith.truncf %218 : vector<8x128xf32> to vector<8x128xbf16>
    %cst_73 = arith.constant dense<0.000000e+00> : vector<8x512xf32>
    %228 = tpu.matmul %227, %4, %cst_73 {dimension_numbers = #tpu.dot_dimension_numbers<[1], [0], [0], [1], [0, 0, 1, 1], [], []>} : vector<8x128xbf16>, vector<128x512xbf16>, vector<8x512xf32> -> vector<8x512xf32>
    %229 = arith.addf %226, %228 : vector<8x512xf32>
    %230 = vector.broadcast %5 : vector<1x512xf32> to vector<8x512xf32>
    %231 = arith.addf %229, %230 : vector<8x512xf32>
    %232 = vector.extract_strided_slice %231 {offsets = [0, 0], sizes = [8, 128], strides = [1, 1]} : vector<8x512xf32> to vector<8x128xf32>
    %233 = arith.negf %232 : vector<8x128xf32>
    %234 = math.exp %233 : vector<8x128xf32>
    %cst_74 = arith.constant 1.000000e+00 : f32
    %235 = vector.broadcast %cst_74 : f32 to vector<8x128xf32>
    %236 = arith.addf %235, %234 : vector<8x128xf32>
    %237 = arith.divf %235, %236 : vector<8x128xf32>
    %238 = vector.extract_strided_slice %231 {offsets = [0, 128], sizes = [8, 128], strides = [1, 1]} : vector<8x512xf32> to vector<8x128xf32>
    %239 = arith.negf %238 : vector<8x128xf32>
    %240 = math.exp %239 : vector<8x128xf32>
    %cst_75 = arith.constant 1.000000e+00 : f32
    %241 = vector.broadcast %cst_75 : f32 to vector<8x128xf32>
    %242 = arith.addf %241, %240 : vector<8x128xf32>
    %243 = arith.divf %241, %242 : vector<8x128xf32>
    %244 = vector.extract_strided_slice %231 {offsets = [0, 256], sizes = [8, 128], strides = [1, 1]} : vector<8x512xf32> to vector<8x128xf32>
    %245 = math.tanh %244 : vector<8x128xf32>
    %246 = vector.extract_strided_slice %231 {offsets = [0, 384], sizes = [8, 128], strides = [1, 1]} : vector<8x512xf32> to vector<8x128xf32>
    %247 = arith.negf %246 : vector<8x128xf32>
    %248 = math.exp %247 : vector<8x128xf32>
    %cst_76 = arith.constant 1.000000e+00 : f32
    %249 = vector.broadcast %cst_76 : f32 to vector<8x128xf32>
    %250 = arith.addf %249, %248 : vector<8x128xf32>
    %251 = arith.divf %249, %250 : vector<8x128xf32>
    %252 = arith.mulf %243, %217 : vector<8x128xf32>
    %253 = arith.mulf %237, %245 : vector<8x128xf32>
    %254 = arith.addf %252, %253 : vector<8x128xf32>
    %255 = math.tanh %254 : vector<8x128xf32>
    %256 = arith.mulf %251, %255 : vector<8x128xf32>
    %c8_i32_77 = arith.constant 8 : i32
    %257 = arith.muli %arg1, %c8_i32_77 : i32
    %c5_i32 = arith.constant 5 : i32
    %258 = arith.addi %257, %c5_i32 : i32
    %c8_i32_78 = arith.constant 8 : i32
    %259 = arith.cmpi slt, %258, %c8_i32_78 : i32
    %260 = arith.select %259, %254, %217 : vector<8x128xf32>
    %261 = arith.select %259, %256, %218 : vector<8x128xf32>
    %262 = arith.truncf %261 : vector<8x128xf32> to vector<8x128xbf16>
    %c5_79 = arith.constant 5 : index
    %c0_80 = arith.constant 0 : index
    %c0_81 = arith.constant 0 : index
    %263 = vector.load %arg6[%c5_79, %c0_80, %c0_81] : memref<8x8x128xbf16, #tpu.memory_space<vmem>>, vector<1x8x128xbf16>
    %264 = vector.shape_cast %263 : vector<1x8x128xbf16> to vector<8x128xbf16>
    %265 = vector.shape_cast %262 : vector<8x128xbf16> to vector<1x8x128xbf16>
    tpu.vector_store %arg6[%c5_79, %c0_80, %c0_81], %265 {strides = array<i32>} : memref<8x8x128xbf16, #tpu.memory_space<vmem>>, vector<1x8x128xbf16>,
    %c0_82 = arith.constant 0 : index
    %c6 = arith.constant 6 : index
    %c0_83 = arith.constant 0 : index
    %266 = vector.load %arg2[%c0_82, %c6, %c0_83] : memref<8x8x8xf32, #tpu.memory_space<vmem>>, vector<8x1x8xf32>
    %267 = vector.shape_cast %266 : vector<8x1x8xf32> to vector<8x8xf32>
    %268 = arith.truncf %267 : vector<8x8xf32> to vector<8x8xbf16>
    %cst_84 = arith.constant dense<0.000000e+00> : vector<8x512xf32>
    %269 = tpu.matmul %268, %3, %cst_84 {dimension_numbers = #tpu.dot_dimension_numbers<[1], [0], [0], [1], [0, 0, 1, 1], [], []>} : vector<8x8xbf16>, vector<8x512xbf16>, vector<8x512xf32> -> vector<8x512xf32>
    %270 = arith.truncf %261 : vector<8x128xf32> to vector<8x128xbf16>
    %cst_85 = arith.constant dense<0.000000e+00> : vector<8x512xf32>
    %271 = tpu.matmul %270, %4, %cst_85 {dimension_numbers = #tpu.dot_dimension_numbers<[1], [0], [0], [1], [0, 0, 1, 1], [], []>} : vector<8x128xbf16>, vector<128x512xbf16>, vector<8x512xf32> -> vector<8x512xf32>
    %272 = arith.addf %269, %271 : vector<8x512xf32>
    %273 = vector.broadcast %5 : vector<1x512xf32> to vector<8x512xf32>
    %274 = arith.addf %272, %273 : vector<8x512xf32>
    %275 = vector.extract_strided_slice %274 {offsets = [0, 0], sizes = [8, 128], strides = [1, 1]} : vector<8x512xf32> to vector<8x128xf32>
    %276 = arith.negf %275 : vector<8x128xf32>
    %277 = math.exp %276 : vector<8x128xf32>
    %cst_86 = arith.constant 1.000000e+00 : f32
    %278 = vector.broadcast %cst_86 : f32 to vector<8x128xf32>
    %279 = arith.addf %278, %277 : vector<8x128xf32>
    %280 = arith.divf %278, %279 : vector<8x128xf32>
    %281 = vector.extract_strided_slice %274 {offsets = [0, 128], sizes = [8, 128], strides = [1, 1]} : vector<8x512xf32> to vector<8x128xf32>
    %282 = arith.negf %281 : vector<8x128xf32>
    %283 = math.exp %282 : vector<8x128xf32>
    %cst_87 = arith.constant 1.000000e+00 : f32
    %284 = vector.broadcast %cst_87 : f32 to vector<8x128xf32>
    %285 = arith.addf %284, %283 : vector<8x128xf32>
    %286 = arith.divf %284, %285 : vector<8x128xf32>
    %287 = vector.extract_strided_slice %274 {offsets = [0, 256], sizes = [8, 128], strides = [1, 1]} : vector<8x512xf32> to vector<8x128xf32>
    %288 = math.tanh %287 : vector<8x128xf32>
    %289 = vector.extract_strided_slice %274 {offsets = [0, 384], sizes = [8, 128], strides = [1, 1]} : vector<8x512xf32> to vector<8x128xf32>
    %290 = arith.negf %289 : vector<8x128xf32>
    %291 = math.exp %290 : vector<8x128xf32>
    %cst_88 = arith.constant 1.000000e+00 : f32
    %292 = vector.broadcast %cst_88 : f32 to vector<8x128xf32>
    %293 = arith.addf %292, %291 : vector<8x128xf32>
    %294 = arith.divf %292, %293 : vector<8x128xf32>
    %295 = arith.mulf %286, %260 : vector<8x128xf32>
    %296 = arith.mulf %280, %288 : vector<8x128xf32>
    %297 = arith.addf %295, %296 : vector<8x128xf32>
    %298 = math.tanh %297 : vector<8x128xf32>
    %299 = arith.mulf %294, %298 : vector<8x128xf32>
    %c8_i32_89 = arith.constant 8 : i32
    %300 = arith.muli %arg1, %c8_i32_89 : i32
    %c6_i32 = arith.constant 6 : i32
    %301 = arith.addi %300, %c6_i32 : i32
    %c8_i32_90 = arith.constant 8 : i32
    %302 = arith.cmpi slt, %301, %c8_i32_90 : i32
    %303 = arith.select %302, %297, %260 : vector<8x128xf32>
    %304 = arith.select %302, %299, %261 : vector<8x128xf32>
    %305 = arith.truncf %304 : vector<8x128xf32> to vector<8x128xbf16>
    %c6_91 = arith.constant 6 : index
    %c0_92 = arith.constant 0 : index
    %c0_93 = arith.constant 0 : index
    %306 = vector.load %arg6[%c6_91, %c0_92, %c0_93] : memref<8x8x128xbf16, #tpu.memory_space<vmem>>, vector<1x8x128xbf16>
    %307 = vector.shape_cast %306 : vector<1x8x128xbf16> to vector<8x128xbf16>
    %308 = vector.shape_cast %305 : vector<8x128xbf16> to vector<1x8x128xbf16>
    tpu.vector_store %arg6[%c6_91, %c0_92, %c0_93], %308 {strides = array<i32>} : memref<8x8x128xbf16, #tpu.memory_space<vmem>>, vector<1x8x128xbf16>,
    %c0_94 = arith.constant 0 : index
    %c7 = arith.constant 7 : index
    %c0_95 = arith.constant 0 : index
    %309 = vector.load %arg2[%c0_94, %c7, %c0_95] : memref<8x8x8xf32, #tpu.memory_space<vmem>>, vector<8x1x8xf32>
    %310 = vector.shape_cast %309 : vector<8x1x8xf32> to vector<8x8xf32>
    %311 = arith.truncf %310 : vector<8x8xf32> to vector<8x8xbf16>
    %cst_96 = arith.constant dense<0.000000e+00> : vector<8x512xf32>
    %312 = tpu.matmul %311, %3, %cst_96 {dimension_numbers = #tpu.dot_dimension_numbers<[1], [0], [0], [1], [0, 0, 1, 1], [], []>} : vector<8x8xbf16>, vector<8x512xbf16>, vector<8x512xf32> -> vector<8x512xf32>
    %313 = arith.truncf %304 : vector<8x128xf32> to vector<8x128xbf16>
    %cst_97 = arith.constant dense<0.000000e+00> : vector<8x512xf32>
    %314 = tpu.matmul %313, %4, %cst_97 {dimension_numbers = #tpu.dot_dimension_numbers<[1], [0], [0], [1], [0, 0, 1, 1], [], []>} : vector<8x128xbf16>, vector<128x512xbf16>, vector<8x512xf32> -> vector<8x512xf32>
    %315 = arith.addf %312, %314 : vector<8x512xf32>
    %316 = vector.broadcast %5 : vector<1x512xf32> to vector<8x512xf32>
    %317 = arith.addf %315, %316 : vector<8x512xf32>
    %318 = vector.extract_strided_slice %317 {offsets = [0, 0], sizes = [8, 128], strides = [1, 1]} : vector<8x512xf32> to vector<8x128xf32>
    %319 = arith.negf %318 : vector<8x128xf32>
    %320 = math.exp %319 : vector<8x128xf32>
    %cst_98 = arith.constant 1.000000e+00 : f32
    %321 = vector.broadcast %cst_98 : f32 to vector<8x128xf32>
    %322 = arith.addf %321, %320 : vector<8x128xf32>
    %323 = arith.divf %321, %322 : vector<8x128xf32>
    %324 = vector.extract_strided_slice %317 {offsets = [0, 128], sizes = [8, 128], strides = [1, 1]} : vector<8x512xf32> to vector<8x128xf32>
    %325 = arith.negf %324 : vector<8x128xf32>
    %326 = math.exp %325 : vector<8x128xf32>
    %cst_99 = arith.constant 1.000000e+00 : f32
    %327 = vector.broadcast %cst_99 : f32 to vector<8x128xf32>
    %328 = arith.addf %327, %326 : vector<8x128xf32>
    %329 = arith.divf %327, %328 : vector<8x128xf32>
    %330 = vector.extract_strided_slice %317 {offsets = [0, 256], sizes = [8, 128], strides = [1, 1]} : vector<8x512xf32> to vector<8x128xf32>
    %331 = math.tanh %330 : vector<8x128xf32>
    %332 = vector.extract_strided_slice %317 {offsets = [0, 384], sizes = [8, 128], strides = [1, 1]} : vector<8x512xf32> to vector<8x128xf32>
    %333 = arith.negf %332 : vector<8x128xf32>
    %334 = math.exp %333 : vector<8x128xf32>
    %cst_100 = arith.constant 1.000000e+00 : f32
    %335 = vector.broadcast %cst_100 : f32 to vector<8x128xf32>
    %336 = arith.addf %335, %334 : vector<8x128xf32>
    %337 = arith.divf %335, %336 : vector<8x128xf32>
    %338 = arith.mulf %329, %303 : vector<8x128xf32>
    %339 = arith.mulf %323, %331 : vector<8x128xf32>
    %340 = arith.addf %338, %339 : vector<8x128xf32>
    %341 = math.tanh %340 : vector<8x128xf32>
    %342 = arith.mulf %337, %341 : vector<8x128xf32>
    %c8_i32_101 = arith.constant 8 : i32
    %343 = arith.muli %arg1, %c8_i32_101 : i32
    %c7_i32 = arith.constant 7 : i32
    %344 = arith.addi %343, %c7_i32 : i32
    %c8_i32_102 = arith.constant 8 : i32
    %345 = arith.cmpi slt, %344, %c8_i32_102 : i32
    %346 = arith.select %345, %340, %303 : vector<8x128xf32>
    %347 = arith.select %345, %342, %304 : vector<8x128xf32>
    %348 = arith.truncf %347 : vector<8x128xf32> to vector<8x128xbf16>
    %c7_103 = arith.constant 7 : index
    %c0_104 = arith.constant 0 : index
    %c0_105 = arith.constant 0 : index
    %349 = vector.load %arg6[%c7_103, %c0_104, %c0_105] : memref<8x8x128xbf16, #tpu.memory_space<vmem>>, vector<1x8x128xbf16>
    %350 = vector.shape_cast %349 : vector<1x8x128xbf16> to vector<8x128xbf16>
    %351 = vector.shape_cast %348 : vector<8x128xbf16> to vector<1x8x128xbf16>
    tpu.vector_store %arg6[%c7_103, %c0_104, %c0_105], %351 {strides = array<i32>} : memref<8x8x128xbf16, #tpu.memory_space<vmem>>, vector<1x8x128xbf16>,
    %c0_106 = arith.constant 0 : index
    %c0_107 = arith.constant 0 : index
    %352 = vector.load %arg7[%c0_106, %c0_107] : memref<8x128xf32, #tpu.memory_space<vmem>>, vector<8x128xf32>
    tpu.vector_store %arg7[%c0_106, %c0_107], %347 {strides = array<i32>} : memref<8x128xf32, #tpu.memory_space<vmem>>, vector<8x128xf32>,
    %c0_108 = arith.constant 0 : index
    %c0_109 = arith.constant 0 : index
    %353 = vector.load %arg8[%c0_108, %c0_109] : memref<8x128xf32, #tpu.memory_space<vmem>>, vector<8x128xf32>
    tpu.vector_store %arg8[%c0_108, %c0_109], %346 {strides = array<i32>} : memref<8x128xf32, #tpu.memory_space<vmem>>, vector<8x128xf32>,
    return
  }
  func.func @transform_0(%arg0: i32, %arg1: i32) -> (i32, i32, i32) {
    %c0_i32 = arith.constant 0 : i32
    %c0_i32_0 = arith.constant 0 : i32
    return %arg0, %arg1, %c0_i32 : i32, i32, i32
  }
  func.func @transform_1(%arg0: i32, %arg1: i32) -> (i32, i32) {
    %c0_i32 = arith.constant 0 : i32
    %c0_i32_0 = arith.constant 0 : i32
    %c0_i32_1 = arith.constant 0 : i32
    return %c0_i32, %c0_i32_0 : i32, i32
  }
  func.func @transform_2(%arg0: i32, %arg1: i32) -> (i32, i32) {
    %c0_i32 = arith.constant 0 : i32
    %c0_i32_0 = arith.constant 0 : i32
    %c0_i32_1 = arith.constant 0 : i32
    return %c0_i32, %c0_i32_0 : i32, i32
  }
  func.func @transform_3(%arg0: i32, %arg1: i32) -> (i32, i32) {
    %c0_i32 = arith.constant 0 : i32
    %c0_i32_0 = arith.constant 0 : i32
    %c0_i32_1 = arith.constant 0 : i32
    return %c0_i32, %c0_i32_0 : i32, i32
  }
  func.func @transform_4(%arg0: i32, %arg1: i32) -> (i32, i32, i32) {
    %c0_i32 = arith.constant 0 : i32
    %c0_i32_0 = arith.constant 0 : i32
    return %arg1, %arg0, %c0_i32 : i32, i32, i32
  }
}

</mosaic_0001>

<llo_original>
// kernel: tpu_custom_call.1
$region0: #{tpu_custom_call.1}
  #allocation0 [shape = 'u32[]', space=smem, size = 0x4, offset = 0x4, fixed_abs, tag = 'smem constant byte address 0x4 - core index']
  #allocation1 [shape = 'u32[144,128]{1,0:T(1,128)}', space=vmem, size = 0x12000, scoped, tag = 'internal scratch']
  %s0 = inlined_call_operand.hbm [shape: f32[16,128], index: 0, kind: input, shape index: {}]
  %s1 = inlined_call_operand.hbm [shape: f32[8,128], index: 1, kind: input, shape index: {}]
  %s2 = inlined_call_operand.hbm [shape: f32[16,128], index: 2, kind: output, shape index: {}]
  %s3 = sld [smem:[#allocation0]]
  $region49: #{tpu_custom_call.1} parent=0
    _
  %s5 = ssub.s32 1, %s3
  %s6 = scalar_select 0, %s5, %s3
  $region1: #{tpu_custom_call.1} parent=0
    #allocation2 [shape = 'u8[8192]{0}', space=vmem, size = 0x2000, scoped, tag = 'input window, operand 0']
    #allocation3 [shape = 's32[2]{0}', space=sflag, size = 0x8, scoped, tag = 'scoped memory for tpu_custom_call.1']
    #allocation4 [shape = 's32[2]{0}', space=sflag, size = 0x8, scoped, tag = 'scoped memory for tpu_custom_call.1']
    #allocation5 [shape = 'u8[4096]{0}', space=vmem, size = 0x1000, scoped, tag = 'input window, operand 1, single buffered']
    #allocation6 [shape = 's32[1]{0}', space=sflag, size = 0x4, scoped, tag = 'scoped memory for tpu_custom_call.1']
    #allocation7 [shape = 'u8[8192]{0}', space=vmem, size = 0x2000, scoped, tag = 'output window, operand 0']
    %7 = vsyncpa [#allocation3], 0
    %s8 = scalar_lea.sflag [#allocation3], 1
    %9 = vsyncpa %s8, 0
    %10 = vsyncpa [#allocation6], 0
    %11 = vsyncpa [#allocation4], 0
    %s12 = scalar_lea.sflag [#allocation4], 1
    %13 = vsyncpa %s12, 0
    loop: start=0, step=1, limit=4
    $region2: #{tpu_custom_call.1} parent=1 // loop_pre_header
      _
    $region3: #{tpu_custom_call.1} parent=1 // loop_header
      %s15 = sphi 0, %s19
      %p16 = scmp.ge.s32.totalorder %s15, 4
      %s25 = sphi 0, %s27
      %s28 = sphi 0, %s25
      %s29 = sphi 0, %s28
      %s45 = sphi 0, %s29
      %s49 = sphi 0, %s49
      %s51 = sphi 0, %s49
      %s52 = sphi 0, %s51
      %s66 = sphi 0, %s52
      %s72 = sphi 0, %s74
      %s75 = sphi 0, %s72
      %s76 = sphi 0, %s75
      %s92 = sphi 0, %s76
    $region4: #{tpu_custom_call.1} parent=1 // loop_header_branch
      %18 = sbr.rel (%p16) target = $region8
    $region5: #{tpu_custom_call.1} parent=1 // loop_body
      %s20 = ssub.s32 %s15, 1
      %s21 = ssub.s32 %s15, 2
      %s22 = sadd.s32 %s15, 1
      %s23 = ssub.s32 %s15, %s22
      %p24 = scmp.eq.s32.totalorder %s23, 0
      %s26 = sadd.s32 %s25, 1
      %s27 = scalar_select %p24, %s25, %s26
      %p30 = pneg %p24
      %p31 = scmp.eq.s32.totalorder %s15, 1
      %p32 = por %p30, %p31
      %p33 = scmp.ne.s32.totalorder %s25, %s28
      %p34 = scmp.eq.s32.totalorder %s15, 0
      %p35 = por %p33, %p34
      %p36 = scmp.ne.s32.totalorder %s25, %s28
      %p37 = scmp.eq.s32.totalorder %s20, 1
      %p38 = por %p36, %p37
      %p39 = scmp.ne.s32.totalorder %s28, %s29
      %p40 = scmp.eq.s32.totalorder %s20, 0
      %p41 = por %p39, %p40
      %p42 = scmp.ne.s32.totalorder %s28, %s29
      %p43 = scmp.eq.s32.totalorder %s21, 1
      %p44 = por %p42, %p43
      %p46 = scmp.ne.s32.totalorder %s29, %s45
      %p47 = scmp.eq.s32.totalorder %s21, 0
      %p48 = por %p46, %p47
      %s50 = sadd.s32 %s49, 1
      %p53 = scmp.eq.s32.totalorder %s15, 1
      %p54 = scmp.ne.s32.totalorder %s49, %s51
      %p55 = scmp.eq.s32.totalorder %s15, 0
      %p56 = por %p54, %p55
      %p57 = scmp.ne.s32.totalorder %s49, %s51
      %p58 = scmp.eq.s32.totalorder %s20, 1
      %p59 = por %p57, %p58
      %p60 = scmp.ne.s32.totalorder %s51, %s52
      %p61 = scmp.eq.s32.totalorder %s20, 0
      %p62 = por %p60, %p61
      %p63 = scmp.ne.s32.totalorder %s51, %s52
      %p64 = scmp.eq.s32.totalorder %s21, 1
      %p65 = por %p63, %p64
      %p67 = scmp.ne.s32.totalorder %s52, %s66
      %p68 = scmp.eq.s32.totalorder %s21, 0
      %p69 = por %p67, %p68
      %s70 = ssub.s32 %s15, %s22
      %p71 = scmp.eq.s32.totalorder %s70, 0
      %s73 = sadd.s32 %s72, 1
      %s74 = scalar_select %p71, %s72, %s73
      %p77 = pneg %p71
      %p78 = scmp.eq.s32.totalorder %s15, 1
      %p79 = por %p77, %p78
      %p80 = scmp.ne.s32.totalorder %s72, %s75
      %p81 = scmp.eq.s32.totalorder %s15, 0
      %p82 = por %p80, %p81
      %p83 = scmp.ne.s32.totalorder %s72, %s75
      %p84 = scmp.eq.s32.totalorder %s20, 1
      %p85 = por %p83, %p84
      %p86 = scmp.ne.s32.totalorder %s75, %s76
      %p87 = scmp.eq.s32.totalorder %s20, 0
      %p88 = por %p86, %p87
      %p89 = scmp.ne.s32.totalorder %s75, %s76
      %p90 = scmp.eq.s32.totalorder %s21, 1
      %p91 = por %p89, %p90
      %p93 = scmp.ne.s32.totalorder %s76, %s92
      %p94 = scmp.eq.s32.totalorder %s21, 0
      %p95 = por %p93, %p94
      %p96 = scmp.le.s32.totalorder 1, %s15
      %p97 = scmp.lt.s32.totalorder %s15, 3
      %p98 = pnand %p96, %p97
      %p99 = pneg %p98
      // Predicated region
      $region9: #{tpu_custom_call.1} parent=5 // pred_check
        _
      $region10: #{tpu_custom_call.1} parent=5 // pred_check_branch
        %101 = sbr.rel (%p98) target = $region12
      $region11: #{tpu_custom_call.1} parent=5 // pred_region
        %s102 = ssub.s32 %s15, 1
        // Predicated region
        $region13: #{tpu_custom_call.1} parent=11 // pred_check
          %p103 = pneg %p62
        $region14: #{tpu_custom_call.1} parent=11 // pred_check_branch
          %105 = sbr.rel (%p103) target = $region16
        $region15: #{tpu_custom_call.1} parent=11 // pred_region
          %s107 = ssub.s32 128, 128
          %108 = vsyncadd [#allocation6], %s107
          %s110 = sshll.u32 [#allocation5], 4
          %s111 = int_to_ptr.vmem [resolvable:$true] %s110
          %113 = dma.hbm_to_vmem [thread:$0]  %s1, 128, %s111, [#allocation6]
        $region16: #{tpu_custom_call.1} parent=11 // pred_fallthru
          _
      $region12: #{tpu_custom_call.1} parent=5 // pred_fallthru
        _
      %p114 = scmp.lt.s32.totalorder %s15, 2
      // Predicated region
      $region17: #{tpu_custom_call.1} parent=5 // pred_check
        %p115 = pneg %p114
      $region18: #{tpu_custom_call.1} parent=5 // pred_check_branch
        %117 = sbr.rel (%p115) target = $region20
      $region19: #{tpu_custom_call.1} parent=5 // pred_region
        // Predicated region
        $region21: #{tpu_custom_call.1} parent=19 // pred_check
          %p118 = pneg %p35
        $region22: #{tpu_custom_call.1} parent=19 // pred_check_branch
          %120 = sbr.rel (%p118) target = $region24
        $region23: #{tpu_custom_call.1} parent=19 // pred_region
          %s121 = sand.u32 %s25, 1
          %s122 = scalar_lea.sflag [#allocation3], %s121
          %s123 = sand.u32 %s25, 1
          %s124 = smul.addr %s123, 8
          %s125 = scalar_lea.vmem [#allocation2], %s124
          %s127 = ssub.s32 128, 128
          %128 = vsyncadd %s122, %s127
          %s129 = smul.addr %s15, 128
          %s130 = scalar_lea.hbm %s0, %s129
          %s132 = sshll.u32 %s125, 4
          %s133 = int_to_ptr.vmem [resolvable:$true] %s132
          %135 = dma.hbm_to_vmem [thread:$0]  %s130, 128, %s133, %s122
        $region24: #{tpu_custom_call.1} parent=19 // pred_fallthru
          _
      $region20: #{tpu_custom_call.1} parent=5 // pred_fallthru
        _
      %p136 = scmp.le.s32.totalorder 1, %s15
      %p137 = scmp.lt.s32.totalorder %s15, 3
      %p138 = pnand %p136, %p137
      %p139 = pneg %p138
      // Predicated region
      $region25: #{tpu_custom_call.1} parent=5 // pred_check
        _
      $region26: #{tpu_custom_call.1} parent=5 // pred_check_branch
        %141 = sbr.rel (%p138) target = $region28
      $region27: #{tpu_custom_call.1} parent=5 // pred_region
        %s142 = ssub.s32 %s15, 1
        %s143 = sand.u32 %s28, 1
        %s144 = scalar_lea.sflag [#allocation3], %s143
        %s145 = sand.u32 %s28, 1
        %s146 = smul.addr %s145, 8
        %s147 = scalar_lea.vmem [#allocation2], %s146
        // Predicated region
        $region29: #{tpu_custom_call.1} parent=27 // pred_check
          %p148 = pneg %p41
        $region30: #{tpu_custom_call.1} parent=27 // pred_check_branch
          %150 = sbr.rel (%p148) target = $region32
        $region31: #{tpu_custom_call.1} parent=27 // pred_region
          %151 = dma.done %s144, 128
        $region32: #{tpu_custom_call.1} parent=27 // pred_fallthru
          _
        // Predicated region
        $region33: #{tpu_custom_call.1} parent=27 // pred_check
          %p152 = pneg %p62
        $region34: #{tpu_custom_call.1} parent=27 // pred_check_branch
          %154 = sbr.rel (%p152) target = $region36
        $region35: #{tpu_custom_call.1} parent=27 // pred_region
          %155 = dma.done [#allocation6], 128
        $region36: #{tpu_custom_call.1} parent=27 // pred_fallthru
          _
        %s156 = sand.u32 %s28, 1
        %s157 = scalar_lea.sflag [#allocation3], %s156
        %s158 = sand.u32 %s28, 1
        %s159 = smul.addr %s158, 8
        %s160 = scalar_lea.vmem [#allocation2], %s159
        %p161 = pneg %p41
        %p162 = pneg %p38
        %p163 = pneg %p62
        %p164 = pneg %p59
        %p165 = pneg %p88
        %p166 = pneg %p85
        %s167 = sand.u32 %s75, 1
        %s168 = scalar_lea.sflag [#allocation4], %s167
        %s169 = sand.u32 %s75, 1
        %s170 = smul.addr %s169, 8
        %s171 = scalar_lea.vmem [#allocation7], %s170
        %v172 = vld [vmem:[%s147] sm:$0xff]
        %v173 = vld [vmem:[#allocation5] sm:$0xff]
        %v174 = vadd.f32 %v172, %v173
        %175 = vst [vmem:[%s171] sm:$0xff] %v174
        %s176 = sand.u32 %s75, 1
        %s177 = scalar_lea.sflag [#allocation4], %s176
        %s178 = sand.u32 %s75, 1
        %s179 = smul.addr %s178, 8
        %s180 = scalar_lea.vmem [#allocation7], %s179
        // Predicated region
        $region37: #{tpu_custom_call.1} parent=27 // pred_check
          %p181 = pneg %p85
        $region38: #{tpu_custom_call.1} parent=27 // pred_check_branch
          %183 = sbr.rel (%p181) target = $region40
        $region39: #{tpu_custom_call.1} parent=27 // pred_region
          %s185 = ssub.s32 128, 128
          %186 = vsyncadd %s177, %s185
          %s187 = smul.addr %s20, 128
          %s188 = scalar_lea.hbm %s2, %s187
          %s190 = sshll.u32 %s180, 4
          %s191 = int_to_ptr.vmem [resolvable:$true] %s190
          %193 = dma.vmem_to_hbm [thread:$0]  %s191, 128, %s188, %s177
        $region40: #{tpu_custom_call.1} parent=27 // pred_fallthru
          _
      $region28: #{tpu_custom_call.1} parent=5 // pred_fallthru
        _
      %p194 = scmp.le.s32.totalorder 2, %s15
      // Predicated region
      $region41: #{tpu_custom_call.1} parent=5 // pred_check
        %p195 = pneg %p194
      $region42: #{tpu_custom_call.1} parent=5 // pred_check_branch
        %197 = sbr.rel (%p195) target = $region44
      $region43: #{tpu_custom_call.1} parent=5 // pred_region
        %s198 = ssub.s32 %s15, 2
        // Predicated region
        $region45: #{tpu_custom_call.1} parent=43 // pred_check
          %p199 = pneg %p91
        $region46: #{tpu_custom_call.1} parent=43 // pred_check_branch
          %201 = sbr.rel (%p199) target = $region48
        $region47: #{tpu_custom_call.1} parent=43 // pred_region
          %s202 = sand.u32 %s76, 1
          %s203 = scalar_lea.sflag [#allocation4], %s202
          %s204 = sand.u32 %s76, 1
          %s205 = smul.addr %s204, 8
          %s206 = scalar_lea.vmem [#allocation7], %s205
          %207 = dma.done %s203, 128
        $region48: #{tpu_custom_call.1} parent=43 // pred_fallthru
          _
      $region44: #{tpu_custom_call.1} parent=5 // pred_fallthru
        _
    $region6: #{tpu_custom_call.1} parent=1 // loop_footer
      %s19 = sadd.s32 1, %s15
    $region7: #{tpu_custom_call.1} parent=1 // loop_footer_branch
      %14 = sbr.rel target = $region3
    $region8: #{tpu_custom_call.1} parent=1 // loop_exit
      _
    %208 = vsyncpa [#allocation3], 1
    %s209 = scalar_lea.sflag [#allocation3], 1
    %210 = vsyncpa %s209, 1
    %211 = vsyncpa [#allocation6], 1
    %212 = vsyncpa [#allocation4], 1
    %s213 = scalar_lea.sflag [#allocation4], 1
    %214 = vsyncpa %s213, 1

// kernel: forward.2
$region0: #{forward.2}
  #allocation0 [shape = 'u32[]', space=smem, size = 0x4, offset = 0x4, fixed_abs, tag = 'smem constant byte address 0x4 - core index']
  #allocation1 [shape = 'u32[144,128]{1,0:T(1,128)}', space=vmem, size = 0x12000, scoped, tag = 'internal scratch']
  #allocation2 [shape = 'f32[8,128]{1,0:T(8,128)}', space=vmem, size = 0x1000, scoped, tag = 'scratch operand']
  #allocation3 [shape = 'f32[8,128]{1,0:T(8,128)}', space=vmem, size = 0x1000, scoped, tag = 'scratch operand']
  %s0 = inlined_call_operand.vmem [shape: f32[8,8,8], index: 0, kind: input, shape index: {}]
  %s1 = inlined_call_operand.hbm [shape: bf16[8,512], index: 1, kind: input, shape index: {}]
  %s2 = inlined_call_operand.hbm [shape: bf16[128,512], index: 2, kind: input, shape index: {}]
  %s3 = inlined_call_operand.hbm [shape: f32[1,512], index: 3, kind: input, shape index: {}]
  %s4 = inlined_call_operand.vmem [shape: bf16[8,8,128], index: 4, kind: output, shape index: {}]
  %s5 = sld [smem:[#allocation0]]
  $region42: #{forward.2} parent=0
    _
  %s7 = ssub.s32 1, %s5
  %s8 = scalar_select 0, %s7, %s5
  $region1: #{forward.2} parent=0
    #allocation4 [shape = 'u8[8192]{0}', space=vmem, size = 0x2000, scoped, tag = 'input window, operand 1, single buffered']
    #allocation5 [shape = 's32[1]{0}', space=sflag, size = 0x4, scoped, tag = 'scoped memory for forward.2']
    #allocation6 [shape = 'u8[131072]{0}', space=vmem, size = 0x20000, scoped, tag = 'input window, operand 2, single buffered']
    #allocation7 [shape = 's32[1]{0}', space=sflag, size = 0x4, scoped, tag = 'scoped memory for forward.2']
    #allocation8 [shape = 'u8[2048]{0}', space=vmem, size = 0x800, scoped, tag = 'input window, operand 3, single buffered']
    %9 = vsyncpa [#allocation5], 0
    %10 = vsyncpa [#allocation7], 0
    // Predicated region
    $region2: #{forward.2} parent=1 // pred_check
      _
    $region3: #{forward.2} parent=1 // pred_check_branch
      %12 = sbr.rel (0) target = $region5
    $region4: #{forward.2} parent=1 // pred_region
      _
    $region5: #{forward.2} parent=1 // pred_fallthru
      _
    // Predicated region
    $region6: #{forward.2} parent=1 // pred_check
      _
    $region7: #{forward.2} parent=1 // pred_check_branch
      %14 = sbr.rel (0) target = $region9
    $region8: #{forward.2} parent=1 // pred_region
      %s16 = ssub.s32 256, 256
      %17 = vsyncadd [#allocation5], %s16
      %s19 = sshll.u32 [#allocation4], 4
      %s20 = int_to_ptr.vmem [resolvable:$true] %s19
      %22 = dma.hbm_to_vmem [thread:$0]  %s1, 256, %s20, [#allocation5]
    $region9: #{forward.2} parent=1 // pred_fallthru
      _
    // Predicated region
    $region10: #{forward.2} parent=1 // pred_check
      _
    $region11: #{forward.2} parent=1 // pred_check_branch
      %24 = sbr.rel (0) target = $region13
    $region12: #{forward.2} parent=1 // pred_region
      %s26 = ssub.s32 4096, 4096
      %27 = vsyncadd [#allocation7], %s26
      %s28 = sshll.u32 [#allocation6], 4
      %s29 = int_to_ptr.vmem [resolvable:$true] %s28
      %34 = dma.hbm_to_vmem [thread:$0]  %s2, 4096, %s29, [#allocation7], 256, 256, 16
    $region13: #{forward.2} parent=1 // pred_fallthru
      _
    // Predicated region
    $region14: #{forward.2} parent=1 // pred_check
      _
    $region15: #{forward.2} parent=1 // pred_check_branch
      %36 = sbr.rel (0) target = $region17
    $region16: #{forward.2} parent=1 // pred_region
      %s38 = ssub.s32 64, 64
      %39 = vsyncadd [#allocation7], %s38
      %s41 = sshll.u32 [#allocation8], 4
      %s42 = int_to_ptr.vmem [resolvable:$true] %s41
      %44 = dma.hbm_to_vmem [thread:$0]  %s3, 64, %s42, [#allocation7]
    $region17: #{forward.2} parent=1 // pred_fallthru
      _
    // Predicated region
    $region18: #{forward.2} parent=1 // pred_check
      _
    $region19: #{forward.2} parent=1 // pred_check_branch
      %46 = sbr.rel (0) target = $region21
    $region20: #{forward.2} parent=1 // pred_region
      %47 = dma.done [#allocation5], 256
    $region21: #{forward.2} parent=1 // pred_fallthru
      _
    // Predicated region
    $region22: #{forward.2} parent=1 // pred_check
      _
    $region23: #{forward.2} parent=1 // pred_check_branch
      %49 = sbr.rel (0) target = $region25
    $region24: #{forward.2} parent=1 // pred_region
      %50 = dma.done [#allocation7], 4096
    $region25: #{forward.2} parent=1 // pred_fallthru
      _
    // Predicated region
    $region26: #{forward.2} parent=1 // pred_check
      _
    $region27: #{forward.2} parent=1 // pred_check_branch
      %52 = sbr.rel (0) target = $region29
    $region28: #{forward.2} parent=1 // pred_region
      %53 = dma.done [#allocation7], 64
    $region29: #{forward.2} parent=1 // pred_fallthru
      _
    %p55 = scmp.eq.s32.totalorder 0, 0
    // Predicated region
    $region30: #{forward.2} parent=1 // pred_check
      %p56 = pneg %p55
    $region31: #{forward.2} parent=1 // pred_check_branch
      %58 = sbr.rel (%p56) target = $region33
    $region32: #{forward.2} parent=1 // pred_region
      %59 = vst [vmem:[#allocation2] sm:$0xff] 0.0
      %60 = vst [vmem:[#allocation3] sm:$0xff] 0.0
    $region33: #{forward.2} parent=1 // pred_fallthru
      _
    %v61 = vld [vmem:[#allocation4] sm:$0xff]
    %v62 = vld [vmem:[#allocation4 + $0x8] sm:$0xff]
    %v63 = vld [vmem:[#allocation6] sm:$0xff]
    %v64 = vld [vmem:[#allocation6 + $0x8] sm:$0xff]
    %v65 = vld [vmem:[#allocation6 + $0x10] sm:$0xff]
    %v66 = vld [vmem:[#allocation6 + $0x18] sm:$0xff]
    %v67 = vld [vmem:[#allocation6 + $0x20] sm:$0xff]
    %v68 = vld [vmem:[#allocation6 + $0x28] sm:$0xff]
    %v69 = vld [vmem:[#allocation6 + $0x30] sm:$0xff]
    %v70 = vld [vmem:[#allocation6 + $0x38] sm:$0xff]
    %v71 = vld [vmem:[#allocation6 + $0x40] sm:$0xff]
    %v72 = vld [vmem:[#allocation6 + $0x48] sm:$0xff]
    %v73 = vld [vmem:[#allocation6 + $0x50] sm:$0xff]
    %v74 = vld [vmem:[#allocation6 + $0x58] sm:$0xff]
    %v75 = vld [vmem:[#allocation6 + $0x60] sm:$0xff]
    %v76 = vld [vmem:[#allocation6 + $0x68] sm:$0xff]
    %v77 = vld [vmem:[#allocation6 + $0x70] sm:$0xff]
    %v78 = vld [vmem:[#allocation6 + $0x78] sm:$0xff]
    %v79 = vld [vmem:[#allocation6 + $0x80] sm:$0xff]
    %v80 = vld [vmem:[#allocation6 + $0x88] sm:$0xff]
    %v81 = vld [vmem:[#allocation6 + $0x90] sm:$0xff]
    %v82 = vld [vmem:[#allocation6 + $0x98] sm:$0xff]
    %v83 = vld [vmem:[#allocation6 + $0xa0] sm:$0xff]
    %v84 = vld [vmem:[#allocation6 + $0xa8] sm:$0xff]
    %v85 = vld [vmem:[#allocation6 + $0xb0] sm:$0xff]
    %v86 = vld [vmem:[#allocation6 + $0xb8] sm:$0xff]
    %v87 = vld [vmem:[#allocation6 + $0xc0] sm:$0xff]
    %v88 = vld [vmem:[#allocation6 + $0xc8] sm:$0xff]
    %v89 = vld [vmem:[#allocation6 + $0xd0] sm:$0xff]
    %v90 = vld [vmem:[#allocation6 + $0xd8] sm:$0xff]
    %v91 = vld [vmem:[#allocation6 + $0xe0] sm:$0xff]
    %v92 = vld [vmem:[#allocation6 + $0xe8] sm:$0xff]
    %v93 = vld [vmem:[#allocation6 + $0xf0] sm:$0xff]
    %v94 = vld [vmem:[#allocation6 + $0xf8] sm:$0xff]
    %v95 = vld [vmem:[#allocation8] sm:$0xf]
    %v96 = vld [vmem:[#allocation2] sm:$0xff]
    %v97 = vld [vmem:[#allocation3] sm:$0xff]
    %v98 = vld [vmem:[%s0] sm:$0x1]
    %v99 = vld [vmem:[%s0 + $0x8] sm:$0x1]
    %v100 = vld [vmem:[%s0 + $0x10] sm:$0x1]
    %v101 = vld [vmem:[%s0 + $0x18] sm:$0x1]
    %v102 = vld [vmem:[%s0 + $0x20] sm:$0x1]
    %v103 = vld [vmem:[%s0 + $0x28] sm:$0x1]
    %v104 = vld [vmem:[%s0 + $0x30] sm:$0x1]
    %v105 = vld [vmem:[%s0 + $0x38] sm:$0x1]
    %v106 = vpack.c.bf16 %v98, %v98
    %v107 = vpack.c.bf16 %v99, %v99
    %v108 = vpack.c.bf16 %v100, %v100
    %v109 = vpack.c.bf16 %v101, %v101
    %v110 = vpack.c.bf16 %v102, %v102
    %v111 = vpack.c.bf16 %v103, %v103
    %v112 = vpack.c.bf16 %v104, %v104
    %v113 = vpack.c.bf16 %v105, %v105
    %v114 = vpack.c.bf16 %v96, %v96
    %v147 = vunpack.c.l.b16 %v63
    %v148 = vunpack.c.h.b16 %v63
    %v149 = vunpack.c.l.b16 %v64
    %v150 = vunpack.c.h.b16 %v64
    %v151 = vunpack.c.l.b16 %v65
    %v152 = vunpack.c.h.b16 %v65
    %v153 = vunpack.c.l.b16 %v66
    %v154 = vunpack.c.h.b16 %v66
    %v155 = vunpack.c.l.b16 %v67
    %v156 = vunpack.c.h.b16 %v67
    %v157 = vunpack.c.l.b16 %v68
    %v158 = vunpack.c.h.b16 %v68
    %v159 = vunpack.c.l.b16 %v69
    %v160 = vunpack.c.h.b16 %v69
    %v161 = vunpack.c.l.b16 %v70
    %v162 = vunpack.c.h.b16 %v70
    %v163 = vunpack.c.l.b16 %v71
    %v164 = vunpack.c.h.b16 %v71
    %v165 = vunpack.c.l.b16 %v72
    %v166 = vunpack.c.h.b16 %v72
    %v167 = vunpack.c.l.b16 %v73
    %v168 = vunpack.c.h.b16 %v73
    %v169 = vunpack.c.l.b16 %v74
    %v170 = vunpack.c.h.b16 %v74
    %v171 = vunpack.c.l.b16 %v75
    %v172 = vunpack.c.h.b16 %v75
    %v173 = vunpack.c.l.b16 %v76
    %v174 = vunpack.c.h.b16 %v76
    %v175 = vunpack.c.l.b16 %v77
    %v176 = vunpack.c.h.b16 %v77
    %v177 = vunpack.c.l.b16 %v78
    %v178 = vunpack.c.h.b16 %v78
    %v179 = vunpack.c.l.b16 %v79
    %v180 = vunpack.c.h.b16 %v79
    %v181 = vunpack.c.l.b16 %v80
    %v182 = vunpack.c.h.b16 %v80
    %v183 = vunpack.c.l.b16 %v81
    %v184 = vunpack.c.h.b16 %v81
    %v185 = vunpack.c.l.b16 %v82
    %v186 = vunpack.c.h.b16 %v82
    %v187 = vunpack.c.l.b16 %v83
    %v188 = vunpack.c.h.b16 %v83
    %v189 = vunpack.c.l.b16 %v84
    %v190 = vunpack.c.h.b16 %v84
    %v191 = vunpack.c.l.b16 %v85
    %v192 = vunpack.c.h.b16 %v85
    %v193 = vunpack.c.l.b16 %v86
    %v194 = vunpack.c.h.b16 %v86
    %v195 = vunpack.c.l.b16 %v87
    %v196 = vunpack.c.h.b16 %v87
    %v197 = vunpack.c.l.b16 %v88
    %v198 = vunpack.c.h.b16 %v88
    %v199 = vunpack.c.l.b16 %v89
    %v200 = vunpack.c.h.b16 %v89
    %v201 = vunpack.c.l.b16 %v90
    %v202 = vunpack.c.h.b16 %v90
    %v203 = vunpack.c.l.b16 %v91
    %v204 = vunpack.c.h.b16 %v91
    %v205 = vunpack.c.l.b16 %v92
    %v206 = vunpack.c.h.b16 %v92
    %v207 = vunpack.c.l.b16 %v93
    %v208 = vunpack.c.h.b16 %v93
    %v209 = vunpack.c.l.b16 %v94
    %v210 = vunpack.c.h.b16 %v94
    %v211 = vpack.c.b16 %v151, %v147
    %v212 = vpack.c.b16 %v152, %v148
    %v213 = vpack.c.b16 %v153, %v149
    %v214 = vpack.c.b16 %v154, %v150
    %v215 = vpack.c.b16 %v159, %v155
    %v216 = vpack.c.b16 %v160, %v156
    %v217 = vpack.c.b16 %v161, %v157
    %v218 = vpack.c.b16 %v162, %v158
    %v219 = vpack.c.b16 %v167, %v163
    %v220 = vpack.c.b16 %v168, %v164
    %v221 = vpack.c.b16 %v169, %v165
    %v222 = vpack.c.b16 %v170, %v166
    %v223 = vpack.c.b16 %v175, %v171
    %v224 = vpack.c.b16 %v176, %v172
    %v225 = vpack.c.b16 %v177, %v173
    %v226 = vpack.c.b16 %v178, %v174
    %v227 = vpack.c.b16 %v183, %v179
    %v228 = vpack.c.b16 %v184, %v180
    %v229 = vpack.c.b16 %v185, %v181
    %v230 = vpack.c.b16 %v186, %v182
    %v231 = vpack.c.b16 %v191, %v187
    %v232 = vpack.c.b16 %v192, %v188
    %v233 = vpack.c.b16 %v193, %v189
    %v234 = vpack.c.b16 %v194, %v190
    %v235 = vpack.c.b16 %v199, %v195
    %v236 = vpack.c.b16 %v200, %v196
    %v237 = vpack.c.b16 %v201, %v197
    %v238 = vpack.c.b16 %v202, %v198
    %v239 = vpack.c.b16 %v207, %v203
    %v240 = vpack.c.b16 %v208, %v204
    %v241 = vpack.c.b16 %v209, %v205
    %v242 = vpack.c.b16 %v210, %v206
    %275 = vmatprep.subr.bf16.mxu0 %v212
    %276 = vmatpush1.bf16.msra.mxu0 %v211
    %277 = vmatprep.subr.bf16.mxu0 %v216
    %278 = vmatpush1.bf16.msra.mxu0 %v215
    %279 = vmatprep.subr.bf16.mxu0 %v220
    %280 = vmatpush1.bf16.msra.mxu0 %v219
    %281 = vmatprep.subr.bf16.mxu0 %v224
    %282 = vmatpush1.bf16.msra.mxu0 %v223
    %283 = vmatprep.subr.bf16.mxu0 %v228
    %284 = vmatpush1.bf16.msra.mxu0 %v227
    %285 = vmatprep.subr.bf16.mxu0 %v232
    %286 = vmatpush1.bf16.msra.mxu0 %v231
    %287 = vmatprep.subr.bf16.mxu0 %v236
    %288 = vmatpush1.bf16.msra.mxu0 %v235
    %289 = vmatprep.subr.bf16.mxu0 %v240
    %290 = vmatpush1.bf16.msra.mxu0 %v239
    %291 = vmatprep.subr.bf16.mxu0 0
    %292 = vmatpush1.bf16.msra.mxu0 0
    %293 = vmatprep.subr.bf16.mxu0 0
    %294 = vmatpush1.bf16.msra.mxu0 0
    %295 = vmatprep.subr.bf16.mxu0 0
    %296 = vmatpush1.bf16.msra.mxu0 0
    %297 = vmatprep.subr.bf16.mxu0 0
    %298 = vmatpush1.bf16.msra.mxu0 0
    %299 = vmatprep.subr.bf16.mxu0 0
    %300 = vmatpush1.bf16.msra.mxu0 0
    %301 = vmatprep.subr.bf16.mxu0 0
    %302 = vmatpush1.bf16.msra.mxu0 0
    %303 = vmatprep.subr.bf16.mxu0 0
    %304 = vmatpush1.bf16.msra.mxu0 0
    %305 = vmatprep.subr.bf16.mxu0 0
    %306 = vmatpush1.bf16.msra.mxu0 0
    %307 = vmatprep.mubr.bf16.mxu0 0
    %308 = vmatmul.mubr.bf16.gmra.mrb[0].mxu0 %v114
    %v309 = vpop.f32.mrb[0].mxu0
    %v310 = vadd.f32 0.0, %v309
    %v311 = vpop.f32.mrb[0].mxu0
    %v312 = vadd.f32 0.0, %v311
    %v313 = vpop.f32.mrb[0].mxu0
    %v314 = vpop.f32.mrb[0].mxu0
    %315 = vdwg.mxu0
    %316 = vmatprep.subr.bf16.mxu0 %v214
    %317 = vmatpush1.bf16.msra.mxu0 %v213
    %318 = vmatprep.subr.bf16.mxu0 %v218
    %319 = vmatpush1.bf16.msra.mxu0 %v217
    %320 = vmatprep.subr.bf16.mxu0 %v222
    %321 = vmatpush1.bf16.msra.mxu0 %v221
    %322 = vmatprep.subr.bf16.mxu0 %v226
    %323 = vmatpush1.bf16.msra.mxu0 %v225
    %324 = vmatprep.subr.bf16.mxu0 %v230
    %325 = vmatpush1.bf16.msra.mxu0 %v229
    %326 = vmatprep.subr.bf16.mxu0 %v234
    %327 = vmatpush1.bf16.msra.mxu0 %v233
    %328 = vmatprep.subr.bf16.mxu0 %v238
    %329 = vmatpush1.bf16.msra.mxu0 %v237
    %330 = vmatprep.subr.bf16.mxu0 %v242
    %331 = vmatpush1.bf16.msra.mxu0 %v241
    %332 = vmatprep.subr.bf16.mxu0 0
    %333 = vmatpush1.bf16.msra.mxu0 0
    %334 = vmatprep.subr.bf16.mxu0 0
    %335 = vmatpush1.bf16.msra.mxu0 0
    %336 = vmatprep.subr.bf16.mxu0 0
    %337 = vmatpush1.bf16.msra.mxu0 0
    %338 = vmatprep.subr.bf16.mxu0 0
    %339 = vmatpush1.bf16.msra.mxu0 0
    %340 = vmatprep.subr.bf16.mxu0 0
    %341 = vmatpush1.bf16.msra.mxu0 0
    %342 = vmatprep.subr.bf16.mxu0 0
    %343 = vmatpush1.bf16.msra.mxu0 0
    %344 = vmatprep.subr.bf16.mxu0 0
    %345 = vmatpush1.bf16.msra.mxu0 0
    %346 = vmatprep.subr.bf16.mxu0 0
    %347 = vmatpush1.bf16.msra.mxu0 0
    %348 = vmatprep.mubr.bf16.mxu0 0
    %349 = vmatmul.mubr.bf16.gmra.mrb[0].mxu0 %v114
    %v350 = vpop.f32.mrb[0].mxu0
    %v351 = vadd.f32 0.0, %v350
    %v352 = vpop.f32.mrb[0].mxu0
    %v353 = vadd.f32 0.0, %v352
    %v354 = vpop.f32.mrb[0].mxu0
    %v355 = vpop.f32.mrb[0].mxu0
    %356 = vdwg.mxu0
    %v365 = vunpack.c.l.b16 %v106
    %v366 = vunpack.c.l.b16 %v107
    %v367 = vunpack.c.l.b16 %v108
    %v368 = vunpack.c.l.b16 %v109
    %v369 = vunpack.c.l.b16 %v110
    %v370 = vunpack.c.l.b16 %v111
    %v371 = vunpack.c.l.b16 %v112
    %v372 = vunpack.c.l.b16 %v113
    %v373 = vrot.slane %v366, 7
    %vm374 = vcmask 1041409
    %v375 = vsel %vm374, %v373, %v365
    %v376 = vrot.slane %v367, 6
    %vm377 = vcmask 1042434
    %v378 = vsel %vm377, %v376, %v375
    %v379 = vrot.slane %v368, 5
    %vm380 = vcmask 1043459
    %v381 = vsel %vm380, %v379, %v378
    %v382 = vrot.slane %v369, 4
    %vm383 = vcmask 1044484
    %v384 = vsel %vm383, %v382, %v381
    %v385 = vrot.slane %v370, 3
    %vm386 = vcmask 1045509
    %v387 = vsel %vm386, %v385, %v384
    %v388 = vrot.slane %v371, 2
    %vm389 = vcmask 1046534
    %v390 = vsel %vm389, %v388, %v387
    %v391 = vrot.slane %v372, 1
    %vm392 = vcmask 1047559
    %v393 = vsel %vm392, %v391, %v390
    %v394 = vpack.c.b16 %v393, %v393
    %v397 = vunpack.c.l.b16 %v61
    %v398 = vunpack.c.h.b16 %v61
    %v399 = vunpack.c.l.b16 %v62
    %v400 = vunpack.c.h.b16 %v62
    %v401 = vpack.c.b16 %v397, %v397
    %v402 = vpack.c.b16 %v398, %v398
    %v403 = vpack.c.b16 %v399, %v399
    %v404 = vpack.c.b16 %v400, %v400
    %vm405 = vcmask 64512
    %v407 = vsel %vm405, %v394, 0
    %vm409 = vcmask 1043456
    %v411 = vsel %vm409, %v401, 0
    %v414 = vsel %vm409, %v402, 0
    %v417 = vsel %vm409, %v403, 0
    %v420 = vsel %vm409, %v404, 0
    %422 = vmatprep.subr.bf16.mxu0 %v414
    %423 = vmatpush1.bf16.msra.mxu0 %v411
    %424 = vmatprep.subr.bf16.mxu0 0
    %425 = vmatpush1.bf16.msra.mxu0 0
    %426 = vmatprep.subr.bf16.mxu0 0
    %427 = vmatpush1.bf16.msra.mxu0 0
    %428 = vmatprep.subr.bf16.mxu0 0
    %429 = vmatpush1.bf16.msra.mxu0 0
    %430 = vmatprep.subr.bf16.mxu0 0
    %431 = vmatpush1.bf16.msra.mxu0 0
    %432 = vmatprep.subr.bf16.mxu0 0
    %433 = vmatpush1.bf16.msra.mxu0 0
    %434 = vmatprep.subr.bf16.mxu0 0
    %435 = vmatpush1.bf16.msra.mxu0 0
    %436 = vmatprep.subr.bf16.mxu0 0
    %437 = vmatpush1.bf16.msra.mxu0 0
    %438 = vmatprep.subr.bf16.mxu0 0
    %439 = vmatpush1.bf16.msra.mxu0 0
    %440 = vmatprep.subr.bf16.mxu0 0
    %441 = vmatpush1.bf16.msra.mxu0 0
    %442 = vmatprep.subr.bf16.mxu0 0
    %443 = vmatpush1.bf16.msra.mxu0 0
    %444 = vmatprep.subr.bf16.mxu0 0
    %445 = vmatpush1.bf16.msra.mxu0 0
    %446 = vmatprep.subr.bf16.mxu0 0
    %447 = vmatpush1.bf16.msra.mxu0 0
    %448 = vmatprep.subr.bf16.mxu0 0
    %449 = vmatpush1.bf16.msra.mxu0 0
    %450 = vmatprep.subr.bf16.mxu0 0
    %451 = vmatpush1.bf16.msra.mxu0 0
    %452 = vmatprep.subr.bf16.mxu0 0
    %453 = vmatpush1.bf16.msra.mxu0 0
    %454 = vmatprep.mubr.bf16.mxu0 0
    %455 = vmatmul.mubr.bf16.gmra.mrb[0].mxu0 %v407
    %v456 = vpop.f32.mrb[0].mxu0
    %v457 = vadd.f32 %v310, %v456
    %v458 = vpop.f32.mrb[0].mxu0
    %v459 = vadd.f32 %v312, %v458
    %v460 = vpop.f32.mrb[0].mxu0
    %v461 = vpop.f32.mrb[0].mxu0
    %462 = vdwg.mxu0
    %463 = vmatprep.subr.bf16.mxu0 %v420
    %464 = vmatpush1.bf16.msra.mxu0 %v417
    %465 = vmatprep.subr.bf16.mxu0 0
    %466 = vmatpush1.bf16.msra.mxu0 0
    %467 = vmatprep.subr.bf16.mxu0 0
    %468 = vmatpush1.bf16.msra.mxu0 0
    %469 = vmatprep.subr.bf16.mxu0 0
    %470 = vmatpush1.bf16.msra.mxu0 0
    %471 = vmatprep.subr.bf16.mxu0 0
    %472 = vmatpush1.bf16.msra.mxu0 0
    %473 = vmatprep.subr.bf16.mxu0 0
    %474 = vmatpush1.bf16.msra.mxu0 0
    %475 = vmatprep.subr.bf16.mxu0 0
    %476 = vmatpush1.bf16.msra.mxu0 0
    %477 = vmatprep.subr.bf16.mxu0 0
    %478 = vmatpush1.bf16.msra.mxu0 0
    %479 = vmatprep.subr.bf16.mxu0 0
    %480 = vmatpush1.bf16.msra.mxu0 0
    %481 = vmatprep.subr.bf16.mxu0 0
    %482 = vmatpush1.bf16.msra.mxu0 0
    %483 = vmatprep.subr.bf16.mxu0 0
    %484 = vmatpush1.bf16.msra.mxu0 0
    %485 = vmatprep.subr.bf16.mxu0 0
    %486 = vmatpush1.bf16.msra.mxu0 0
    %487 = vmatprep.subr.bf16.mxu0 0
    %488 = vmatpush1.bf16.msra.mxu0 0
    %489 = vmatprep.subr.bf16.mxu0 0
    %490 = vmatpush1.bf16.msra.mxu0 0
    %491 = vmatprep.subr.bf16.mxu0 0
    %492 = vmatpush1.bf16.msra.mxu0 0
    %493 = vmatprep.subr.bf16.mxu0 0
    %494 = vmatpush1.bf16.msra.mxu0 0
    %495 = vmatprep.mubr.bf16.mxu0 0
    %496 = vmatmul.mubr.bf16.gmra.mrb[0].mxu0 %v407
    %v497 = vpop.f32.mrb[0].mxu0
    %v498 = vadd.f32 %v351, %v497
    %v499 = vpop.f32.mrb[0].mxu0
    %v500 = vadd.f32 %v353, %v499
    %v501 = vpop.f32.mrb[0].mxu0
    %v502 = vpop.f32.mrb[0].mxu0
    %503 = vdwg.mxu0
    %v505 = vlaneseq
    %v506 = vshrl.u32 %v505, 7
    %v507 = vsub.s32 0, %v506
    %v508 = vrot.slane %v95, %v507
    %v509 = vlaneseq
    %v510 = vshrl.u32 %v509, 7
    %v511 = vsub.s32 1, %v510
    %v512 = vrot.slane %v95, %v511
    %v513 = vlaneseq
    %v514 = vshrl.u32 %v513, 7
    %v515 = vsub.s32 2, %v514
    %v516 = vrot.slane %v95, %v515
    %v517 = vlaneseq
    %v518 = vshrl.u32 %v517, 7
    %v519 = vsub.s32 3, %v518
    %v520 = vrot.slane %v95, %v519
    %v525 = vadd.f32 %v457, %v508
    %v526 = vadd.f32 %v459, %v512
    %v527 = vadd.f32 %v498, %v516
    %v528 = vadd.f32 %v500, %v520
    %v529 = vxor.u32 %v525, 2147483648
    %v530 = vmul.f32 %v529, 1.442695
    %v531 = vpow.pop %v530
    %v532 = vadd.f32 %v531, 1.0
    %v533 = vrcp.pop %v532
    %v534 = vmul.f32 1.0, %v533
    %v535 = vxor.u32 %v526, 2147483648
    %v536 = vmul.f32 %v535, 1.442695
    %v537 = vpow.pop %v536
    %v538 = vadd.f32 %v537, 1.0
    %v539 = vrcp.pop %v538
    %v540 = vmul.f32 1.0, %v539
    %v541 = vtanh.pop %v527
    %v542 = vxor.u32 %v528, 2147483648
    %v543 = vmul.f32 %v542, 1.442695
    %v544 = vpow.pop %v543
    %v545 = vadd.f32 %v544, 1.0
    %v546 = vrcp.pop %v545
    %v547 = vmul.f32 1.0, %v546
    %v548 = vmul.f32 %v540, %v97
    %v549 = vmul.f32 %v534, %v541
    %v550 = vadd.f32 %v548, %v549
    %v551 = vtanh.pop %v550
    %v552 = vmul.f32 %v547, %v551
    %s553 = smul.u32 0, 8
    %p554 = scmp.lt.s32.totalorder %s553, 8
    %s555 = scalar_select %p554, 1, 0
    %v556 = vstv %s555
    %vm557 = vcmp.eq.s32.totalorder %v556, 1
    %v558 = vsel %vm557, %v550, %v97
    %v559 = vsel %vm557, %v552, %v96
    %v560 = vpack.c.bf16 %v559, %v559
    %561 = vst [vmem:[%s4] sm:$0xf] %v560
    %v562 = vld [vmem:[%s0 + $0x1] sm:$0x1]
    %v563 = vld [vmem:[%s0 + $0x9] sm:$0x1]
    %v564 = vld [vmem:[%s0 + $0x11] sm:$0x1]
    %v565 = vld [vmem:[%s0 + $0x19] sm:$0x1]
    %v566 = vld [vmem:[%s0 + $0x21] sm:$0x1]
    %v567 = vld [vmem:[%s0 + $0x29] sm:$0x1]
    %v568 = vld [vmem:[%s0 + $0x31] sm:$0x1]
    %v569 = vld [vmem:[%s0 + $0x39] sm:$0x1]
    %v570 = vpack.c.bf16 %v562, %v562
    %v571 = vpack.c.bf16 %v563, %v563
    %v572 = vpack.c.bf16 %v564, %v564
    %v573 = vpack.c.bf16 %v565, %v565
    %v574 = vpack.c.bf16 %v566, %v566
    %v575 = vpack.c.bf16 %v567, %v567
    %v576 = vpack.c.bf16 %v568, %v568
    %v577 = vpack.c.bf16 %v569, %v569
    %578 = vmatprep.subr.bf16.mxu0 %v212
    %579 = vmatpush1.bf16.msra.mxu0 %v211
    %580 = vmatprep.subr.bf16.mxu0 %v216
    %581 = vmatpush1.bf16.msra.mxu0 %v215
    %582 = vmatprep.subr.bf16.mxu0 %v220
    %583 = vmatpush1.bf16.msra.mxu0 %v219
    %584 = vmatprep.subr.bf16.mxu0 %v224
    %585 = vmatpush1.bf16.msra.mxu0 %v223
    %586 = vmatprep.subr.bf16.mxu0 %v228
    %587 = vmatpush1.bf16.msra.mxu0 %v227
    %588 = vmatprep.subr.bf16.mxu0 %v232
    %589 = vmatpush1.bf16.msra.mxu0 %v231
    %590 = vmatprep.subr.bf16.mxu0 %v236
    %591 = vmatpush1.bf16.msra.mxu0 %v235
    %592 = vmatprep.subr.bf16.mxu0 %v240
    %593 = vmatpush1.bf16.msra.mxu0 %v239
    %594 = vmatprep.subr.bf16.mxu0 0
    %595 = vmatpush1.bf16.msra.mxu0 0
    %596 = vmatprep.subr.bf16.mxu0 0
    %597 = vmatpush1.bf16.msra.mxu0 0
    %598 = vmatprep.subr.bf16.mxu0 0
    %599 = vmatpush1.bf16.msra.mxu0 0
    %600 = vmatprep.subr.bf16.mxu0 0
    %601 = vmatpush1.bf16.msra.mxu0 0
    %602 = vmatprep.subr.bf16.mxu0 0
    %603 = vmatpush1.bf16.msra.mxu0 0
    %604 = vmatprep.subr.bf16.mxu0 0
    %605 = vmatpush1.bf16.msra.mxu0 0
    %606 = vmatprep.subr.bf16.mxu0 0
    %607 = vmatpush1.bf16.msra.mxu0 0
    %608 = vmatprep.subr.bf16.mxu0 0
    %609 = vmatpush1.bf16.msra.mxu0 0
    %610 = vmatprep.mubr.bf16.mxu0 0
    %611 = vmatmul.mubr.bf16.gmra.mrb[0].mxu0 %v560
    %v612 = vpop.f32.mrb[0].mxu0
    %v613 = vadd.f32 0.0, %v612
    %v614 = vpop.f32.mrb[0].mxu0
    %v615 = vadd.f32 0.0, %v614
    %v616 = vpop.f32.mrb[0].mxu0
    %v617 = vpop.f32.mrb[0].mxu0
    %618 = vdwg.mxu0
    %619 = vmatprep.subr.bf16.mxu0 %v214
    %620 = vmatpush1.bf16.msra.mxu0 %v213
    %621 = vmatprep.subr.bf16.mxu0 %v218
    %622 = vmatpush1.bf16.msra.mxu0 %v217
    %623 = vmatprep.subr.bf16.mxu0 %v222
    %624 = vmatpush1.bf16.msra.mxu0 %v221
    %625 = vmatprep.subr.bf16.mxu0 %v226
    %626 = vmatpush1.bf16.msra.mxu0 %v225
    %627 = vmatprep.subr.bf16.mxu0 %v230
    %628 = vmatpush1.bf16.msra.mxu0 %v229
    %629 = vmatprep.subr.bf16.mxu0 %v234
    %630 = vmatpush1.bf16.msra.mxu0 %v233
    %631 = vmatprep.subr.bf16.mxu0 %v238
    %632 = vmatpush1.bf16.msra.mxu0 %v237
    %633 = vmatprep.subr.bf16.mxu0 %v242
    %634 = vmatpush1.bf16.msra.mxu0 %v241
    %635 = vmatprep.subr.bf16.mxu0 0
    %636 = vmatpush1.bf16.msra.mxu0 0
    %637 = vmatprep.subr.bf16.mxu0 0
    %638 = vmatpush1.bf16.msra.mxu0 0
    %639 = vmatprep.subr.bf16.mxu0 0
    %640 = vmatpush1.bf16.msra.mxu0 0
    %641 = vmatprep.subr.bf16.mxu0 0
    %642 = vmatpush1.bf16.msra.mxu0 0
    %643 = vmatprep.subr.bf16.mxu0 0
    %644 = vmatpush1.bf16.msra.mxu0 0
    %645 = vmatprep.subr.bf16.mxu0 0
    %646 = vmatpush1.bf16.msra.mxu0 0
    %647 = vmatprep.subr.bf16.mxu0 0
    %648 = vmatpush1.bf16.msra.mxu0 0
    %649 = vmatprep.subr.bf16.mxu0 0
    %650 = vmatpush1.bf16.msra.mxu0 0
    %651 = vmatprep.mubr.bf16.mxu0 0
    %652 = vmatmul.mubr.bf16.gmra.mrb[0].mxu0 %v560
    %v653 = vpop.f32.mrb[0].mxu0
    %v654 = vadd.f32 0.0, %v653
    %v655 = vpop.f32.mrb[0].mxu0
    %v656 = vadd.f32 0.0, %v655
    %v657 = vpop.f32.mrb[0].mxu0
    %v658 = vpop.f32.mrb[0].mxu0
    %659 = vdwg.mxu0
    %v668 = vunpack.c.l.b16 %v570
    %v669 = vunpack.c.l.b16 %v571
    %v670 = vunpack.c.l.b16 %v572
    %v671 = vunpack.c.l.b16 %v573
    %v672 = vunpack.c.l.b16 %v574
    %v673 = vunpack.c.l.b16 %v575
    %v674 = vunpack.c.l.b16 %v576
    %v675 = vunpack.c.l.b16 %v577
    %v676 = vrot.slane %v669, 7
    %v677 = vsel %vm374, %v676, %v668
    %v678 = vrot.slane %v670, 6
    %v679 = vsel %vm377, %v678, %v677
    %v680 = vrot.slane %v671, 5
    %v681 = vsel %vm380, %v680, %v679
    %v682 = vrot.slane %v672, 4
    %v683 = vsel %vm383, %v682, %v681
    %v684 = vrot.slane %v673, 3
    %v685 = vsel %vm386, %v684, %v683
    %v686 = vrot.slane %v674, 2
    %v687 = vsel %vm389, %v686, %v685
    %v688 = vrot.slane %v675, 1
    %v689 = vsel %vm392, %v688, %v687
    %v690 = vpack.c.b16 %v689, %v689
    %v692 = vsel %vm405, %v690, 0
    %694 = vmatprep.subr.bf16.mxu0 %v414
    %695 = vmatpush1.bf16.msra.mxu0 %v411
    %696 = vmatprep.subr.bf16.mxu0 0
    %697 = vmatpush1.bf16.msra.mxu0 0
    %698 = vmatprep.subr.bf16.mxu0 0
    %699 = vmatpush1.bf16.msra.mxu0 0
    %700 = vmatprep.subr.bf16.mxu0 0
    %701 = vmatpush1.bf16.msra.mxu0 0
    %702 = vmatprep.subr.bf16.mxu0 0
    %703 = vmatpush1.bf16.msra.mxu0 0
    %704 = vmatprep.subr.bf16.mxu0 0
    %705 = vmatpush1.bf16.msra.mxu0 0
    %706 = vmatprep.subr.bf16.mxu0 0
    %707 = vmatpush1.bf16.msra.mxu0 0
    %708 = vmatprep.subr.bf16.mxu0 0
    %709 = vmatpush1.bf16.msra.mxu0 0
    %710 = vmatprep.subr.bf16.mxu0 0
    %711 = vmatpush1.bf16.msra.mxu0 0
    %712 = vmatprep.subr.bf16.mxu0 0
    %713 = vmatpush1.bf16.msra.mxu0 0
    %714 = vmatprep.subr.bf16.mxu0 0
    %715 = vmatpush1.bf16.msra.mxu0 0
    %716 = vmatprep.subr.bf16.mxu0 0
    %717 = vmatpush1.bf16.msra.mxu0 0
    %718 = vmatprep.subr.bf16.mxu0 0
    %719 = vmatpush1.bf16.msra.mxu0 0
    %720 = vmatprep.subr.bf16.mxu0 0
    %721 = vmatpush1.bf16.msra.mxu0 0
    %722 = vmatprep.subr.bf16.mxu0 0
    %723 = vmatpush1.bf16.msra.mxu0 0
    %724 = vmatprep.subr.bf16.mxu0 0
    %725 = vmatpush1.bf16.msra.mxu0 0
    %726 = vmatprep.mubr.bf16.mxu0 0
    %727 = vmatmul.mubr.bf16.gmra.mrb[0].mxu0 %v692
    %v728 = vpop.f32.mrb[0].mxu0
    %v729 = vadd.f32 %v613, %v728
    %v730 = vpop.f32.mrb[0].mxu0
    %v731 = vadd.f32 %v615, %v730
    %v732 = vpop.f32.mrb[0].mxu0
    %v733 = vpop.f32.mrb[0].mxu0
    %734 = vdwg.mxu0
    %735 = vmatprep.subr.bf16.mxu0 %v420
    %736 = vmatpush1.bf16.msra.mxu0 %v417
    %737 = vmatprep.subr.bf16.mxu0 0
    %738 = vmatpush1.bf16.msra.mxu0 0
    %739 = vmatprep.subr.bf16.mxu0 0
    %740 = vmatpush1.bf16.msra.mxu0 0
    %741 = vmatprep.subr.bf16.mxu0 0
    %742 = vmatpush1.bf16.msra.mxu0 0
    %743 = vmatprep.subr.bf16.mxu0 0
    %744 = vmatpush1.bf16.msra.mxu0 0
    %745 = vmatprep.subr.bf16.mxu0 0
    %746 = vmatpush1.bf16.msra.mxu0 0
    %747 = vmatprep.subr.bf16.mxu0 0
    %748 = vmatpush1.bf16.msra.mxu0 0
    %749 = vmatprep.subr.bf16.mxu0 0
    %750 = vmatpush1.bf16.msra.mxu0 0
    %751 = vmatprep.subr.bf16.mxu0 0
    %752 = vmatpush1.bf16.msra.mxu0 0
    %753 = vmatprep.subr.bf16.mxu0 0
    %754 = vmatpush1.bf16.msra.mxu0 0
    %755 = vmatprep.subr.bf16.mxu0 0
    %756 = vmatpush1.bf16.msra.mxu0 0
    %757 = vmatprep.subr.bf16.mxu0 0
    %758 = vmatpush1.bf16.msra.mxu0 0
    %759 = vmatprep.subr.bf16.mxu0 0
    %760 = vmatpush1.bf16.msra.mxu0 0
    %761 = vmatprep.subr.bf16.mxu0 0
    %762 = vmatpush1.bf16.msra.mxu0 0
    %763 = vmatprep.subr.bf16.mxu0 0
    %764 = vmatpush1.bf16.msra.mxu0 0
    %765 = vmatprep.subr.bf16.mxu0 0
    %766 = vmatpush1.bf16.msra.mxu0 0
    %767 = vmatprep.mubr.bf16.mxu0 0
    %768 = vmatmul.mubr.bf16.gmra.mrb[0].mxu0 %v692
    %v769 = vpop.f32.mrb[0].mxu0
    %v770 = vadd.f32 %v654, %v769
    %v771 = vpop.f32.mrb[0].mxu0
    %v772 = vadd.f32 %v656, %v771
    %v773 = vpop.f32.mrb[0].mxu0
    %v774 = vpop.f32.mrb[0].mxu0
    %775 = vdwg.mxu0
    %v776 = vadd.f32 %v729, %v508
    %v777 = vadd.f32 %v731, %v512
    %v778 = vadd.f32 %v770, %v516
    %v779 = vadd.f32 %v772, %v520
    %v780 = vxor.u32 %v776, 2147483648
    %v781 = vmul.f32 %v780, 1.442695
    %v782 = vpow.pop %v781
    %v783 = vadd.f32 %v782, 1.0
    %v784 = vrcp.pop %v783
    %v785 = vmul.f32 1.0, %v784
    %v786 = vxor.u32 %v777, 2147483648
    %v787 = vmul.f32 %v786, 1.442695
    %v788 = vpow.pop %v787
    %v789 = vadd.f32 %v788, 1.0
    %v790 = vrcp.pop %v789
    %v791 = vmul.f32 1.0, %v790
    %v792 = vtanh.pop %v778
    %v793 = vxor.u32 %v779, 2147483648
    %v794 = vmul.f32 %v793, 1.442695
    %v795 = vpow.pop %v794
    %v796 = vadd.f32 %v795, 1.0
    %v797 = vrcp.pop %v796
    %v798 = vmul.f32 1.0, %v797
    %v799 = vmul.f32 %v791, %v558
    %v800 = vmul.f32 %v785, %v792
    %v801 = vadd.f32 %v799, %v800
    %v802 = vtanh.pop %v801
    %v803 = vmul.f32 %v798, %v802
    %s804 = sadd.s32 %s553, 1
    %p805 = scmp.lt.s32.totalorder %s804, 8
    %s806 = scalar_select %p805, 1, 0
    %v807 = vstv %s806
    %vm808 = vcmp.eq.s32.totalorder %v807, 1
    %v809 = vsel %vm808, %v801, %v558
    %v810 = vsel %vm808, %v803, %v559
    %v811 = vpack.c.bf16 %v810, %v810
    %s812 = scalar_lea.vmem %s4, 4
    %813 = vst [vmem:[%s812] sm:$0xf] %v811
    %v814 = vld [vmem:[%s0 + $0x2] sm:$0x1]
    %v815 = vld [vmem:[%s0 + $0xa] sm:$0x1]
    %v816 = vld [vmem:[%s0 + $0x12] sm:$0x1]
    %v817 = vld [vmem:[%s0 + $0x1a] sm:$0x1]
    %v818 = vld [vmem:[%s0 + $0x22] sm:$0x1]
    %v819 = vld [vmem:[%s0 + $0x2a] sm:$0x1]
    %v820 = vld [vmem:[%s0 + $0x32] sm:$0x1]
    %v821 = vld [vmem:[%s0 + $0x3a] sm:$0x1]
    %v822 = vpack.c.bf16 %v814, %v814
    %v823 = vpack.c.bf16 %v815, %v815
    %v824 = vpack.c.bf16 %v816, %v816
    %v825 = vpack.c.bf16 %v817, %v817
    %v826 = vpack.c.bf16 %v818, %v818
    %v827 = vpack.c.bf16 %v819, %v819
    %v828 = vpack.c.bf16 %v820, %v820
    %v829 = vpack.c.bf16 %v821, %v821
    %830 = vmatprep.subr.bf16.mxu0 %v212
    %831 = vmatpush1.bf16.msra.mxu0 %v211
    %832 = vmatprep.subr.bf16.mxu0 %v216
    %833 = vmatpush1.bf16.msra.mxu0 %v215
    %834 = vmatprep.subr.bf16.mxu0 %v220
    %835 = vmatpush1.bf16.msra.mxu0 %v219
    %836 = vmatprep.subr.bf16.mxu0 %v224
    %837 = vmatpush1.bf16.msra.mxu0 %v223
    %838 = vmatprep.subr.bf16.mxu0 %v228
    %839 = vmatpush1.bf16.msra.mxu0 %v227
    %840 = vmatprep.subr.bf16.mxu0 %v232
    %841 = vmatpush1.bf16.msra.mxu0 %v231
    %842 = vmatprep.subr.bf16.mxu0 %v236
    %843 = vmatpush1.bf16.msra.mxu0 %v235
    %844 = vmatprep.subr.bf16.mxu0 %v240
    %845 = vmatpush1.bf16.msra.mxu0 %v239
    %846 = vmatprep.subr.bf16.mxu0 0
    %847 = vmatpush1.bf16.msra.mxu0 0
    %848 = vmatprep.subr.bf16.mxu0 0
    %849 = vmatpush1.bf16.msra.mxu0 0
    %850 = vmatprep.subr.bf16.mxu0 0
    %851 = vmatpush1.bf16.msra.mxu0 0
    %852 = vmatprep.subr.bf16.mxu0 0
    %853 = vmatpush1.bf16.msra.mxu0 0
    %854 = vmatprep.subr.bf16.mxu0 0
    %855 = vmatpush1.bf16.msra.mxu0 0
    %856 = vmatprep.subr.bf16.mxu0 0
    %857 = vmatpush1.bf16.msra.mxu0 0
    %858 = vmatprep.subr.bf16.mxu0 0
    %859 = vmatpush1.bf16.msra.mxu0 0
    %860 = vmatprep.subr.bf16.mxu0 0
    %861 = vmatpush1.bf16.msra.mxu0 0
    %862 = vmatprep.mubr.bf16.mxu0 0
    %863 = vmatmul.mubr.bf16.gmra.mrb[0].mxu0 %v811
    %v864 = vpop.f32.mrb[0].mxu0
    %v865 = vadd.f32 0.0, %v864
    %v866 = vpop.f32.mrb[0].mxu0
    %v867 = vadd.f32 0.0, %v866
    %v868 = vpop.f32.mrb[0].mxu0
    %v869 = vpop.f32.mrb[0].mxu0
    %870 = vdwg.mxu0
    %871 = vmatprep.subr.bf16.mxu0 %v214
    %872 = vmatpush1.bf16.msra.mxu0 %v213
    %873 = vmatprep.subr.bf16.mxu0 %v218
    %874 = vmatpush1.bf16.msra.mxu0 %v217
    %875 = vmatprep.subr.bf16.mxu0 %v222
    %876 = vmatpush1.bf16.msra.mxu0 %v221
    %877 = vmatprep.subr.bf16.mxu0 %v226
    %878 = vmatpush1.bf16.msra.mxu0 %v225
    %879 = vmatprep.subr.bf16.mxu0 %v230
    %880 = vmatpush1.bf16.msra.mxu0 %v229
    %881 = vmatprep.subr.bf16.mxu0 %v234
    %882 = vmatpush1.bf16.msra.mxu0 %v233
    %883 = vmatprep.subr.bf16.mxu0 %v238
    %884 = vmatpush1.bf16.msra.mxu0 %v237
    %885 = vmatprep.subr.bf16.mxu0 %v242
    %886 = vmatpush1.bf16.msra.mxu0 %v241
    %887 = vmatprep.subr.bf16.mxu0 0
    %888 = vmatpush1.bf16.msra.mxu0 0
    %889 = vmatprep.subr.bf16.mxu0 0
    %890 = vmatpush1.bf16.msra.mxu0 0
    %891 = vmatprep.subr.bf16.mxu0 0
    %892 = vmatpush1.bf16.msra.mxu0 0
    %893 = vmatprep.subr.bf16.mxu0 0
    %894 = vmatpush1.bf16.msra.mxu0 0
    %895 = vmatprep.subr.bf16.mxu0 0
    %896 = vmatpush1.bf16.msra.mxu0 0
    %897 = vmatprep.subr.bf16.mxu0 0
    %898 = vmatpush1.bf16.msra.mxu0 0
    %899 = vmatprep.subr.bf16.mxu0 0
    %900 = vmatpush1.bf16.msra.mxu0 0
    %901 = vmatprep.subr.bf16.mxu0 0
    %902 = vmatpush1.bf16.msra.mxu0 0
    %903 = vmatprep.mubr.bf16.mxu0 0
    %904 = vmatmul.mubr.bf16.gmra.mrb[0].mxu0 %v811
    %v905 = vpop.f32.mrb[0].mxu0
    %v906 = vadd.f32 0.0, %v905
    %v907 = vpop.f32.mrb[0].mxu0
    %v908 = vadd.f32 0.0, %v907
    %v909 = vpop.f32.mrb[0].mxu0
    %v910 = vpop.f32.mrb[0].mxu0
    %911 = vdwg.mxu0
    %v920 = vunpack.c.l.b16 %v822
    %v921 = vunpack.c.l.b16 %v823
    %v922 = vunpack.c.l.b16 %v824
    %v923 = vunpack.c.l.b16 %v825
    %v924 = vunpack.c.l.b16 %v826
    %v925 = vunpack.c.l.b16 %v827
    %v926 = vunpack.c.l.b16 %v828
    %v927 = vunpack.c.l.b16 %v829
    %v928 = vrot.slane %v921, 7
    %v929 = vsel %vm374, %v928, %v920
    %v930 = vrot.slane %v922, 6
    %v931 = vsel %vm377, %v930, %v929
    %v932 = vrot.slane %v923, 5
    %v933 = vsel %vm380, %v932, %v931
    %v934 = vrot.slane %v924, 4
    %v935 = vsel %vm383, %v934, %v933
    %v936 = vrot.slane %v925, 3
    %v937 = vsel %vm386, %v936, %v935
    %v938 = vrot.slane %v926, 2
    %v939 = vsel %vm389, %v938, %v937
    %v940 = vrot.slane %v927, 1
    %v941 = vsel %vm392, %v940, %v939
    %v942 = vpack.c.b16 %v941, %v941
    %v944 = vsel %vm405, %v942, 0
    %946 = vmatprep.subr.bf16.mxu0 %v414
    %947 = vmatpush1.bf16.msra.mxu0 %v411
    %948 = vmatprep.subr.bf16.mxu0 0
    %949 = vmatpush1.bf16.msra.mxu0 0
    %950 = vmatprep.subr.bf16.mxu0 0
    %951 = vmatpush1.bf16.msra.mxu0 0
    %952 = vmatprep.subr.bf16.mxu0 0
    %953 = vmatpush1.bf16.msra.mxu0 0
    %954 = vmatprep.subr.bf16.mxu0 0
    %955 = vmatpush1.bf16.msra.mxu0 0
    %956 = vmatprep.subr.bf16.mxu0 0
    %957 = vmatpush1.bf16.msra.mxu0 0
    %958 = vmatprep.subr.bf16.mxu0 0
    %959 = vmatpush1.bf16.msra.mxu0 0
    %960 = vmatprep.subr.bf16.mxu0 0
    %961 = vmatpush1.bf16.msra.mxu0 0
    %962 = vmatprep.subr.bf16.mxu0 0
    %963 = vmatpush1.bf16.msra.mxu0 0
    %964 = vmatprep.subr.bf16.mxu0 0
    %965 = vmatpush1.bf16.msra.mxu0 0
    %966 = vmatprep.subr.bf16.mxu0 0
    %967 = vmatpush1.bf16.msra.mxu0 0
    %968 = vmatprep.subr.bf16.mxu0 0
    %969 = vmatpush1.bf16.msra.mxu0 0
    %970 = vmatprep.subr.bf16.mxu0 0
    %971 = vmatpush1.bf16.msra.mxu0 0
    %972 = vmatprep.subr.bf16.mxu0 0
    %973 = vmatpush1.bf16.msra.mxu0 0
    %974 = vmatprep.subr.bf16.mxu0 0
    %975 = vmatpush1.bf16.msra.mxu0 0
    %976 = vmatprep.subr.bf16.mxu0 0
    %977 = vmatpush1.bf16.msra.mxu0 0
    %978 = vmatprep.mubr.bf16.mxu0 0
    %979 = vmatmul.mubr.bf16.gmra.mrb[0].mxu0 %v944
    %v980 = vpop.f32.mrb[0].mxu0
    %v981 = vadd.f32 %v865, %v980
    %v982 = vpop.f32.mrb[0].mxu0
    %v983 = vadd.f32 %v867, %v982
    %v984 = vpop.f32.mrb[0].mxu0
    %v985 = vpop.f32.mrb[0].mxu0
    %986 = vdwg.mxu0
    %987 = vmatprep.subr.bf16.mxu0 %v420
    %988 = vmatpush1.bf16.msra.mxu0 %v417
    %989 = vmatprep.subr.bf16.mxu0 0
    %990 = vmatpush1.bf16.msra.mxu0 0
    %991 = vmatprep.subr.bf16.mxu0 0
    %992 = vmatpush1.bf16.msra.mxu0 0
    %993 = vmatprep.subr.bf16.mxu0 0
    %994 = vmatpush1.bf16.msra.mxu0 0
    %995 = vmatprep.subr.bf16.mxu0 0
    %996 = vmatpush1.bf16.msra.mxu0 0
    %997 = vmatprep.subr.bf16.mxu0 0
    %998 = vmatpush1.bf16.msra.mxu0 0
    %999 = vmatprep.subr.bf16.mxu0 0
    %1000 = vmatpush1.bf16.msra.mxu0 0
    %1001 = vmatprep.subr.bf16.mxu0 0
    %1002 = vmatpush1.bf16.msra.mxu0 0
    %1003 = vmatprep.subr.bf16.mxu0 0
    %1004 = vmatpush1.bf16.msra.mxu0 0
    %1005 = vmatprep.subr.bf16.mxu0 0
    %1006 = vmatpush1.bf16.msra.mxu0 0
    %1007 = vmatprep.subr.bf16.mxu0 0
    %1008 = vmatpush1.bf16.msra.mxu0 0
    %1009 = vmatprep.subr.bf16.mxu0 0
    %1010 = vmatpush1.bf16.msra.mxu0 0
    %1011 = vmatprep.subr.bf16.mxu0 0
    %1012 = vmatpush1.bf16.msra.mxu0 0
    %1013 = vmatprep.subr.bf16.mxu0 0
    %1014 = vmatpush1.bf16.msra.mxu0 0
    %1015 = vmatprep.subr.bf16.mxu0 0
    %1016 = vmatpush1.bf16.msra.mxu0 0
    %1017 = vmatprep.subr.bf16.mxu0 0
    %1018 = vmatpush1.bf16.msra.mxu0 0
    %1019 = vmatprep.mubr.bf16.mxu0 0
    %1020 = vmatmul.mubr.bf16.gmra.mrb[0].mxu0 %v944
    %v1021 = vpop.f32.mrb[0].mxu0
    %v1022 = vadd.f32 %v906, %v1021
    %v1023 = vpop.f32.mrb[0].mxu0
    %v1024 = vadd.f32 %v908, %v1023
    %v1025 = vpop.f32.mrb[0].mxu0
    %v1026 = vpop.f32.mrb[0].mxu0
    %1027 = vdwg.mxu0
    %v1028 = vadd.f32 %v981, %v508
    %v1029 = vadd.f32 %v983, %v512
    %v1030 = vadd.f32 %v1022, %v516
    %v1031 = vadd.f32 %v1024, %v520
    %v1032 = vxor.u32 %v1028, 2147483648
    %v1033 = vmul.f32 %v1032, 1.442695
    %v1034 = vpow.pop %v1033
    %v1035 = vadd.f32 %v1034, 1.0
    %v1036 = vrcp.pop %v1035
    %v1037 = vmul.f32 1.0, %v1036
    %v1038 = vxor.u32 %v1029, 2147483648
    %v1039 = vmul.f32 %v1038, 1.442695
    %v1040 = vpow.pop %v1039
    %v1041 = vadd.f32 %v1040, 1.0
    %v1042 = vrcp.pop %v1041
    %v1043 = vmul.f32 1.0, %v1042
    %v1044 = vtanh.pop %v1030
    %v1045 = vxor.u32 %v1031, 2147483648
    %v1046 = vmul.f32 %v1045, 1.442695
    %v1047 = vpow.pop %v1046
    %v1048 = vadd.f32 %v1047, 1.0
    %v1049 = vrcp.pop %v1048
    %v1050 = vmul.f32 1.0, %v1049
    %v1051 = vmul.f32 %v1043, %v809
    %v1052 = vmul.f32 %v1037, %v1044
    %v1053 = vadd.f32 %v1051, %v1052
    %v1054 = vtanh.pop %v1053
    %v1055 = vmul.f32 %v1050, %v1054
    %s1056 = sadd.s32 %s553, 2
    %p1057 = scmp.lt.s32.totalorder %s1056, 8
    %s1058 = scalar_select %p1057, 1, 0
    %v1059 = vstv %s1058
    %vm1060 = vcmp.eq.s32.totalorder %v1059, 1
    %v1061 = vsel %vm1060, %v1053, %v809
    %v1062 = vsel %vm1060, %v1055, %v810
    %v1063 = vpack.c.bf16 %v1062, %v1062
    %s1064 = scalar_lea.vmem %s4, 8
    %1065 = vst [vmem:[%s1064] sm:$0xf] %v1063
    %v1066 = vld [vmem:[%s0 + $0x3] sm:$0x1]
    %v1067 = vld [vmem:[%s0 + $0xb] sm:$0x1]
    %v1068 = vld [vmem:[%s0 + $0x13] sm:$0x1]
    %v1069 = vld [vmem:[%s0 + $0x1b] sm:$0x1]
    %v1070 = vld [vmem:[%s0 + $0x23] sm:$0x1]
    %v1071 = vld [vmem:[%s0 + $0x2b] sm:$0x1]
    %v1072 = vld [vmem:[%s0 + $0x33] sm:$0x1]
    %v1073 = vld [vmem:[%s0 + $0x3b] sm:$0x1]
    %v1074 = vpack.c.bf16 %v1066, %v1066
    %v1075 = vpack.c.bf16 %v1067, %v1067
    %v1076 = vpack.c.bf16 %v1068, %v1068
    %v1077 = vpack.c.bf16 %v1069, %v1069
    %v1078 = vpack.c.bf16 %v1070, %v1070
    %v1079 = vpack.c.bf16 %v1071, %v1071
    %v1080 = vpack.c.bf16 %v1072, %v1072
    %v1081 = vpack.c.bf16 %v1073, %v1073
    %1082 = vmatprep.subr.bf16.mxu0 %v212
    %1083 = vmatpush1.bf16.msra.mxu0 %v211
    %1084 = vmatprep.subr.bf16.mxu0 %v216
    %1085 = vmatpush1.bf16.msra.mxu0 %v215
    %1086 = vmatprep.subr.bf16.mxu0 %v220
    %1087 = vmatpush1.bf16.msra.mxu0 %v219
    %1088 = vmatprep.subr.bf16.mxu0 %v224
    %1089 = vmatpush1.bf16.msra.mxu0 %v223
    %1090 = vmatprep.subr.bf16.mxu0 %v228
    %1091 = vmatpush1.bf16.msra.mxu0 %v227
    %1092 = vmatprep.subr.bf16.mxu0 %v232
    %1093 = vmatpush1.bf16.msra.mxu0 %v231
    %1094 = vmatprep.subr.bf16.mxu0 %v236
    %1095 = vmatpush1.bf16.msra.mxu0 %v235
    %1096 = vmatprep.subr.bf16.mxu0 %v240
    %1097 = vmatpush1.bf16.msra.mxu0 %v239
    %1098 = vmatprep.subr.bf16.mxu0 0
    %1099 = vmatpush1.bf16.msra.mxu0 0
    %1100 = vmatprep.subr.bf16.mxu0 0
    %1101 = vmatpush1.bf16.msra.mxu0 0
    %1102 = vmatprep.subr.bf16.mxu0 0
    %1103 = vmatpush1.bf16.msra.mxu0 0
    %1104 = vmatprep.subr.bf16.mxu0 0
    %1105 = vmatpush1.bf16.msra.mxu0 0
    %1106 = vmatprep.subr.bf16.mxu0 0
    %1107 = vmatpush1.bf16.msra.mxu0 0
    %1108 = vmatprep.subr.bf16.mxu0 0
    %1109 = vmatpush1.bf16.msra.mxu0 0
    %1110 = vmatprep.subr.bf16.mxu0 0
    %1111 = vmatpush1.bf16.msra.mxu0 0
    %1112 = vmatprep.subr.bf16.mxu0 0
    %1113 = vmatpush1.bf16.msra.mxu0 0
    %1114 = vmatprep.mubr.bf16.mxu0 0
    %1115 = vmatmul.mubr.bf16.gmra.mrb[0].mxu0 %v1063
    %v1116 = vpop.f32.mrb[0].mxu0
    %v1117 = vadd.f32 0.0, %v1116
    %v1118 = vpop.f32.mrb[0].mxu0
    %v1119 = vadd.f32 0.0, %v1118
    %v1120 = vpop.f32.mrb[0].mxu0
    %v1121 = vpop.f32.mrb[0].mxu0
    %1122 = vdwg.mxu0
    %1123 = vmatprep.subr.bf16.mxu0 %v214
    %1124 = vmatpush1.bf16.msra.mxu0 %v213
    %1125 = vmatprep.subr.bf16.mxu0 %v218
    %1126 = vmatpush1.bf16.msra.mxu0 %v217
    %1127 = vmatprep.subr.bf16.mxu0 %v222
    %1128 = vmatpush1.bf16.msra.mxu0 %v221
    %1129 = vmatprep.subr.bf16.mxu0 %v226
    %1130 = vmatpush1.bf16.msra.mxu0 %v225
    %1131 = vmatprep.subr.bf16.mxu0 %v230
    %1132 = vmatpush1.bf16.msra.mxu0 %v229
    %1133 = vmatprep.subr.bf16.mxu0 %v234
    %1134 = vmatpush1.bf16.msra.mxu0 %v233
    %1135 = vmatprep.subr.bf16.mxu0 %v238
    %1136 = vmatpush1.bf16.msra.mxu0 %v237
    %1137 = vmatprep.subr.bf16.mxu0 %v242
    %1138 = vmatpush1.bf16.msra.mxu0 %v241
    %1139 = vmatprep.subr.bf16.mxu0 0
    %1140 = vmatpush1.bf16.msra.mxu0 0
    %1141 = vmatprep.subr.bf16.mxu0 0
    %1142 = vmatpush1.bf16.msra.mxu0 0
    %1143 = vmatprep.subr.bf16.mxu0 0
    %1144 = vmatpush1.bf16.msra.mxu0 0
    %1145 = vmatprep.subr.bf16.mxu0 0
    %1146 = vmatpush1.bf16.msra.mxu0 0
    %1147 = vmatprep.subr.bf16.mxu0 0
    %1148 = vmatpush1.bf16.msra.mxu0 0
    %1149 = vmatprep.subr.bf16.mxu0 0
    %1150 = vmatpush1.bf16.msra.mxu0 0
    %1151 = vmatprep.subr.bf16.mxu0 0
    %1152 = vmatpush1.bf16.msra.mxu0 0
    %1153 = vmatprep.subr.bf16.mxu0 0
    %1154 = vmatpush1.bf16.msra.mxu0 0
    %1155 = vmatprep.mubr.bf16.mxu0 0
    %1156 = vmatmul.mubr.bf16.gmra.mrb[0].mxu0 %v1063
    %v1157 = vpop.f32.mrb[0].mxu0
    %v1158 = vadd.f32 0.0, %v1157
    %v1159 = vpop.f32.mrb[0].mxu0
    %v1160 = vadd.f32 0.0, %v1159
    %v1161 = vpop.f32.mrb[0].mxu0
    %v1162 = vpop.f32.mrb[0].mxu0
    %1163 = vdwg.mxu0
    %v1172 = vunpack.c.l.b16 %v1074
    %v1173 = vunpack.c.l.b16 %v1075
    %v1174 = vunpack.c.l.b16 %v1076
    %v1175 = vunpack.c.l.b16 %v1077
    %v1176 = vunpack.c.l.b16 %v1078
    %v1177 = vunpack.c.l.b16 %v1079
    %v1178 = vunpack.c.l.b16 %v1080
    %v1179 = vunpack.c.l.b16 %v1081
    %v1180 = vrot.slane %v1173, 7
    %v1181 = vsel %vm374, %v1180, %v1172
    %v1182 = vrot.slane %v1174, 6
    %v1183 = vsel %vm377, %v1182, %v1181
    %v1184 = vrot.slane %v1175, 5
    %v1185 = vsel %vm380, %v1184, %v1183
    %v1186 = vrot.slane %v1176, 4
    %v1187 = vsel %vm383, %v1186, %v1185
    %v1188 = vrot.slane %v1177, 3
    %v1189 = vsel %vm386, %v1188, %v1187
    %v1190 = vrot.slane %v1178, 2
    %v1191 = vsel %vm389, %v1190, %v1189
    %v1192 = vrot.slane %v1179, 1
    %v1193 = vsel %vm392, %v1192, %v1191
    %v1194 = vpack.c.b16 %v1193, %v1193
    %v1196 = vsel %vm405, %v1194, 0
    %1198 = vmatprep.subr.bf16.mxu0 %v414
    %1199 = vmatpush1.bf16.msra.mxu0 %v411
    %1200 = vmatprep.subr.bf16.mxu0 0
    %1201 = vmatpush1.bf16.msra.mxu0 0
    %1202 = vmatprep.subr.bf16.mxu0 0
    %1203 = vmatpush1.bf16.msra.mxu0 0
    %1204 = vmatprep.subr.bf16.mxu0 0
    %1205 = vmatpush1.bf16.msra.mxu0 0
    %1206 = vmatprep.subr.bf16.mxu0 0
    %1207 = vmatpush1.bf16.msra.mxu0 0
    %1208 = vmatprep.subr.bf16.mxu0 0
    %1209 = vmatpush1.bf16.msra.mxu0 0
    %1210 = vmatprep.subr.bf16.mxu0 0
    %1211 = vmatpush1.bf16.msra.mxu0 0
    %1212 = vmatprep.subr.bf16.mxu0 0
    %1213 = vmatpush1.bf16.msra.mxu0 0
    %1214 = vmatprep.subr.bf16.mxu0 0
    %1215 = vmatpush1.bf16.msra.mxu0 0
    %1216 = vmatprep.subr.bf16.mxu0 0
    %1217 = vmatpush1.bf16.msra.mxu0 0
    %1218 = vmatprep.subr.bf16.mxu0 0
    %1219 = vmatpush1.bf16.msra.mxu0 0
    %1220 = vmatprep.subr.bf16.mxu0 0
    %1221 = vmatpush1.bf16.msra.mxu0 0
    %1222 = vmatprep.subr.bf16.mxu0 0
    %1223 = vmatpush1.bf16.msra.mxu0 0
    %1224 = vmatprep.subr.bf16.mxu0 0
    %1225 = vmatpush1.bf16.msra.mxu0 0
    %1226 = vmatprep.subr.bf16.mxu0 0
    %1227 = vmatpush1.bf16.msra.mxu0 0
    %1228 = vmatprep.subr.bf16.mxu0 0
    %1229 = vmatpush1.bf16.msra.mxu0 0
    %1230 = vmatprep.mubr.bf16.mxu0 0
    %1231 = vmatmul.mubr.bf16.gmra.mrb[0].mxu0 %v1196
    %v1232 = vpop.f32.mrb[0].mxu0
    %v1233 = vadd.f32 %v1117, %v1232
    %v1234 = vpop.f32.mrb[0].mxu0
    %v1235 = vadd.f32 %v1119, %v1234
    %v1236 = vpop.f32.mrb[0].mxu0
    %v1237 = vpop.f32.mrb[0].mxu0
    %1238 = vdwg.mxu0
    %1239 = vmatprep.subr.bf16.mxu0 %v420
    %1240 = vmatpush1.bf16.msra.mxu0 %v417
    %1241 = vmatprep.subr.bf16.mxu0 0
    %1242 = vmatpush1.bf16.msra.mxu0 0
    %1243 = vmatprep.subr.bf16.mxu0 0
    %1244 = vmatpush1.bf16.msra.mxu0 0
    %1245 = vmatprep.subr.bf16.mxu0 0
    %1246 = vmatpush1.bf16.msra.mxu0 0
    %1247 = vmatprep.subr.bf16.mxu0 0
    %1248 = vmatpush1.bf16.msra.mxu0 0
    %1249 = vmatprep.subr.bf16.mxu0 0
    %1250 = vmatpush1.bf16.msra.mxu0 0
    %1251 = vmatprep.subr.bf16.mxu0 0
    %1252 = vmatpush1.bf16.msra.mxu0 0
    %1253 = vmatprep.subr.bf16.mxu0 0
    %1254 = vmatpush1.bf16.msra.mxu0 0
    %1255 = vmatprep.subr.bf16.mxu0 0
    %1256 = vmatpush1.bf16.msra.mxu0 0
    %1257 = vmatprep.subr.bf16.mxu0 0
    %1258 = vmatpush1.bf16.msra.mxu0 0
    %1259 = vmatprep.subr.bf16.mxu0 0
    %1260 = vmatpush1.bf16.msra.mxu0 0
    %1261 = vmatprep.subr.bf16.mxu0 0
    %1262 = vmatpush1.bf16.msra.mxu0 0
    %1263 = vmatprep.subr.bf16.mxu0 0
    %1264 = vmatpush1.bf16.msra.mxu0 0
    %1265 = vmatprep.subr.bf16.mxu0 0
    %1266 = vmatpush1.bf16.msra.mxu0 0
    %1267 = vmatprep.subr.bf16.mxu0 0
    %1268 = vmatpush1.bf16.msra.mxu0 0
    %1269 = vmatprep.subr.bf16.mxu0 0
    %1270 = vmatpush1.bf16.msra.mxu0 0
    %1271 = vmatprep.mubr.bf16.mxu0 0
    %1272 = vmatmul.mubr.bf16.gmra.mrb[0].mxu0 %v1196
    %v1273 = vpop.f32.mrb[0].mxu0
    %v1274 = vadd.f32 %v1158, %v1273
    %v1275 = vpop.f32.mrb[0].mxu0
    %v1276 = vadd.f32 %v1160, %v1275
    %v1277 = vpop.f32.mrb[0].mxu0
    %v1278 = vpop.f32.mrb[0].mxu0
    %1279 = vdwg.mxu0
    %v1280 = vadd.f32 %v1233, %v508
    %v1281 = vadd.f32 %v1235, %v512
    %v1282 = vadd.f32 %v1274, %v516
    %v1283 = vadd.f32 %v1276, %v520
    %v1284 = vxor.u32 %v1280, 2147483648
    %v1285 = vmul.f32 %v1284, 1.442695
    %v1286 = vpow.pop %v1285
    %v1287 = vadd.f32 %v1286, 1.0
    %v1288 = vrcp.pop %v1287
    %v1289 = vmul.f32 1.0, %v1288
    %v1290 = vxor.u32 %v1281, 2147483648
    %v1291 = vmul.f32 %v1290, 1.442695
    %v1292 = vpow.pop %v1291
    %v1293 = vadd.f32 %v1292, 1.0
    %v1294 = vrcp.pop %v1293
    %v1295 = vmul.f32 1.0, %v1294
    %v1296 = vtanh.pop %v1282
    %v1297 = vxor.u32 %v1283, 2147483648
    %v1298 = vmul.f32 %v1297, 1.442695
    %v1299 = vpow.pop %v1298
    %v1300 = vadd.f32 %v1299, 1.0
    %v1301 = vrcp.pop %v1300
    %v1302 = vmul.f32 1.0, %v1301
    %v1303 = vmul.f32 %v1295, %v1061
    %v1304 = vmul.f32 %v1289, %v1296
    %v1305 = vadd.f32 %v1303, %v1304
    %v1306 = vtanh.pop %v1305
    %v1307 = vmul.f32 %v1302, %v1306
    %s1308 = sadd.s32 %s553, 3
    %p1309 = scmp.lt.s32.totalorder %s1308, 8
    %s1310 = scalar_select %p1309, 1, 0
    %v1311 = vstv %s1310
    %vm1312 = vcmp.eq.s32.totalorder %v1311, 1
    %v1313 = vsel %vm1312, %v1305, %v1061
    %v1314 = vsel %vm1312, %v1307, %v1062
    %v1315 = vpack.c.bf16 %v1314, %v1314
    %s1316 = scalar_lea.vmem %s4, 12
    %1317 = vst [vmem:[%s1316] sm:$0xf] %v1315
    %v1318 = vld [vmem:[%s0 + $0x4] sm:$0x1]
    %v1319 = vld [vmem:[%s0 + $0xc] sm:$0x1]
    %v1320 = vld [vmem:[%s0 + $0x14] sm:$0x1]
    %v1321 = vld [vmem:[%s0 + $0x1c] sm:$0x1]
    %v1322 = vld [vmem:[%s0 + $0x24] sm:$0x1]
    %v1323 = vld [vmem:[%s0 + $0x2c] sm:$0x1]
    %v1324 = vld [vmem:[%s0 + $0x34] sm:$0x1]
    %v1325 = vld [vmem:[%s0 + $0x3c] sm:$0x1]
    %v1326 = vpack.c.bf16 %v1318, %v1318
    %v1327 = vpack.c.bf16 %v1319, %v1319
    %v1328 = vpack.c.bf16 %v1320, %v1320
    %v1329 = vpack.c.bf16 %v1321, %v1321
    %v1330 = vpack.c.bf16 %v1322, %v1322
    %v1331 = vpack.c.bf16 %v1323, %v1323
    %v1332 = vpack.c.bf16 %v1324, %v1324
    %v1333 = vpack.c.bf16 %v1325, %v1325
    %1334 = vmatprep.subr.bf16.mxu0 %v212
    %1335 = vmatpush1.bf16.msra.mxu0 %v211
    %1336 = vmatprep.subr.bf16.mxu0 %v216
    %1337 = vmatpush1.bf16.msra.mxu0 %v215
    %1338 = vmatprep.subr.bf16.mxu0 %v220
    %1339 = vmatpush1.bf16.msra.mxu0 %v219
    %1340 = vmatprep.subr.bf16.mxu0 %v224
    %1341 = vmatpush1.bf16.msra.mxu0 %v223
    %1342 = vmatprep.subr.bf16.mxu0 %v228
    %1343 = vmatpush1.bf16.msra.mxu0 %v227
    %1344 = vmatprep.subr.bf16.mxu0 %v232
    %1345 = vmatpush1.bf16.msra.mxu0 %v231
    %1346 = vmatprep.subr.bf16.mxu0 %v236
    %1347 = vmatpush1.bf16.msra.mxu0 %v235
    %1348 = vmatprep.subr.bf16.mxu0 %v240
    %1349 = vmatpush1.bf16.msra.mxu0 %v239
    %1350 = vmatprep.subr.bf16.mxu0 0
    %1351 = vmatpush1.bf16.msra.mxu0 0
    %1352 = vmatprep.subr.bf16.mxu0 0
    %1353 = vmatpush1.bf16.msra.mxu0 0
    %1354 = vmatprep.subr.bf16.mxu0 0
    %1355 = vmatpush1.bf16.msra.mxu0 0
    %1356 = vmatprep.subr.bf16.mxu0 0
    %1357 = vmatpush1.bf16.msra.mxu0 0
    %1358 = vmatprep.subr.bf16.mxu0 0
    %1359 = vmatpush1.bf16.msra.mxu0 0
    %1360 = vmatprep.subr.bf16.mxu0 0
    %1361 = vmatpush1.bf16.msra.mxu0 0
    %1362 = vmatprep.subr.bf16.mxu0 0
    %1363 = vmatpush1.bf16.msra.mxu0 0
    %1364 = vmatprep.subr.bf16.mxu0 0
    %1365 = vmatpush1.bf16.msra.mxu0 0
    %1366 = vmatprep.mubr.bf16.mxu0 0
    %1367 = vmatmul.mubr.bf16.gmra.mrb[0].mxu0 %v1315
    %v1368 = vpop.f32.mrb[0].mxu0
    %v1369 = vadd.f32 0.0, %v1368
    %v1370 = vpop.f32.mrb[0].mxu0
    %v1371 = vadd.f32 0.0, %v1370
    %v1372 = vpop.f32.mrb[0].mxu0
    %v1373 = vpop.f32.mrb[0].mxu0
    %1374 = vdwg.mxu0
    %1375 = vmatprep.subr.bf16.mxu0 %v214
    %1376 = vmatpush1.bf16.msra.mxu0 %v213
    %1377 = vmatprep.subr.bf16.mxu0 %v218
    %1378 = vmatpush1.bf16.msra.mxu0 %v217
    %1379 = vmatprep.subr.bf16.mxu0 %v222
    %1380 = vmatpush1.bf16.msra.mxu0 %v221
    %1381 = vmatprep.subr.bf16.mxu0 %v226
    %1382 = vmatpush1.bf16.msra.mxu0 %v225
    %1383 = vmatprep.subr.bf16.mxu0 %v230
    %1384 = vmatpush1.bf16.msra.mxu0 %v229
    %1385 = vmatprep.subr.bf16.mxu0 %v234
    %1386 = vmatpush1.bf16.msra.mxu0 %v233
    %1387 = vmatprep.subr.bf16.mxu0 %v238
    %1388 = vmatpush1.bf16.msra.mxu0 %v237
    %1389 = vmatprep.subr.bf16.mxu0 %v242
    %1390 = vmatpush1.bf16.msra.mxu0 %v241
    %1391 = vmatprep.subr.bf16.mxu0 0
    %1392 = vmatpush1.bf16.msra.mxu0 0
    %1393 = vmatprep.subr.bf16.mxu0 0
    %1394 = vmatpush1.bf16.msra.mxu0 0
    %1395 = vmatprep.subr.bf16.mxu0 0
    %1396 = vmatpush1.bf16.msra.mxu0 0
    %1397 = vmatprep.subr.bf16.mxu0 0
    %1398 = vmatpush1.bf16.msra.mxu0 0
    %1399 = vmatprep.subr.bf16.mxu0 0
    %1400 = vmatpush1.bf16.msra.mxu0 0
    %1401 = vmatprep.subr.bf16.mxu0 0
    %1402 = vmatpush1.bf16.msra.mxu0 0
    %1403 = vmatprep.subr.bf16.mxu0 0
    %1404 = vmatpush1.bf16.msra.mxu0 0
    %1405 = vmatprep.subr.bf16.mxu0 0
    %1406 = vmatpush1.bf16.msra.mxu0 0
    %1407 = vmatprep.mubr.bf16.mxu0 0
    %1408 = vmatmul.mubr.bf16.gmra.mrb[0].mxu0 %v1315
    %v1409 = vpop.f32.mrb[0].mxu0
    %v1410 = vadd.f32 0.0, %v1409
    %v1411 = vpop.f32.mrb[0].mxu0
    %v1412 = vadd.f32 0.0, %v1411
    %v1413 = vpop.f32.mrb[0].mxu0
    %v1414 = vpop.f32.mrb[0].mxu0
    %1415 = vdwg.mxu0
    %v1424 = vunpack.c.l.b16 %v1326
    %v1425 = vunpack.c.l.b16 %v1327
    %v1426 = vunpack.c.l.b16 %v1328
    %v1427 = vunpack.c.l.b16 %v1329
    %v1428 = vunpack.c.l.b16 %v1330
    %v1429 = vunpack.c.l.b16 %v1331
    %v1430 = vunpack.c.l.b16 %v1332
    %v1431 = vunpack.c.l.b16 %v1333
    %v1432 = vrot.slane %v1425, 7
    %v1433 = vsel %vm374, %v1432, %v1424
    %v1434 = vrot.slane %v1426, 6
    %v1435 = vsel %vm377, %v1434, %v1433
    %v1436 = vrot.slane %v1427, 5
    %v1437 = vsel %vm380, %v1436, %v1435
    %v1438 = vrot.slane %v1428, 4
    %v1439 = vsel %vm383, %v1438, %v1437
    %v1440 = vrot.slane %v1429, 3
    %v1441 = vsel %vm386, %v1440, %v1439
    %v1442 = vrot.slane %v1430, 2
    %v1443 = vsel %vm389, %v1442, %v1441
    %v1444 = vrot.slane %v1431, 1
    %v1445 = vsel %vm392, %v1444, %v1443
    %v1446 = vpack.c.b16 %v1445, %v1445
    %v1448 = vsel %vm405, %v1446, 0
    %1450 = vmatprep.subr.bf16.mxu0 %v414
    %1451 = vmatpush1.bf16.msra.mxu0 %v411
    %1452 = vmatprep.subr.bf16.mxu0 0
    %1453 = vmatpush1.bf16.msra.mxu0 0
    %1454 = vmatprep.subr.bf16.mxu0 0
    %1455 = vmatpush1.bf16.msra.mxu0 0
    %1456 = vmatprep.subr.bf16.mxu0 0
    %1457 = vmatpush1.bf16.msra.mxu0 0
    %1458 = vmatprep.subr.bf16.mxu0 0
    %1459 = vmatpush1.bf16.msra.mxu0 0
    %1460 = vmatprep.subr.bf16.mxu0 0
    %1461 = vmatpush1.bf16.msra.mxu0 0
    %1462 = vmatprep.subr.bf16.mxu0 0
    %1463 = vmatpush1.bf16.msra.mxu0 0
    %1464 = vmatprep.subr.bf16.mxu0 0
    %1465 = vmatpush1.bf16.msra.mxu0 0
    %1466 = vmatprep.subr.bf16.mxu0 0
    %1467 = vmatpush1.bf16.msra.mxu0 0
    %1468 = vmatprep.subr.bf16.mxu0 0
    %1469 = vmatpush1.bf16.msra.mxu0 0
    %1470 = vmatprep.subr.bf16.mxu0 0
    %1471 = vmatpush1.bf16.msra.mxu0 0
    %1472 = vmatprep.subr.bf16.mxu0 0
    %1473 = vmatpush1.bf16.msra.mxu0 0
    %1474 = vmatprep.subr.bf16.mxu0 0
    %1475 = vmatpush1.bf16.msra.mxu0 0
    %1476 = vmatprep.subr.bf16.mxu0 0
    %1477 = vmatpush1.bf16.msra.mxu0 0
    %1478 = vmatprep.subr.bf16.mxu0 0
    %1479 = vmatpush1.bf16.msra.mxu0 0
    %1480 = vmatprep.subr.bf16.mxu0 0
    %1481 = vmatpush1.bf16.msra.mxu0 0
    %1482 = vmatprep.mubr.bf16.mxu0 0
    %1483 = vmatmul.mubr.bf16.gmra.mrb[0].mxu0 %v1448
    %v1484 = vpop.f32.mrb[0].mxu0
    %v1485 = vadd.f32 %v1369, %v1484
    %v1486 = vpop.f32.mrb[0].mxu0
    %v1487 = vadd.f32 %v1371, %v1486
    %v1488 = vpop.f32.mrb[0].mxu0
    %v1489 = vpop.f32.mrb[0].mxu0
    %1490 = vdwg.mxu0
    %1491 = vmatprep.subr.bf16.mxu0 %v420
    %1492 = vmatpush1.bf16.msra.mxu0 %v417
    %1493 = vmatprep.subr.bf16.mxu0 0
    %1494 = vmatpush1.bf16.msra.mxu0 0
    %1495 = vmatprep.subr.bf16.mxu0 0
    %1496 = vmatpush1.bf16.msra.mxu0 0
    %1497 = vmatprep.subr.bf16.mxu0 0
    %1498 = vmatpush1.bf16.msra.mxu0 0
    %1499 = vmatprep.subr.bf16.mxu0 0
    %1500 = vmatpush1.bf16.msra.mxu0 0
    %1501 = vmatprep.subr.bf16.mxu0 0
    %1502 = vmatpush1.bf16.msra.mxu0 0
    %1503 = vmatprep.subr.bf16.mxu0 0
    %1504 = vmatpush1.bf16.msra.mxu0 0
    %1505 = vmatprep.subr.bf16.mxu0 0
    %1506 = vmatpush1.bf16.msra.mxu0 0
    %1507 = vmatprep.subr.bf16.mxu0 0
    %1508 = vmatpush1.bf16.msra.mxu0 0
    %1509 = vmatprep.subr.bf16.mxu0 0
    %1510 = vmatpush1.bf16.msra.mxu0 0
    %1511 = vmatprep.subr.bf16.mxu0 0
    %1512 = vmatpush1.bf16.msra.mxu0 0
    %1513 = vmatprep.subr.bf16.mxu0 0
    %1514 = vmatpush1.bf16.msra.mxu0 0
    %1515 = vmatprep.subr.bf16.mxu0 0
    %1516 = vmatpush1.bf16.msra.mxu0 0
    %1517 = vmatprep.subr.bf16.mxu0 0
    %1518 = vmatpush1.bf16.msra.mxu0 0
    %1519 = vmatprep.subr.bf16.mxu0 0
    %1520 = vmatpush1.bf16.msra.mxu0 0
    %1521 = vmatprep.subr.bf16.mxu0 0
    %1522 = vmatpush1.bf16.msra.mxu0 0
    %1523 = vmatprep.mubr.bf16.mxu0 0
    %1524 = vmatmul.mubr.bf16.gmra.mrb[0].mxu0 %v1448
    %v1525 = vpop.f32.mrb[0].mxu0
    %v1526 = vadd.f32 %v1410, %v1525
    %v1527 = vpop.f32.mrb[0].mxu0
    %v1528 = vadd.f32 %v1412, %v1527
    %v1529 = vpop.f32.mrb[0].mxu0
    %v1530 = vpop.f32.mrb[0].mxu0
    %1531 = vdwg.mxu0
    %v1532 = vadd.f32 %v1485, %v508
    %v1533 = vadd.f32 %v1487, %v512
    %v1534 = vadd.f32 %v1526, %v516
    %v1535 = vadd.f32 %v1528, %v520
    %v1536 = vxor.u32 %v1532, 2147483648
    %v1537 = vmul.f32 %v1536, 1.442695
    %v1538 = vpow.pop %v1537
    %v1539 = vadd.f32 %v1538, 1.0
    %v1540 = vrcp.pop %v1539
    %v1541 = vmul.f32 1.0, %v1540
    %v1542 = vxor.u32 %v1533, 2147483648
    %v1543 = vmul.f32 %v1542, 1.442695
    %v1544 = vpow.pop %v1543
    %v1545 = vadd.f32 %v1544, 1.0
    %v1546 = vrcp.pop %v1545
    %v1547 = vmul.f32 1.0, %v1546
    %v1548 = vtanh.pop %v1534
    %v1549 = vxor.u32 %v1535, 2147483648
    %v1550 = vmul.f32 %v1549, 1.442695
    %v1551 = vpow.pop %v1550
    %v1552 = vadd.f32 %v1551, 1.0
    %v1553 = vrcp.pop %v1552
    %v1554 = vmul.f32 1.0, %v1553
    %v1555 = vmul.f32 %v1547, %v1313
    %v1556 = vmul.f32 %v1541, %v1548
    %v1557 = vadd.f32 %v1555, %v1556
    %v1558 = vtanh.pop %v1557
    %v1559 = vmul.f32 %v1554, %v1558
    %s1560 = sadd.s32 %s553, 4
    %p1561 = scmp.lt.s32.totalorder %s1560, 8
    %s1562 = scalar_select %p1561, 1, 0
    %v1563 = vstv %s1562
    %vm1564 = vcmp.eq.s32.totalorder %v1563, 1
    %v1565 = vsel %vm1564, %v1557, %v1313
    %v1566 = vsel %vm1564, %v1559, %v1314
    %v1567 = vpack.c.bf16 %v1566, %v1566
    %s1568 = scalar_lea.vmem %s4, 16
    %1569 = vst [vmem:[%s1568] sm:$0xf] %v1567
    %v1570 = vld [vmem:[%s0 + $0x5] sm:$0x1]
    %v1571 = vld [vmem:[%s0 + $0xd] sm:$0x1]
    %v1572 = vld [vmem:[%s0 + $0x15] sm:$0x1]
    %v1573 = vld [vmem:[%s0 + $0x1d] sm:$0x1]
    %v1574 = vld [vmem:[%s0 + $0x25] sm:$0x1]
    %v1575 = vld [vmem:[%s0 + $0x2d] sm:$0x1]
    %v1576 = vld [vmem:[%s0 + $0x35] sm:$0x1]
    %v1577 = vld [vmem:[%s0 + $0x3d] sm:$0x1]
    %v1578 = vpack.c.bf16 %v1570, %v1570
    %v1579 = vpack.c.bf16 %v1571, %v1571
    %v1580 = vpack.c.bf16 %v1572, %v1572
    %v1581 = vpack.c.bf16 %v1573, %v1573
    %v1582 = vpack.c.bf16 %v1574, %v1574
    %v1583 = vpack.c.bf16 %v1575, %v1575
    %v1584 = vpack.c.bf16 %v1576, %v1576
    %v1585 = vpack.c.bf16 %v1577, %v1577
    %1586 = vmatprep.subr.bf16.mxu0 %v212
    %1587 = vmatpush1.bf16.msra.mxu0 %v211
    %1588 = vmatprep.subr.bf16.mxu0 %v216
    %1589 = vmatpush1.bf16.msra.mxu0 %v215
    %1590 = vmatprep.subr.bf16.mxu0 %v220
    %1591 = vmatpush1.bf16.msra.mxu0 %v219
    %1592 = vmatprep.subr.bf16.mxu0 %v224
    %1593 = vmatpush1.bf16.msra.mxu0 %v223
    %1594 = vmatprep.subr.bf16.mxu0 %v228
    %1595 = vmatpush1.bf16.msra.mxu0 %v227
    %1596 = vmatprep.subr.bf16.mxu0 %v232
    %1597 = vmatpush1.bf16.msra.mxu0 %v231
    %1598 = vmatprep.subr.bf16.mxu0 %v236
    %1599 = vmatpush1.bf16.msra.mxu0 %v235
    %1600 = vmatprep.subr.bf16.mxu0 %v240
    %1601 = vmatpush1.bf16.msra.mxu0 %v239
    %1602 = vmatprep.subr.bf16.mxu0 0
    %1603 = vmatpush1.bf16.msra.mxu0 0
    %1604 = vmatprep.subr.bf16.mxu0 0
    %1605 = vmatpush1.bf16.msra.mxu0 0
    %1606 = vmatprep.subr.bf16.mxu0 0
    %1607 = vmatpush1.bf16.msra.mxu0 0
    %1608 = vmatprep.subr.bf16.mxu0 0
    %1609 = vmatpush1.bf16.msra.mxu0 0
    %1610 = vmatprep.subr.bf16.mxu0 0
    %1611 = vmatpush1.bf16.msra.mxu0 0
    %1612 = vmatprep.subr.bf16.mxu0 0
    %1613 = vmatpush1.bf16.msra.mxu0 0
    %1614 = vmatprep.subr.bf16.mxu0 0
    %1615 = vmatpush1.bf16.msra.mxu0 0
    %1616 = vmatprep.subr.bf16.mxu0 0
    %1617 = vmatpush1.bf16.msra.mxu0 0
    %1618 = vmatprep.mubr.bf16.mxu0 0
    %1619 = vmatmul.mubr.bf16.gmra.mrb[0].mxu0 %v1567
    %v1620 = vpop.f32.mrb[0].mxu0
    %v1621 = vadd.f32 0.0, %v1620
    %v1622 = vpop.f32.mrb[0].mxu0
    %v1623 = vadd.f32 0.0, %v1622
    %v1624 = vpop.f32.mrb[0].mxu0
    %v1625 = vpop.f32.mrb[0].mxu0
    %1626 = vdwg.mxu0
    %1627 = vmatprep.subr.bf16.mxu0 %v214
    %1628 = vmatpush1.bf16.msra.mxu0 %v213
    %1629 = vmatprep.subr.bf16.mxu0 %v218
    %1630 = vmatpush1.bf16.msra.mxu0 %v217
    %1631 = vmatprep.subr.bf16.mxu0 %v222
    %1632 = vmatpush1.bf16.msra.mxu0 %v221
    %1633 = vmatprep.subr.bf16.mxu0 %v226
    %1634 = vmatpush1.bf16.msra.mxu0 %v225
    %1635 = vmatprep.subr.bf16.mxu0 %v230
    %1636 = vmatpush1.bf16.msra.mxu0 %v229
    %1637 = vmatprep.subr.bf16.mxu0 %v234
    %1638 = vmatpush1.bf16.msra.mxu0 %v233
    %1639 = vmatprep.subr.bf16.mxu0 %v238
    %1640 = vmatpush1.bf16.msra.mxu0 %v237
    %1641 = vmatprep.subr.bf16.mxu0 %v242
    %1642 = vmatpush1.bf16.msra.mxu0 %v241
    %1643 = vmatprep.subr.bf16.mxu0 0
    %1644 = vmatpush1.bf16.msra.mxu0 0
    %1645 = vmatprep.subr.bf16.mxu0 0
    %1646 = vmatpush1.bf16.msra.mxu0 0
    %1647 = vmatprep.subr.bf16.mxu0 0
    %1648 = vmatpush1.bf16.msra.mxu0 0
    %1649 = vmatprep.subr.bf16.mxu0 0
    %1650 = vmatpush1.bf16.msra.mxu0 0
    %1651 = vmatprep.subr.bf16.mxu0 0
    %1652 = vmatpush1.bf16.msra.mxu0 0
    %1653 = vmatprep.subr.bf16.mxu0 0
    %1654 = vmatpush1.bf16.msra.mxu0 0
    %1655 = vmatprep.subr.bf16.mxu0 0
    %1656 = vmatpush1.bf16.msra.mxu0 0
    %1657 = vmatprep.subr.bf16.mxu0 0
    %1658 = vmatpush1.bf16.msra.mxu0 0
    %1659 = vmatprep.mubr.bf16.mxu0 0
    %1660 = vmatmul.mubr.bf16.gmra.mrb[0].mxu0 %v1567
    %v1661 = vpop.f32.mrb[0].mxu0
    %v1662 = vadd.f32 0.0, %v1661
    %v1663 = vpop.f32.mrb[0].mxu0
    %v1664 = vadd.f32 0.0, %v1663
    %v1665 = vpop.f32.mrb[0].mxu0
    %v1666 = vpop.f32.mrb[0].mxu0
    %1667 = vdwg.mxu0
    %v1676 = vunpack.c.l.b16 %v1578
    %v1677 = vunpack.c.l.b16 %v1579
    %v1678 = vunpack.c.l.b16 %v1580
    %v1679 = vunpack.c.l.b16 %v1581
    %v1680 = vunpack.c.l.b16 %v1582
    %v1681 = vunpack.c.l.b16 %v1583
    %v1682 = vunpack.c.l.b16 %v1584
    %v1683 = vunpack.c.l.b16 %v1585
    %v1684 = vrot.slane %v1677, 7
    %v1685 = vsel %vm374, %v1684, %v1676
    %v1686 = vrot.slane %v1678, 6
    %v1687 = vsel %vm377, %v1686, %v1685
    %v1688 = vrot.slane %v1679, 5
    %v1689 = vsel %vm380, %v1688, %v1687
    %v1690 = vrot.slane %v1680, 4
    %v1691 = vsel %vm383, %v1690, %v1689
    %v1692 = vrot.slane %v1681, 3
    %v1693 = vsel %vm386, %v1692, %v1691
    %v1694 = vrot.slane %v1682, 2
    %v1695 = vsel %vm389, %v1694, %v1693
    %v1696 = vrot.slane %v1683, 1
    %v1697 = vsel %vm392, %v1696, %v1695
    %v1698 = vpack.c.b16 %v1697, %v1697
    %v1700 = vsel %vm405, %v1698, 0
    %1702 = vmatprep.subr.bf16.mxu0 %v414
    %1703 = vmatpush1.bf16.msra.mxu0 %v411
    %1704 = vmatprep.subr.bf16.mxu0 0
    %1705 = vmatpush1.bf16.msra.mxu0 0
    %1706 = vmatprep.subr.bf16.mxu0 0
    %1707 = vmatpush1.bf16.msra.mxu0 0
    %1708 = vmatprep.subr.bf16.mxu0 0
    %1709 = vmatpush1.bf16.msra.mxu0 0
    %1710 = vmatprep.subr.bf16.mxu0 0
    %1711 = vmatpush1.bf16.msra.mxu0 0
    %1712 = vmatprep.subr.bf16.mxu0 0
    %1713 = vmatpush1.bf16.msra.mxu0 0
    %1714 = vmatprep.subr.bf16.mxu0 0
    %1715 = vmatpush1.bf16.msra.mxu0 0
    %1716 = vmatprep.subr.bf16.mxu0 0
    %1717 = vmatpush1.bf16.msra.mxu0 0
    %1718 = vmatprep.subr.bf16.mxu0 0
    %1719 = vmatpush1.bf16.msra.mxu0 0
    %1720 = vmatprep.subr.bf16.mxu0 0
    %1721 = vmatpush1.bf16.msra.mxu0 0
    %1722 = vmatprep.subr.bf16.mxu0 0
    %1723 = vmatpush1.bf16.msra.mxu0 0
    %1724 = vmatprep.subr.bf16.mxu0 0
    %1725 = vmatpush1.bf16.msra.mxu0 0
    %1726 = vmatprep.subr.bf16.mxu0 0
    %1727 = vmatpush1.bf16.msra.mxu0 0
    %1728 = vmatprep.subr.bf16.mxu0 0
    %1729 = vmatpush1.bf16.msra.mxu0 0
    %1730 = vmatprep.subr.bf16.mxu0 0
    %1731 = vmatpush1.bf16.msra.mxu0 0
    %1732 = vmatprep.subr.bf16.mxu0 0
    %1733 = vmatpush1.bf16.msra.mxu0 0
    %1734 = vmatprep.mubr.bf16.mxu0 0
    %1735 = vmatmul.mubr.bf16.gmra.mrb[0].mxu0 %v1700
    %v1736 = vpop.f32.mrb[0].mxu0
    %v1737 = vadd.f32 %v1621, %v1736
    %v1738 = vpop.f32.mrb[0].mxu0
    %v1739 = vadd.f32 %v1623, %v1738
    %v1740 = vpop.f32.mrb[0].mxu0
    %v1741 = vpop.f32.mrb[0].mxu0
    %1742 = vdwg.mxu0
    %1743 = vmatprep.subr.bf16.mxu0 %v420
    %1744 = vmatpush1.bf16.msra.mxu0 %v417
    %1745 = vmatprep.subr.bf16.mxu0 0
    %1746 = vmatpush1.bf16.msra.mxu0 0
    %1747 = vmatprep.subr.bf16.mxu0 0
    %1748 = vmatpush1.bf16.msra.mxu0 0
    %1749 = vmatprep.subr.bf16.mxu0 0
    %1750 = vmatpush1.bf16.msra.mxu0 0
    %1751 = vmatprep.subr.bf16.mxu0 0
    %1752 = vmatpush1.bf16.msra.mxu0 0
    %1753 = vmatprep.subr.bf16.mxu0 0
    %1754 = vmatpush1.bf16.msra.mxu0 0
    %1755 = vmatprep.subr.bf16.mxu0 0
    %1756 = vmatpush1.bf16.msra.mxu0 0
    %1757 = vmatprep.subr.bf16.mxu0 0
    %1758 = vmatpush1.bf16.msra.mxu0 0
    %1759 = vmatprep.subr.bf16.mxu0 0
    %1760 = vmatpush1.bf16.msra.mxu0 0
    %1761 = vmatprep.subr.bf16.mxu0 0
    %1762 = vmatpush1.bf16.msra.mxu0 0
    %1763 = vmatprep.subr.bf16.mxu0 0
    %1764 = vmatpush1.bf16.msra.mxu0 0
    %1765 = vmatprep.subr.bf16.mxu0 0
    %1766 = vmatpush1.bf16.msra.mxu0 0
    %1767 = vmatprep.subr.bf16.mxu0 0
    %1768 = vmatpush1.bf16.msra.mxu0 0
    %1769 = vmatprep.subr.bf16.mxu0 0
    %1770 = vmatpush1.bf16.msra.mxu0 0
    %1771 = vmatprep.subr.bf16.mxu0 0
    %1772 = vmatpush1.bf16.msra.mxu0 0
    %1773 = vmatprep.subr.bf16.mxu0 0
    %1774 = vmatpush1.bf16.msra.mxu0 0
    %1775 = vmatprep.mubr.bf16.mxu0 0
    %1776 = vmatmul.mubr.bf16.gmra.mrb[0].mxu0 %v1700
    %v1777 = vpop.f32.mrb[0].mxu0
    %v1778 = vadd.f32 %v1662, %v1777
    %v1779 = vpop.f32.mrb[0].mxu0
    %v1780 = vadd.f32 %v1664, %v1779
    %v1781 = vpop.f32.mrb[0].mxu0
    %v1782 = vpop.f32.mrb[0].mxu0
    %1783 = vdwg.mxu0
    %v1784 = vadd.f32 %v1737, %v508
    %v1785 = vadd.f32 %v1739, %v512
    %v1786 = vadd.f32 %v1778, %v516
    %v1787 = vadd.f32 %v1780, %v520
    %v1788 = vxor.u32 %v1784, 2147483648
    %v1789 = vmul.f32 %v1788, 1.442695
    %v1790 = vpow.pop %v1789
    %v1791 = vadd.f32 %v1790, 1.0
    %v1792 = vrcp.pop %v1791
    %v1793 = vmul.f32 1.0, %v1792
    %v1794 = vxor.u32 %v1785, 2147483648
    %v1795 = vmul.f32 %v1794, 1.442695
    %v1796 = vpow.pop %v1795
    %v1797 = vadd.f32 %v1796, 1.0
    %v1798 = vrcp.pop %v1797
    %v1799 = vmul.f32 1.0, %v1798
    %v1800 = vtanh.pop %v1786
    %v1801 = vxor.u32 %v1787, 2147483648
    %v1802 = vmul.f32 %v1801, 1.442695
    %v1803 = vpow.pop %v1802
    %v1804 = vadd.f32 %v1803, 1.0
    %v1805 = vrcp.pop %v1804
    %v1806 = vmul.f32 1.0, %v1805
    %v1807 = vmul.f32 %v1799, %v1565
    %v1808 = vmul.f32 %v1793, %v1800
    %v1809 = vadd.f32 %v1807, %v1808
    %v1810 = vtanh.pop %v1809
    %v1811 = vmul.f32 %v1806, %v1810
    %s1812 = sadd.s32 %s553, 5
    %p1813 = scmp.lt.s32.totalorder %s1812, 8
    %s1814 = scalar_select %p1813, 1, 0
    %v1815 = vstv %s1814
    %vm1816 = vcmp.eq.s32.totalorder %v1815, 1
    %v1817 = vsel %vm1816, %v1809, %v1565
    %v1818 = vsel %vm1816, %v1811, %v1566
    %v1819 = vpack.c.bf16 %v1818, %v1818
    %s1820 = scalar_lea.vmem %s4, 20
    %1821 = vst [vmem:[%s1820] sm:$0xf] %v1819
    %v1822 = vld [vmem:[%s0 + $0x6] sm:$0x1]
    %v1823 = vld [vmem:[%s0 + $0xe] sm:$0x1]
    %v1824 = vld [vmem:[%s0 + $0x16] sm:$0x1]
    %v1825 = vld [vmem:[%s0 + $0x1e] sm:$0x1]
    %v1826 = vld [vmem:[%s0 + $0x26] sm:$0x1]
    %v1827 = vld [vmem:[%s0 + $0x2e] sm:$0x1]
    %v1828 = vld [vmem:[%s0 + $0x36] sm:$0x1]
    %v1829 = vld [vmem:[%s0 + $0x3e] sm:$0x1]
    %v1830 = vpack.c.bf16 %v1822, %v1822
    %v1831 = vpack.c.bf16 %v1823, %v1823
    %v1832 = vpack.c.bf16 %v1824, %v1824
    %v1833 = vpack.c.bf16 %v1825, %v1825
    %v1834 = vpack.c.bf16 %v1826, %v1826
    %v1835 = vpack.c.bf16 %v1827, %v1827
    %v1836 = vpack.c.bf16 %v1828, %v1828
    %v1837 = vpack.c.bf16 %v1829, %v1829
    %1838 = vmatprep.subr.bf16.mxu0 %v212
    %1839 = vmatpush1.bf16.msra.mxu0 %v211
    %1840 = vmatprep.subr.bf16.mxu0 %v216
    %1841 = vmatpush1.bf16.msra.mxu0 %v215
    %1842 = vmatprep.subr.bf16.mxu0 %v220
    %1843 = vmatpush1.bf16.msra.mxu0 %v219
    %1844 = vmatprep.subr.bf16.mxu0 %v224
    %1845 = vmatpush1.bf16.msra.mxu0 %v223
    %1846 = vmatprep.subr.bf16.mxu0 %v228
    %1847 = vmatpush1.bf16.msra.mxu0 %v227
    %1848 = vmatprep.subr.bf16.mxu0 %v232
    %1849 = vmatpush1.bf16.msra.mxu0 %v231
    %1850 = vmatprep.subr.bf16.mxu0 %v236
    %1851 = vmatpush1.bf16.msra.mxu0 %v235
    %1852 = vmatprep.subr.bf16.mxu0 %v240
    %1853 = vmatpush1.bf16.msra.mxu0 %v239
    %1854 = vmatprep.subr.bf16.mxu0 0
    %1855 = vmatpush1.bf16.msra.mxu0 0
    %1856 = vmatprep.subr.bf16.mxu0 0
    %1857 = vmatpush1.bf16.msra.mxu0 0
    %1858 = vmatprep.subr.bf16.mxu0 0
    %1859 = vmatpush1.bf16.msra.mxu0 0
    %1860 = vmatprep.subr.bf16.mxu0 0
    %1861 = vmatpush1.bf16.msra.mxu0 0
    %1862 = vmatprep.subr.bf16.mxu0 0
    %1863 = vmatpush1.bf16.msra.mxu0 0
    %1864 = vmatprep.subr.bf16.mxu0 0
    %1865 = vmatpush1.bf16.msra.mxu0 0
    %1866 = vmatprep.subr.bf16.mxu0 0
    %1867 = vmatpush1.bf16.msra.mxu0 0
    %1868 = vmatprep.subr.bf16.mxu0 0
    %1869 = vmatpush1.bf16.msra.mxu0 0
    %1870 = vmatprep.mubr.bf16.mxu0 0
    %1871 = vmatmul.mubr.bf16.gmra.mrb[0].mxu0 %v1819
    %v1872 = vpop.f32.mrb[0].mxu0
    %v1873 = vadd.f32 0.0, %v1872
    %v1874 = vpop.f32.mrb[0].mxu0
    %v1875 = vadd.f32 0.0, %v1874
    %v1876 = vpop.f32.mrb[0].mxu0
    %v1877 = vpop.f32.mrb[0].mxu0
    %1878 = vdwg.mxu0
    %1879 = vmatprep.subr.bf16.mxu0 %v214
    %1880 = vmatpush1.bf16.msra.mxu0 %v213
    %1881 = vmatprep.subr.bf16.mxu0 %v218
    %1882 = vmatpush1.bf16.msra.mxu0 %v217
    %1883 = vmatprep.subr.bf16.mxu0 %v222
    %1884 = vmatpush1.bf16.msra.mxu0 %v221
    %1885 = vmatprep.subr.bf16.mxu0 %v226
    %1886 = vmatpush1.bf16.msra.mxu0 %v225
    %1887 = vmatprep.subr.bf16.mxu0 %v230
    %1888 = vmatpush1.bf16.msra.mxu0 %v229
    %1889 = vmatprep.subr.bf16.mxu0 %v234
    %1890 = vmatpush1.bf16.msra.mxu0 %v233
    %1891 = vmatprep.subr.bf16.mxu0 %v238
    %1892 = vmatpush1.bf16.msra.mxu0 %v237
    %1893 = vmatprep.subr.bf16.mxu0 %v242
    %1894 = vmatpush1.bf16.msra.mxu0 %v241
    %1895 = vmatprep.subr.bf16.mxu0 0
    %1896 = vmatpush1.bf16.msra.mxu0 0
    %1897 = vmatprep.subr.bf16.mxu0 0
    %1898 = vmatpush1.bf16.msra.mxu0 0
    %1899 = vmatprep.subr.bf16.mxu0 0
    %1900 = vmatpush1.bf16.msra.mxu0 0
    %1901 = vmatprep.subr.bf16.mxu0 0
    %1902 = vmatpush1.bf16.msra.mxu0 0
    %1903 = vmatprep.subr.bf16.mxu0 0
    %1904 = vmatpush1.bf16.msra.mxu0 0
    %1905 = vmatprep.subr.bf16.mxu0 0
    %1906 = vmatpush1.bf16.msra.mxu0 0
    %1907 = vmatprep.subr.bf16.mxu0 0
    %1908 = vmatpush1.bf16.msra.mxu0 0
    %1909 = vmatprep.subr.bf16.mxu0 0
    %1910 = vmatpush1.bf16.msra.mxu0 0
    %1911 = vmatprep.mubr.bf16.mxu0 0
    %1912 = vmatmul.mubr.bf16.gmra.mrb[0].mxu0 %v1819
    %v1913 = vpop.f32.mrb[0].mxu0
    %v1914 = vadd.f32 0.0, %v1913
    %v1915 = vpop.f32.mrb[0].mxu0
    %v1916 = vadd.f32 0.0, %v1915
    %v1917 = vpop.f32.mrb[0].mxu0
    %v1918 = vpop.f32.mrb[0].mxu0
    %1919 = vdwg.mxu0
    %v1928 = vunpack.c.l.b16 %v1830
    %v1929 = vunpack.c.l.b16 %v1831
    %v1930 = vunpack.c.l.b16 %v1832
    %v1931 = vunpack.c.l.b16 %v1833
    %v1932 = vunpack.c.l.b16 %v1834
    %v1933 = vunpack.c.l.b16 %v1835
    %v1934 = vunpack.c.l.b16 %v1836
    %v1935 = vunpack.c.l.b16 %v1837
    %v1936 = vrot.slane %v1929, 7
    %v1937 = vsel %vm374, %v1936, %v1928
    %v1938 = vrot.slane %v1930, 6
    %v1939 = vsel %vm377, %v1938, %v1937
    %v1940 = vrot.slane %v1931, 5
    %v1941 = vsel %vm380, %v1940, %v1939
    %v1942 = vrot.slane %v1932, 4
    %v1943 = vsel %vm383, %v1942, %v1941
    %v1944 = vrot.slane %v1933, 3
    %v1945 = vsel %vm386, %v1944, %v1943
    %v1946 = vrot.slane %v1934, 2
    %v1947 = vsel %vm389, %v1946, %v1945
    %v1948 = vrot.slane %v1935, 1
    %v1949 = vsel %vm392, %v1948, %v1947
    %v1950 = vpack.c.b16 %v1949, %v1949
    %v1952 = vsel %vm405, %v1950, 0
    %1954 = vmatprep.subr.bf16.mxu0 %v414
    %1955 = vmatpush1.bf16.msra.mxu0 %v411
    %1956 = vmatprep.subr.bf16.mxu0 0
    %1957 = vmatpush1.bf16.msra.mxu0 0
    %1958 = vmatprep.subr.bf16.mxu0 0
    %1959 = vmatpush1.bf16.msra.mxu0 0
    %1960 = vmatprep.subr.bf16.mxu0 0
    %1961 = vmatpush1.bf16.msra.mxu0 0
    %1962 = vmatprep.subr.bf16.mxu0 0
    %1963 = vmatpush1.bf16.msra.mxu0 0
    %1964 = vmatprep.subr.bf16.mxu0 0
    %1965 = vmatpush1.bf16.msra.mxu0 0
    %1966 = vmatprep.subr.bf16.mxu0 0
    %1967 = vmatpush1.bf16.msra.mxu0 0
    %1968 = vmatprep.subr.bf16.mxu0 0
    %1969 = vmatpush1.bf16.msra.mxu0 0
    %1970 = vmatprep.subr.bf16.mxu0 0
    %1971 = vmatpush1.bf16.msra.mxu0 0
    %1972 = vmatprep.subr.bf16.mxu0 0
    %1973 = vmatpush1.bf16.msra.mxu0 0
    %1974 = vmatprep.subr.bf16.mxu0 0
    %1975 = vmatpush1.bf16.msra.mxu0 0
    %1976 = vmatprep.subr.bf16.mxu0 0
    %1977 = vmatpush1.bf16.msra.mxu0 0
    %1978 = vmatprep.subr.bf16.mxu0 0
    %1979 = vmatpush1.bf16.msra.mxu0 0
    %1980 = vmatprep.subr.bf16.mxu0 0
    %1981 = vmatpush1.bf16.msra.mxu0 0
    %1982 = vmatprep.subr.bf16.mxu0 0
    %1983 = vmatpush1.bf16.msra.mxu0 0
    %1984 = vmatprep.subr.bf16.mxu0 0
    %1985 = vmatpush1.bf16.msra.mxu0 0
    %1986 = vmatprep.mubr.bf16.mxu0 0
    %1987 = vmatmul.mubr.bf16.gmra.mrb[0].mxu0 %v1952
    %v1988 = vpop.f32.mrb[0].mxu0
    %v1989 = vadd.f32 %v1873, %v1988
    %v1990 = vpop.f32.mrb[0].mxu0
    %v1991 = vadd.f32 %v1875, %v1990
    %v1992 = vpop.f32.mrb[0].mxu0
    %v1993 = vpop.f32.mrb[0].mxu0
    %1994 = vdwg.mxu0
    %1995 = vmatprep.subr.bf16.mxu0 %v420
    %1996 = vmatpush1.bf16.msra.mxu0 %v417
    %1997 = vmatprep.subr.bf16.mxu0 0
    %1998 = vmatpush1.bf16.msra.mxu0 0
    %1999 = vmatprep.subr.bf16.mxu0 0
    %2000 = vmatpush1.bf16.msra.mxu0 0
    %2001 = vmatprep.subr.bf16.mxu0 0
    %2002 = vmatpush1.bf16.msra.mxu0 0
    %2003 = vmatprep.subr.bf16.mxu0 0
    %2004 = vmatpush1.bf16.msra.mxu0 0
    %2005 = vmatprep.subr.bf16.mxu0 0
    %2006 = vmatpush1.bf16.msra.mxu0 0
    %2007 = vmatprep.subr.bf16.mxu0 0
    %2008 = vmatpush1.bf16.msra.mxu0 0
    %2009 = vmatprep.subr.bf16.mxu0 0
    %2010 = vmatpush1.bf16.msra.mxu0 0
    %2011 = vmatprep.subr.bf16.mxu0 0
    %2012 = vmatpush1.bf16.msra.mxu0 0
    %2013 = vmatprep.subr.bf16.mxu0 0
    %2014 = vmatpush1.bf16.msra.mxu0 0
    %2015 = vmatprep.subr.bf16.mxu0 0
    %2016 = vmatpush1.bf16.msra.mxu0 0
    %2017 = vmatprep.subr.bf16.mxu0 0
    %2018 = vmatpush1.bf16.msra.mxu0 0
    %2019 = vmatprep.subr.bf16.mxu0 0
    %2020 = vmatpush1.bf16.msra.mxu0 0
    %2021 = vmatprep.subr.bf16.mxu0 0
    %2022 = vmatpush1.bf16.msra.mxu0 0
    %2023 = vmatprep.subr.bf16.mxu0 0
    %2024 = vmatpush1.bf16.msra.mxu0 0
    %2025 = vmatprep.subr.bf16.mxu0 0
    %2026 = vmatpush1.bf16.msra.mxu0 0
    %2027 = vmatprep.mubr.bf16.mxu0 0
    %2028 = vmatmul.mubr.bf16.gmra.mrb[0].mxu0 %v1952
    %v2029 = vpop.f32.mrb[0].mxu0
    %v2030 = vadd.f32 %v1914, %v2029
    %v2031 = vpop.f32.mrb[0].mxu0
    %v2032 = vadd.f32 %v1916, %v2031
    %v2033 = vpop.f32.mrb[0].mxu0
    %v2034 = vpop.f32.mrb[0].mxu0
    %2035 = vdwg.mxu0
    %v2036 = vadd.f32 %v1989, %v508
    %v2037 = vadd.f32 %v1991, %v512
    %v2038 = vadd.f32 %v2030, %v516
    %v2039 = vadd.f32 %v2032, %v520
    %v2040 = vxor.u32 %v2036, 2147483648
    %v2041 = vmul.f32 %v2040, 1.442695
    %v2042 = vpow.pop %v2041
    %v2043 = vadd.f32 %v2042, 1.0
    %v2044 = vrcp.pop %v2043
    %v2045 = vmul.f32 1.0, %v2044
    %v2046 = vxor.u32 %v2037, 2147483648
    %v2047 = vmul.f32 %v2046, 1.442695
    %v2048 = vpow.pop %v2047
    %v2049 = vadd.f32 %v2048, 1.0
    %v2050 = vrcp.pop %v2049
    %v2051 = vmul.f32 1.0, %v2050
    %v2052 = vtanh.pop %v2038
    %v2053 = vxor.u32 %v2039, 2147483648
    %v2054 = vmul.f32 %v2053, 1.442695
    %v2055 = vpow.pop %v2054
    %v2056 = vadd.f32 %v2055, 1.0
    %v2057 = vrcp.pop %v2056
    %v2058 = vmul.f32 1.0, %v2057
    %v2059 = vmul.f32 %v2051, %v1817
    %v2060 = vmul.f32 %v2045, %v2052
    %v2061 = vadd.f32 %v2059, %v2060
    %v2062 = vtanh.pop %v2061
    %v2063 = vmul.f32 %v2058, %v2062
    %s2064 = sadd.s32 %s553, 6
    %p2065 = scmp.lt.s32.totalorder %s2064, 8
    %s2066 = scalar_select %p2065, 1, 0
    %v2067 = vstv %s2066
    %vm2068 = vcmp.eq.s32.totalorder %v2067, 1
    %v2069 = vsel %vm2068, %v2061, %v1817
    %v2070 = vsel %vm2068, %v2063, %v1818
    %v2071 = vpack.c.bf16 %v2070, %v2070
    %s2072 = scalar_lea.vmem %s4, 24
    %2073 = vst [vmem:[%s2072] sm:$0xf] %v2071
    %v2074 = vld [vmem:[%s0 + $0x7] sm:$0x1]
    %v2075 = vld [vmem:[%s0 + $0xf] sm:$0x1]
    %v2076 = vld [vmem:[%s0 + $0x17] sm:$0x1]
    %v2077 = vld [vmem:[%s0 + $0x1f] sm:$0x1]
    %v2078 = vld [vmem:[%s0 + $0x27] sm:$0x1]
    %v2079 = vld [vmem:[%s0 + $0x2f] sm:$0x1]
    %v2080 = vld [vmem:[%s0 + $0x37] sm:$0x1]
    %v2081 = vld [vmem:[%s0 + $0x3f] sm:$0x1]
    %v2082 = vpack.c.bf16 %v2074, %v2074
    %v2083 = vpack.c.bf16 %v2075, %v2075
    %v2084 = vpack.c.bf16 %v2076, %v2076
    %v2085 = vpack.c.bf16 %v2077, %v2077
    %v2086 = vpack.c.bf16 %v2078, %v2078
    %v2087 = vpack.c.bf16 %v2079, %v2079
    %v2088 = vpack.c.bf16 %v2080, %v2080
    %v2089 = vpack.c.bf16 %v2081, %v2081
    %2090 = vmatprep.subr.bf16.mxu0 %v212
    %2091 = vmatpush1.bf16.msra.mxu0 %v211
    %2092 = vmatprep.subr.bf16.mxu0 %v216
    %2093 = vmatpush1.bf16.msra.mxu0 %v215
    %2094 = vmatprep.subr.bf16.mxu0 %v220
    %2095 = vmatpush1.bf16.msra.mxu0 %v219
    %2096 = vmatprep.subr.bf16.mxu0 %v224
    %2097 = vmatpush1.bf16.msra.mxu0 %v223
    %2098 = vmatprep.subr.bf16.mxu0 %v228
    %2099 = vmatpush1.bf16.msra.mxu0 %v227
    %2100 = vmatprep.subr.bf16.mxu0 %v232
    %2101 = vmatpush1.bf16.msra.mxu0 %v231
    %2102 = vmatprep.subr.bf16.mxu0 %v236
    %2103 = vmatpush1.bf16.msra.mxu0 %v235
    %2104 = vmatprep.subr.bf16.mxu0 %v240
    %2105 = vmatpush1.bf16.msra.mxu0 %v239
    %2106 = vmatprep.subr.bf16.mxu0 0
    %2107 = vmatpush1.bf16.msra.mxu0 0
    %2108 = vmatprep.subr.bf16.mxu0 0
    %2109 = vmatpush1.bf16.msra.mxu0 0
    %2110 = vmatprep.subr.bf16.mxu0 0
    %2111 = vmatpush1.bf16.msra.mxu0 0
    %2112 = vmatprep.subr.bf16.mxu0 0
    %2113 = vmatpush1.bf16.msra.mxu0 0
    %2114 = vmatprep.subr.bf16.mxu0 0
    %2115 = vmatpush1.bf16.msra.mxu0 0
    %2116 = vmatprep.subr.bf16.mxu0 0
    %2117 = vmatpush1.bf16.msra.mxu0 0
    %2118 = vmatprep.subr.bf16.mxu0 0
    %2119 = vmatpush1.bf16.msra.mxu0 0
    %2120 = vmatprep.subr.bf16.mxu0 0
    %2121 = vmatpush1.bf16.msra.mxu0 0
    %2122 = vmatprep.mubr.bf16.mxu0 0
    %2123 = vmatmul.mubr.bf16.gmra.mrb[0].mxu0 %v2071
    %v2124 = vpop.f32.mrb[0].mxu0
    %v2125 = vadd.f32 0.0, %v2124
    %v2126 = vpop.f32.mrb[0].mxu0
    %v2127 = vadd.f32 0.0, %v2126
    %v2128 = vpop.f32.mrb[0].mxu0
    %v2129 = vpop.f32.mrb[0].mxu0
    %2130 = vdwg.mxu0
    %2131 = vmatprep.subr.bf16.mxu0 %v214
    %2132 = vmatpush1.bf16.msra.mxu0 %v213
    %2133 = vmatprep.subr.bf16.mxu0 %v218
    %2134 = vmatpush1.bf16.msra.mxu0 %v217
    %2135 = vmatprep.subr.bf16.mxu0 %v222
    %2136 = vmatpush1.bf16.msra.mxu0 %v221
    %2137 = vmatprep.subr.bf16.mxu0 %v226
    %2138 = vmatpush1.bf16.msra.mxu0 %v225
    %2139 = vmatprep.subr.bf16.mxu0 %v230
    %2140 = vmatpush1.bf16.msra.mxu0 %v229
    %2141 = vmatprep.subr.bf16.mxu0 %v234
    %2142 = vmatpush1.bf16.msra.mxu0 %v233
    %2143 = vmatprep.subr.bf16.mxu0 %v238
    %2144 = vmatpush1.bf16.msra.mxu0 %v237
    %2145 = vmatprep.subr.bf16.mxu0 %v242
    %2146 = vmatpush1.bf16.msra.mxu0 %v241
    %2147 = vmatprep.subr.bf16.mxu0 0
    %2148 = vmatpush1.bf16.msra.mxu0 0
    %2149 = vmatprep.subr.bf16.mxu0 0
    %2150 = vmatpush1.bf16.msra.mxu0 0
    %2151 = vmatprep.subr.bf16.mxu0 0
    %2152 = vmatpush1.bf16.msra.mxu0 0
    %2153 = vmatprep.subr.bf16.mxu0 0
    %2154 = vmatpush1.bf16.msra.mxu0 0
    %2155 = vmatprep.subr.bf16.mxu0 0
    %2156 = vmatpush1.bf16.msra.mxu0 0
    %2157 = vmatprep.subr.bf16.mxu0 0
    %2158 = vmatpush1.bf16.msra.mxu0 0
    %2159 = vmatprep.subr.bf16.mxu0 0
    %2160 = vmatpush1.bf16.msra.mxu0 0
    %2161 = vmatprep.subr.bf16.mxu0 0
    %2162 = vmatpush1.bf16.msra.mxu0 0
    %2163 = vmatprep.mubr.bf16.mxu0 0
    %2164 = vmatmul.mubr.bf16.gmra.mrb[0].mxu0 %v2071
    %v2165 = vpop.f32.mrb[0].mxu0
    %v2166 = vadd.f32 0.0, %v2165
    %v2167 = vpop.f32.mrb[0].mxu0
    %v2168 = vadd.f32 0.0, %v2167
    %v2169 = vpop.f32.mrb[0].mxu0
    %v2170 = vpop.f32.mrb[0].mxu0
    %2171 = vdwg.mxu0
    %v2180 = vunpack.c.l.b16 %v2082
    %v2181 = vunpack.c.l.b16 %v2083
    %v2182 = vunpack.c.l.b16 %v2084
    %v2183 = vunpack.c.l.b16 %v2085
    %v2184 = vunpack.c.l.b16 %v2086
    %v2185 = vunpack.c.l.b16 %v2087
    %v2186 = vunpack.c.l.b16 %v2088
    %v2187 = vunpack.c.l.b16 %v2089
    %v2188 = vrot.slane %v2181, 7
    %v2189 = vsel %vm374, %v2188, %v2180
    %v2190 = vrot.slane %v2182, 6
    %v2191 = vsel %vm377, %v2190, %v2189
    %v2192 = vrot.slane %v2183, 5
    %v2193 = vsel %vm380, %v2192, %v2191
    %v2194 = vrot.slane %v2184, 4
    %v2195 = vsel %vm383, %v2194, %v2193
    %v2196 = vrot.slane %v2185, 3
    %v2197 = vsel %vm386, %v2196, %v2195
    %v2198 = vrot.slane %v2186, 2
    %v2199 = vsel %vm389, %v2198, %v2197
    %v2200 = vrot.slane %v2187, 1
    %v2201 = vsel %vm392, %v2200, %v2199
    %v2202 = vpack.c.b16 %v2201, %v2201
    %v2204 = vsel %vm405, %v2202, 0
    %2206 = vmatprep.subr.bf16.mxu0 %v414
    %2207 = vmatpush1.bf16.msra.mxu0 %v411
    %2208 = vmatprep.subr.bf16.mxu0 0
    %2209 = vmatpush1.bf16.msra.mxu0 0
    %2210 = vmatprep.subr.bf16.mxu0 0
    %2211 = vmatpush1.bf16.msra.mxu0 0
    %2212 = vmatprep.subr.bf16.mxu0 0
    %2213 = vmatpush1.bf16.msra.mxu0 0
    %2214 = vmatprep.subr.bf16.mxu0 0
    %2215 = vmatpush1.bf16.msra.mxu0 0
    %2216 = vmatprep.subr.bf16.mxu0 0
    %2217 = vmatpush1.bf16.msra.mxu0 0
    %2218 = vmatprep.subr.bf16.mxu0 0
    %2219 = vmatpush1.bf16.msra.mxu0 0
    %2220 = vmatprep.subr.bf16.mxu0 0
    %2221 = vmatpush1.bf16.msra.mxu0 0
    %2222 = vmatprep.subr.bf16.mxu0 0
    %2223 = vmatpush1.bf16.msra.mxu0 0
    %2224 = vmatprep.subr.bf16.mxu0 0
    %2225 = vmatpush1.bf16.msra.mxu0 0
    %2226 = vmatprep.subr.bf16.mxu0 0
    %2227 = vmatpush1.bf16.msra.mxu0 0
    %2228 = vmatprep.subr.bf16.mxu0 0
    %2229 = vmatpush1.bf16.msra.mxu0 0
    %2230 = vmatprep.subr.bf16.mxu0 0
    %2231 = vmatpush1.bf16.msra.mxu0 0
    %2232 = vmatprep.subr.bf16.mxu0 0
    %2233 = vmatpush1.bf16.msra.mxu0 0
    %2234 = vmatprep.subr.bf16.mxu0 0
    %2235 = vmatpush1.bf16.msra.mxu0 0
    %2236 = vmatprep.subr.bf16.mxu0 0
    %2237 = vmatpush1.bf16.msra.mxu0 0
    %2238 = vmatprep.mubr.bf16.mxu0 0
    %2239 = vmatmul.mubr.bf16.gmra.mrb[0].mxu0 %v2204
    %v2240 = vpop.f32.mrb[0].mxu0
    %v2241 = vadd.f32 %v2125, %v2240
    %v2242 = vpop.f32.mrb[0].mxu0
    %v2243 = vadd.f32 %v2127, %v2242
    %v2244 = vpop.f32.mrb[0].mxu0
    %v2245 = vpop.f32.mrb[0].mxu0
    %2246 = vdwg.mxu0
    %2247 = vmatprep.subr.bf16.mxu0 %v420
    %2248 = vmatpush1.bf16.msra.mxu0 %v417
    %2249 = vmatprep.subr.bf16.mxu0 0
    %2250 = vmatpush1.bf16.msra.mxu0 0
    %2251 = vmatprep.subr.bf16.mxu0 0
    %2252 = vmatpush1.bf16.msra.mxu0 0
    %2253 = vmatprep.subr.bf16.mxu0 0
    %2254 = vmatpush1.bf16.msra.mxu0 0
    %2255 = vmatprep.subr.bf16.mxu0 0
    %2256 = vmatpush1.bf16.msra.mxu0 0
    %2257 = vmatprep.subr.bf16.mxu0 0
    %2258 = vmatpush1.bf16.msra.mxu0 0
    %2259 = vmatprep.subr.bf16.mxu0 0
    %2260 = vmatpush1.bf16.msra.mxu0 0
    %2261 = vmatprep.subr.bf16.mxu0 0
    %2262 = vmatpush1.bf16.msra.mxu0 0
    %2263 = vmatprep.subr.bf16.mxu0 0
    %2264 = vmatpush1.bf16.msra.mxu0 0
    %2265 = vmatprep.subr.bf16.mxu0 0
    %2266 = vmatpush1.bf16.msra.mxu0 0
    %2267 = vmatprep.subr.bf16.mxu0 0
    %2268 = vmatpush1.bf16.msra.mxu0 0
    %2269 = vmatprep.subr.bf16.mxu0 0
    %2270 = vmatpush1.bf16.msra.mxu0 0
    %2271 = vmatprep.subr.bf16.mxu0 0
    %2272 = vmatpush1.bf16.msra.mxu0 0
    %2273 = vmatprep.subr.bf16.mxu0 0
    %2274 = vmatpush1.bf16.msra.mxu0 0
    %2275 = vmatprep.subr.bf16.mxu0 0
    %2276 = vmatpush1.bf16.msra.mxu0 0
    %2277 = vmatprep.subr.bf16.mxu0 0
    %2278 = vmatpush1.bf16.msra.mxu0 0
    %2279 = vmatprep.mubr.bf16.mxu0 0
    %2280 = vmatmul.mubr.bf16.gmra.mrb[0].mxu0 %v2204
    %v2281 = vpop.f32.mrb[0].mxu0
    %v2282 = vadd.f32 %v2166, %v2281
    %v2283 = vpop.f32.mrb[0].mxu0
    %v2284 = vadd.f32 %v2168, %v2283
    %v2285 = vpop.f32.mrb[0].mxu0
    %v2286 = vpop.f32.mrb[0].mxu0
    %2287 = vdwg.mxu0
    %v2288 = vadd.f32 %v2241, %v508
    %v2289 = vadd.f32 %v2243, %v512
    %v2290 = vadd.f32 %v2282, %v516
    %v2291 = vadd.f32 %v2284, %v520
    %v2292 = vxor.u32 %v2288, 2147483648
    %v2293 = vmul.f32 %v2292, 1.442695
    %v2294 = vpow.pop %v2293
    %v2295 = vadd.f32 %v2294, 1.0
    %v2296 = vrcp.pop %v2295
    %v2297 = vmul.f32 1.0, %v2296
    %v2298 = vxor.u32 %v2289, 2147483648
    %v2299 = vmul.f32 %v2298, 1.442695
    %v2300 = vpow.pop %v2299
    %v2301 = vadd.f32 %v2300, 1.0
    %v2302 = vrcp.pop %v2301
    %v2303 = vmul.f32 1.0, %v2302
    %v2304 = vtanh.pop %v2290
    %v2305 = vxor.u32 %v2291, 2147483648
    %v2306 = vmul.f32 %v2305, 1.442695
    %v2307 = vpow.pop %v2306
    %v2308 = vadd.f32 %v2307, 1.0
    %v2309 = vrcp.pop %v2308
    %v2310 = vmul.f32 1.0, %v2309
    %v2311 = vmul.f32 %v2303, %v2069
    %v2312 = vmul.f32 %v2297, %v2304
    %v2313 = vadd.f32 %v2311, %v2312
    %v2314 = vtanh.pop %v2313
    %v2315 = vmul.f32 %v2310, %v2314
    %s2316 = sadd.s32 %s553, 7
    %p2317 = scmp.lt.s32.totalorder %s2316, 8
    %s2318 = scalar_select %p2317, 1, 0
    %v2319 = vstv %s2318
    %vm2320 = vcmp.eq.s32.totalorder %v2319, 1
    %v2321 = vsel %vm2320, %v2313, %v2069
    %v2322 = vsel %vm2320, %v2315, %v2070
    %v2323 = vpack.c.bf16 %v2322, %v2322
    %s2324 = scalar_lea.vmem %s4, 28
    %2325 = vst [vmem:[%s2324] sm:$0xf] %v2323
    %2326 = vst [vmem:[#allocation2] sm:$0xff] %v2322
    %2327 = vst [vmem:[#allocation3] sm:$0xff] %v2321
    // Predicated region
    $region34: #{forward.2} parent=1 // pred_check
      _
    $region35: #{forward.2} parent=1 // pred_check_branch
      %2329 = sbr.rel (0) target = $region37
    $region36: #{forward.2} parent=1 // pred_region
      _
    $region37: #{forward.2} parent=1 // pred_fallthru
      _
    // Predicated region
    $region38: #{forward.2} parent=1 // pred_check
      _
    $region39: #{forward.2} parent=1 // pred_check_branch
      %2331 = sbr.rel (0) target = $region41
    $region40: #{forward.2} parent=1 // pred_region
      _
    $region41: #{forward.2} parent=1 // pred_fallthru
      _
    %2332 = vsyncpa [#allocation5], 1
    %2333 = vsyncpa [#allocation7], 1

// kernel: forward.3
$region0: #{forward.3}
  #allocation0 [shape = 'u32[]', space=smem, size = 0x4, offset = 0x4, fixed_abs, tag = 'smem constant byte address 0x4 - core index']
  #allocation1 [shape = 'u32[144,128]{1,0:T(1,128)}', space=vmem, size = 0x12000, scoped, tag = 'internal scratch']
  #allocation2 [shape = 'f32[8,128]{1,0:T(8,128)}', space=vmem, size = 0x1000, scoped, tag = 'scratch operand']
  #allocation3 [shape = 'f32[8,128]{1,0:T(8,128)}', space=vmem, size = 0x1000, scoped, tag = 'scratch operand']
  %s0 = inlined_call_operand.vmem [shape: bf16[8,8,128], index: 0, kind: input, shape index: {}]
  %s1 = inlined_call_operand.vmem [shape: bf16[128,512], index: 1, kind: input, shape index: {}]
  %s2 = inlined_call_operand.hbm [shape: bf16[128,512], index: 2, kind: input, shape index: {}]
  %s3 = inlined_call_operand.vmem [shape: f32[1,512], index: 3, kind: input, shape index: {}]
  %s4 = inlined_call_operand.vmem [shape: bf16[128,128], index: 4, kind: input, shape index: {}]
  %s5 = inlined_call_operand.vmem [shape: f32[1,128], index: 5, kind: input, shape index: {}]
  %s6 = inlined_call_operand.vmem [shape: f32[8,128], index: 6, kind: output, shape index: {}]
  %s7 = sld [smem:[#allocation0]]
  $region46: #{forward.3} parent=0
    _
  %s9 = ssub.s32 1, %s7
  %s10 = scalar_select 0, %s9, %s7
  $region1: #{forward.3} parent=0
    #allocation4 [shape = 'u8[131072]{0}', space=vmem, size = 0x20000, scoped, tag = 'input window, operand 2, single buffered']
    #allocation5 [shape = 's32[1]{0}', space=sflag, size = 0x4, scoped, tag = 'scoped memory for forward.3']
    %11 = vsyncpa [#allocation5], 0
    // Predicated region
    $region2: #{forward.3} parent=1 // pred_check
      _
    $region3: #{forward.3} parent=1 // pred_check_branch
      %13 = sbr.rel (0) target = $region5
    $region4: #{forward.3} parent=1 // pred_region
      _
    $region5: #{forward.3} parent=1 // pred_fallthru
      _
    // Predicated region
    $region6: #{forward.3} parent=1 // pred_check
      _
    $region7: #{forward.3} parent=1 // pred_check_branch
      %15 = sbr.rel (0) target = $region9
    $region8: #{forward.3} parent=1 // pred_region
      _
    $region9: #{forward.3} parent=1 // pred_fallthru
      _
    // Predicated region
    $region10: #{forward.3} parent=1 // pred_check
      _
    $region11: #{forward.3} parent=1 // pred_check_branch
      %17 = sbr.rel (0) target = $region13
    $region12: #{forward.3} parent=1 // pred_region
      %s19 = ssub.s32 4096, 4096
      %20 = vsyncadd [#allocation5], %s19
      %s21 = sshll.u32 [#allocation4], 4
      %s22 = int_to_ptr.vmem [resolvable:$true] %s21
      %27 = dma.hbm_to_vmem [thread:$0]  %s2, 4096, %s22, [#allocation5], 256, 256, 16
    $region13: #{forward.3} parent=1 // pred_fallthru
      _
    // Predicated region
    $region14: #{forward.3} parent=1 // pred_check
      _
    $region15: #{forward.3} parent=1 // pred_check_branch
      %29 = sbr.rel (0) target = $region17
    $region16: #{forward.3} parent=1 // pred_region
      _
    $region17: #{forward.3} parent=1 // pred_fallthru
      _
    // Predicated region
    $region18: #{forward.3} parent=1 // pred_check
      _
    $region19: #{forward.3} parent=1 // pred_check_branch
      %31 = sbr.rel (0) target = $region21
    $region20: #{forward.3} parent=1 // pred_region
      _
    $region21: #{forward.3} parent=1 // pred_fallthru
      _
    // Predicated region
    $region22: #{forward.3} parent=1 // pred_check
      _
    $region23: #{forward.3} parent=1 // pred_check_branch
      %33 = sbr.rel (0) target = $region25
    $region24: #{forward.3} parent=1 // pred_region
      _
    $region25: #{forward.3} parent=1 // pred_fallthru
      _
    // Predicated region
    $region26: #{forward.3} parent=1 // pred_check
      _
    $region27: #{forward.3} parent=1 // pred_check_branch
      %35 = sbr.rel (0) target = $region29
    $region28: #{forward.3} parent=1 // pred_region
      %36 = dma.done [#allocation5], 4096
    $region29: #{forward.3} parent=1 // pred_fallthru
      _
    %p38 = scmp.eq.s32.totalorder 0, 0
    // Predicated region
    $region30: #{forward.3} parent=1 // pred_check
      %p39 = pneg %p38
    $region31: #{forward.3} parent=1 // pred_check_branch
      %41 = sbr.rel (%p39) target = $region33
    $region32: #{forward.3} parent=1 // pred_region
      %42 = vst [vmem:[#allocation2] sm:$0xff] 0.0
      %43 = vst [vmem:[#allocation3] sm:$0xff] 0.0
    $region33: #{forward.3} parent=1 // pred_fallthru
      _
    %v44 = vld [vmem:[%s1] sm:$0xff]
    %v45 = vld [vmem:[%s1 + $0x8] sm:$0xff]
    %v46 = vld [vmem:[%s1 + $0x10] sm:$0xff]
    %v47 = vld [vmem:[%s1 + $0x18] sm:$0xff]
    %v48 = vld [vmem:[%s1 + $0x20] sm:$0xff]
    %v49 = vld [vmem:[%s1 + $0x28] sm:$0xff]
    %v50 = vld [vmem:[%s1 + $0x30] sm:$0xff]
    %v51 = vld [vmem:[%s1 + $0x38] sm:$0xff]
    %v52 = vld [vmem:[%s1 + $0x40] sm:$0xff]
    %v53 = vld [vmem:[%s1 + $0x48] sm:$0xff]
    %v54 = vld [vmem:[%s1 + $0x50] sm:$0xff]
    %v55 = vld [vmem:[%s1 + $0x58] sm:$0xff]
    %v56 = vld [vmem:[%s1 + $0x60] sm:$0xff]
    %v57 = vld [vmem:[%s1 + $0x68] sm:$0xff]
    %v58 = vld [vmem:[%s1 + $0x70] sm:$0xff]
    %v59 = vld [vmem:[%s1 + $0x78] sm:$0xff]
    %v60 = vld [vmem:[%s1 + $0x80] sm:$0xff]
    %v61 = vld [vmem:[%s1 + $0x88] sm:$0xff]
    %v62 = vld [vmem:[%s1 + $0x90] sm:$0xff]
    %v63 = vld [vmem:[%s1 + $0x98] sm:$0xff]
    %v64 = vld [vmem:[%s1 + $0xa0] sm:$0xff]
    %v65 = vld [vmem:[%s1 + $0xa8] sm:$0xff]
    %v66 = vld [vmem:[%s1 + $0xb0] sm:$0xff]
    %v67 = vld [vmem:[%s1 + $0xb8] sm:$0xff]
    %v68 = vld [vmem:[%s1 + $0xc0] sm:$0xff]
    %v69 = vld [vmem:[%s1 + $0xc8] sm:$0xff]
    %v70 = vld [vmem:[%s1 + $0xd0] sm:$0xff]
    %v71 = vld [vmem:[%s1 + $0xd8] sm:$0xff]
    %v72 = vld [vmem:[%s1 + $0xe0] sm:$0xff]
    %v73 = vld [vmem:[%s1 + $0xe8] sm:$0xff]
    %v74 = vld [vmem:[%s1 + $0xf0] sm:$0xff]
    %v75 = vld [vmem:[%s1 + $0xf8] sm:$0xff]
    %v76 = vld [vmem:[#allocation4] sm:$0xff]
    %v77 = vld [vmem:[#allocation4 + $0x8] sm:$0xff]
    %v78 = vld [vmem:[#allocation4 + $0x10] sm:$0xff]
    %v79 = vld [vmem:[#allocation4 + $0x18] sm:$0xff]
    %v80 = vld [vmem:[#allocation4 + $0x20] sm:$0xff]
    %v81 = vld [vmem:[#allocation4 + $0x28] sm:$0xff]
    %v82 = vld [vmem:[#allocation4 + $0x30] sm:$0xff]
    %v83 = vld [vmem:[#allocation4 + $0x38] sm:$0xff]
    %v84 = vld [vmem:[#allocation4 + $0x40] sm:$0xff]
    %v85 = vld [vmem:[#allocation4 + $0x48] sm:$0xff]
    %v86 = vld [vmem:[#allocation4 + $0x50] sm:$0xff]
    %v87 = vld [vmem:[#allocation4 + $0x58] sm:$0xff]
    %v88 = vld [vmem:[#allocation4 + $0x60] sm:$0xff]
    %v89 = vld [vmem:[#allocation4 + $0x68] sm:$0xff]
    %v90 = vld [vmem:[#allocation4 + $0x70] sm:$0xff]
    %v91 = vld [vmem:[#allocation4 + $0x78] sm:$0xff]
    %v92 = vld [vmem:[#allocation4 + $0x80] sm:$0xff]
    %v93 = vld [vmem:[#allocation4 + $0x88] sm:$0xff]
    %v94 = vld [vmem:[#allocation4 + $0x90] sm:$0xff]
    %v95 = vld [vmem:[#allocation4 + $0x98] sm:$0xff]
    %v96 = vld [vmem:[#allocation4 + $0xa0] sm:$0xff]
    %v97 = vld [vmem:[#allocation4 + $0xa8] sm:$0xff]
    %v98 = vld [vmem:[#allocation4 + $0xb0] sm:$0xff]
    %v99 = vld [vmem:[#allocation4 + $0xb8] sm:$0xff]
    %v100 = vld [vmem:[#allocation4 + $0xc0] sm:$0xff]
    %v101 = vld [vmem:[#allocation4 + $0xc8] sm:$0xff]
    %v102 = vld [vmem:[#allocation4 + $0xd0] sm:$0xff]
    %v103 = vld [vmem:[#allocation4 + $0xd8] sm:$0xff]
    %v104 = vld [vmem:[#allocation4 + $0xe0] sm:$0xff]
    %v105 = vld [vmem:[#allocation4 + $0xe8] sm:$0xff]
    %v106 = vld [vmem:[#allocation4 + $0xf0] sm:$0xff]
    %v107 = vld [vmem:[#allocation4 + $0xf8] sm:$0xff]
    %v108 = vld [vmem:[%s3] sm:$0xf]
    %v109 = vld [vmem:[#allocation2] sm:$0xff]
    %v110 = vld [vmem:[#allocation3] sm:$0xff]
    %v111 = vld [vmem:[%s0] sm:$0xf]
    %v112 = vpack.c.bf16 %v109, %v109
    %v145 = vunpack.c.l.b16 %v76
    %v146 = vunpack.c.h.b16 %v76
    %v147 = vunpack.c.l.b16 %v77
    %v148 = vunpack.c.h.b16 %v77
    %v149 = vunpack.c.l.b16 %v78
    %v150 = vunpack.c.h.b16 %v78
    %v151 = vunpack.c.l.b16 %v79
    %v152 = vunpack.c.h.b16 %v79
    %v153 = vunpack.c.l.b16 %v80
    %v154 = vunpack.c.h.b16 %v80
    %v155 = vunpack.c.l.b16 %v81
    %v156 = vunpack.c.h.b16 %v81
    %v157 = vunpack.c.l.b16 %v82
    %v158 = vunpack.c.h.b16 %v82
    %v159 = vunpack.c.l.b16 %v83
    %v160 = vunpack.c.h.b16 %v83
    %v161 = vunpack.c.l.b16 %v84
    %v162 = vunpack.c.h.b16 %v84
    %v163 = vunpack.c.l.b16 %v85
    %v164 = vunpack.c.h.b16 %v85
    %v165 = vunpack.c.l.b16 %v86
    %v166 = vunpack.c.h.b16 %v86
    %v167 = vunpack.c.l.b16 %v87
    %v168 = vunpack.c.h.b16 %v87
    %v169 = vunpack.c.l.b16 %v88
    %v170 = vunpack.c.h.b16 %v88
    %v171 = vunpack.c.l.b16 %v89
    %v172 = vunpack.c.h.b16 %v89
    %v173 = vunpack.c.l.b16 %v90
    %v174 = vunpack.c.h.b16 %v90
    %v175 = vunpack.c.l.b16 %v91
    %v176 = vunpack.c.h.b16 %v91
    %v177 = vunpack.c.l.b16 %v92
    %v178 = vunpack.c.h.b16 %v92
    %v179 = vunpack.c.l.b16 %v93
    %v180 = vunpack.c.h.b16 %v93
    %v181 = vunpack.c.l.b16 %v94
    %v182 = vunpack.c.h.b16 %v94
    %v183 = vunpack.c.l.b16 %v95
    %v184 = vunpack.c.h.b16 %v95
    %v185 = vunpack.c.l.b16 %v96
    %v186 = vunpack.c.h.b16 %v96
    %v187 = vunpack.c.l.b16 %v97
    %v188 = vunpack.c.h.b16 %v97
    %v189 = vunpack.c.l.b16 %v98
    %v190 = vunpack.c.h.b16 %v98
    %v191 = vunpack.c.l.b16 %v99
    %v192 = vunpack.c.h.b16 %v99
    %v193 = vunpack.c.l.b16 %v100
    %v194 = vunpack.c.h.b16 %v100
    %v195 = vunpack.c.l.b16 %v101
    %v196 = vunpack.c.h.b16 %v101
    %v197 = vunpack.c.l.b16 %v102
    %v198 = vunpack.c.h.b16 %v102
    %v199 = vunpack.c.l.b16 %v103
    %v200 = vunpack.c.h.b16 %v103
    %v201 = vunpack.c.l.b16 %v104
    %v202 = vunpack.c.h.b16 %v104
    %v203 = vunpack.c.l.b16 %v105
    %v204 = vunpack.c.h.b16 %v105
    %v205 = vunpack.c.l.b16 %v106
    %v206 = vunpack.c.h.b16 %v106
    %v207 = vunpack.c.l.b16 %v107
    %v208 = vunpack.c.h.b16 %v107
    %v209 = vpack.c.b16 %v149, %v145
    %v210 = vpack.c.b16 %v150, %v146
    %v211 = vpack.c.b16 %v151, %v147
    %v212 = vpack.c.b16 %v152, %v148
    %v213 = vpack.c.b16 %v157, %v153
    %v214 = vpack.c.b16 %v158, %v154
    %v215 = vpack.c.b16 %v159, %v155
    %v216 = vpack.c.b16 %v160, %v156
    %v217 = vpack.c.b16 %v165, %v161
    %v218 = vpack.c.b16 %v166, %v162
    %v219 = vpack.c.b16 %v167, %v163
    %v220 = vpack.c.b16 %v168, %v164
    %v221 = vpack.c.b16 %v173, %v169
    %v222 = vpack.c.b16 %v174, %v170
    %v223 = vpack.c.b16 %v175, %v171
    %v224 = vpack.c.b16 %v176, %v172
    %v225 = vpack.c.b16 %v181, %v177
    %v226 = vpack.c.b16 %v182, %v178
    %v227 = vpack.c.b16 %v183, %v179
    %v228 = vpack.c.b16 %v184, %v180
    %v229 = vpack.c.b16 %v189, %v185
    %v230 = vpack.c.b16 %v190, %v186
    %v231 = vpack.c.b16 %v191, %v187
    %v232 = vpack.c.b16 %v192, %v188
    %v233 = vpack.c.b16 %v197, %v193
    %v234 = vpack.c.b16 %v198, %v194
    %v235 = vpack.c.b16 %v199, %v195
    %v236 = vpack.c.b16 %v200, %v196
    %v237 = vpack.c.b16 %v205, %v201
    %v238 = vpack.c.b16 %v206, %v202
    %v239 = vpack.c.b16 %v207, %v203
    %v240 = vpack.c.b16 %v208, %v204
    %273 = vmatprep.subr.bf16.mxu0 %v210
    %274 = vmatpush1.bf16.msra.mxu0 %v209
    %275 = vmatprep.subr.bf16.mxu0 %v214
    %276 = vmatpush1.bf16.msra.mxu0 %v213
    %277 = vmatprep.subr.bf16.mxu0 %v218
    %278 = vmatpush1.bf16.msra.mxu0 %v217
    %279 = vmatprep.subr.bf16.mxu0 %v222
    %280 = vmatpush1.bf16.msra.mxu0 %v221
    %281 = vmatprep.subr.bf16.mxu0 %v226
    %282 = vmatpush1.bf16.msra.mxu0 %v225
    %283 = vmatprep.subr.bf16.mxu0 %v230
    %284 = vmatpush1.bf16.msra.mxu0 %v229
    %285 = vmatprep.subr.bf16.mxu0 %v234
    %286 = vmatpush1.bf16.msra.mxu0 %v233
    %287 = vmatprep.subr.bf16.mxu0 %v238
    %288 = vmatpush1.bf16.msra.mxu0 %v237
    %289 = vmatprep.subr.bf16.mxu0 0
    %290 = vmatpush1.bf16.msra.mxu0 0
    %291 = vmatprep.subr.bf16.mxu0 0
    %292 = vmatpush1.bf16.msra.mxu0 0
    %293 = vmatprep.subr.bf16.mxu0 0
    %294 = vmatpush1.bf16.msra.mxu0 0
    %295 = vmatprep.subr.bf16.mxu0 0
    %296 = vmatpush1.bf16.msra.mxu0 0
    %297 = vmatprep.subr.bf16.mxu0 0
    %298 = vmatpush1.bf16.msra.mxu0 0
    %299 = vmatprep.subr.bf16.mxu0 0
    %300 = vmatpush1.bf16.msra.mxu0 0
    %301 = vmatprep.subr.bf16.mxu0 0
    %302 = vmatpush1.bf16.msra.mxu0 0
    %303 = vmatprep.subr.bf16.mxu0 0
    %304 = vmatpush1.bf16.msra.mxu0 0
    %305 = vmatprep.mubr.bf16.mxu0 0
    %306 = vmatmul.mubr.bf16.gmra.mrb[0].mxu0 %v112
    %v307 = vpop.f32.mrb[0].mxu0
    %v308 = vadd.f32 0.0, %v307
    %v309 = vpop.f32.mrb[0].mxu0
    %v310 = vadd.f32 0.0, %v309
    %v311 = vpop.f32.mrb[0].mxu0
    %v312 = vpop.f32.mrb[0].mxu0
    %313 = vdwg.mxu0
    %314 = vmatprep.subr.bf16.mxu0 %v212
    %315 = vmatpush1.bf16.msra.mxu0 %v211
    %316 = vmatprep.subr.bf16.mxu0 %v216
    %317 = vmatpush1.bf16.msra.mxu0 %v215
    %318 = vmatprep.subr.bf16.mxu0 %v220
    %319 = vmatpush1.bf16.msra.mxu0 %v219
    %320 = vmatprep.subr.bf16.mxu0 %v224
    %321 = vmatpush1.bf16.msra.mxu0 %v223
    %322 = vmatprep.subr.bf16.mxu0 %v228
    %323 = vmatpush1.bf16.msra.mxu0 %v227
    %324 = vmatprep.subr.bf16.mxu0 %v232
    %325 = vmatpush1.bf16.msra.mxu0 %v231
    %326 = vmatprep.subr.bf16.mxu0 %v236
    %327 = vmatpush1.bf16.msra.mxu0 %v235
    %328 = vmatprep.subr.bf16.mxu0 %v240
    %329 = vmatpush1.bf16.msra.mxu0 %v239
    %330 = vmatprep.subr.bf16.mxu0 0
    %331 = vmatpush1.bf16.msra.mxu0 0
    %332 = vmatprep.subr.bf16.mxu0 0
    %333 = vmatpush1.bf16.msra.mxu0 0
    %334 = vmatprep.subr.bf16.mxu0 0
    %335 = vmatpush1.bf16.msra.mxu0 0
    %336 = vmatprep.subr.bf16.mxu0 0
    %337 = vmatpush1.bf16.msra.mxu0 0
    %338 = vmatprep.subr.bf16.mxu0 0
    %339 = vmatpush1.bf16.msra.mxu0 0
    %340 = vmatprep.subr.bf16.mxu0 0
    %341 = vmatpush1.bf16.msra.mxu0 0
    %342 = vmatprep.subr.bf16.mxu0 0
    %343 = vmatpush1.bf16.msra.mxu0 0
    %344 = vmatprep.subr.bf16.mxu0 0
    %345 = vmatpush1.bf16.msra.mxu0 0
    %346 = vmatprep.mubr.bf16.mxu0 0
    %347 = vmatmul.mubr.bf16.gmra.mrb[0].mxu0 %v112
    %v348 = vpop.f32.mrb[0].mxu0
    %v349 = vadd.f32 0.0, %v348
    %v350 = vpop.f32.mrb[0].mxu0
    %v351 = vadd.f32 0.0, %v350
    %v352 = vpop.f32.mrb[0].mxu0
    %v353 = vpop.f32.mrb[0].mxu0
    %354 = vdwg.mxu0
    %v387 = vunpack.c.l.b16 %v44
    %v388 = vunpack.c.h.b16 %v44
    %v389 = vunpack.c.l.b16 %v45
    %v390 = vunpack.c.h.b16 %v45
    %v391 = vunpack.c.l.b16 %v46
    %v392 = vunpack.c.h.b16 %v46
    %v393 = vunpack.c.l.b16 %v47
    %v394 = vunpack.c.h.b16 %v47
    %v395 = vunpack.c.l.b16 %v48
    %v396 = vunpack.c.h.b16 %v48
    %v397 = vunpack.c.l.b16 %v49
    %v398 = vunpack.c.h.b16 %v49
    %v399 = vunpack.c.l.b16 %v50
    %v400 = vunpack.c.h.b16 %v50
    %v401 = vunpack.c.l.b16 %v51
    %v402 = vunpack.c.h.b16 %v51
    %v403 = vunpack.c.l.b16 %v52
    %v404 = vunpack.c.h.b16 %v52
    %v405 = vunpack.c.l.b16 %v53
    %v406 = vunpack.c.h.b16 %v53
    %v407 = vunpack.c.l.b16 %v54
    %v408 = vunpack.c.h.b16 %v54
    %v409 = vunpack.c.l.b16 %v55
    %v410 = vunpack.c.h.b16 %v55
    %v411 = vunpack.c.l.b16 %v56
    %v412 = vunpack.c.h.b16 %v56
    %v413 = vunpack.c.l.b16 %v57
    %v414 = vunpack.c.h.b16 %v57
    %v415 = vunpack.c.l.b16 %v58
    %v416 = vunpack.c.h.b16 %v58
    %v417 = vunpack.c.l.b16 %v59
    %v418 = vunpack.c.h.b16 %v59
    %v419 = vunpack.c.l.b16 %v60
    %v420 = vunpack.c.h.b16 %v60
    %v421 = vunpack.c.l.b16 %v61
    %v422 = vunpack.c.h.b16 %v61
    %v423 = vunpack.c.l.b16 %v62
    %v424 = vunpack.c.h.b16 %v62
    %v425 = vunpack.c.l.b16 %v63
    %v426 = vunpack.c.h.b16 %v63
    %v427 = vunpack.c.l.b16 %v64
    %v428 = vunpack.c.h.b16 %v64
    %v429 = vunpack.c.l.b16 %v65
    %v430 = vunpack.c.h.b16 %v65
    %v431 = vunpack.c.l.b16 %v66
    %v432 = vunpack.c.h.b16 %v66
    %v433 = vunpack.c.l.b16 %v67
    %v434 = vunpack.c.h.b16 %v67
    %v435 = vunpack.c.l.b16 %v68
    %v436 = vunpack.c.h.b16 %v68
    %v437 = vunpack.c.l.b16 %v69
    %v438 = vunpack.c.h.b16 %v69
    %v439 = vunpack.c.l.b16 %v70
    %v440 = vunpack.c.h.b16 %v70
    %v441 = vunpack.c.l.b16 %v71
    %v442 = vunpack.c.h.b16 %v71
    %v443 = vunpack.c.l.b16 %v72
    %v444 = vunpack.c.h.b16 %v72
    %v445 = vunpack.c.l.b16 %v73
    %v446 = vunpack.c.h.b16 %v73
    %v447 = vunpack.c.l.b16 %v74
    %v448 = vunpack.c.h.b16 %v74
    %v449 = vunpack.c.l.b16 %v75
    %v450 = vunpack.c.h.b16 %v75
    %v451 = vpack.c.b16 %v391, %v387
    %v452 = vpack.c.b16 %v392, %v388
    %v453 = vpack.c.b16 %v393, %v389
    %v454 = vpack.c.b16 %v394, %v390
    %v455 = vpack.c.b16 %v399, %v395
    %v456 = vpack.c.b16 %v400, %v396
    %v457 = vpack.c.b16 %v401, %v397
    %v458 = vpack.c.b16 %v402, %v398
    %v459 = vpack.c.b16 %v407, %v403
    %v460 = vpack.c.b16 %v408, %v404
    %v461 = vpack.c.b16 %v409, %v405
    %v462 = vpack.c.b16 %v410, %v406
    %v463 = vpack.c.b16 %v415, %v411
    %v464 = vpack.c.b16 %v416, %v412
    %v465 = vpack.c.b16 %v417, %v413
    %v466 = vpack.c.b16 %v418, %v414
    %v467 = vpack.c.b16 %v423, %v419
    %v468 = vpack.c.b16 %v424, %v420
    %v469 = vpack.c.b16 %v425, %v421
    %v470 = vpack.c.b16 %v426, %v422
    %v471 = vpack.c.b16 %v431, %v427
    %v472 = vpack.c.b16 %v432, %v428
    %v473 = vpack.c.b16 %v433, %v429
    %v474 = vpack.c.b16 %v434, %v430
    %v475 = vpack.c.b16 %v439, %v435
    %v476 = vpack.c.b16 %v440, %v436
    %v477 = vpack.c.b16 %v441, %v437
    %v478 = vpack.c.b16 %v442, %v438
    %v479 = vpack.c.b16 %v447, %v443
    %v480 = vpack.c.b16 %v448, %v444
    %v481 = vpack.c.b16 %v449, %v445
    %v482 = vpack.c.b16 %v450, %v446
    %515 = vmatprep.subr.bf16.mxu0 %v452
    %516 = vmatpush1.bf16.msra.mxu0 %v451
    %517 = vmatprep.subr.bf16.mxu0 %v456
    %518 = vmatpush1.bf16.msra.mxu0 %v455
    %519 = vmatprep.subr.bf16.mxu0 %v460
    %520 = vmatpush1.bf16.msra.mxu0 %v459
    %521 = vmatprep.subr.bf16.mxu0 %v464
    %522 = vmatpush1.bf16.msra.mxu0 %v463
    %523 = vmatprep.subr.bf16.mxu0 %v468
    %524 = vmatpush1.bf16.msra.mxu0 %v467
    %525 = vmatprep.subr.bf16.mxu0 %v472
    %526 = vmatpush1.bf16.msra.mxu0 %v471
    %527 = vmatprep.subr.bf16.mxu0 %v476
    %528 = vmatpush1.bf16.msra.mxu0 %v475
    %529 = vmatprep.subr.bf16.mxu0 %v480
    %530 = vmatpush1.bf16.msra.mxu0 %v479
    %531 = vmatprep.subr.bf16.mxu0 0
    %532 = vmatpush1.bf16.msra.mxu0 0
    %533 = vmatprep.subr.bf16.mxu0 0
    %534 = vmatpush1.bf16.msra.mxu0 0
    %535 = vmatprep.subr.bf16.mxu0 0
    %536 = vmatpush1.bf16.msra.mxu0 0
    %537 = vmatprep.subr.bf16.mxu0 0
    %538 = vmatpush1.bf16.msra.mxu0 0
    %539 = vmatprep.subr.bf16.mxu0 0
    %540 = vmatpush1.bf16.msra.mxu0 0
    %541 = vmatprep.subr.bf16.mxu0 0
    %542 = vmatpush1.bf16.msra.mxu0 0
    %543 = vmatprep.subr.bf16.mxu0 0
    %544 = vmatpush1.bf16.msra.mxu0 0
    %545 = vmatprep.subr.bf16.mxu0 0
    %546 = vmatpush1.bf16.msra.mxu0 0
    %547 = vmatprep.mubr.bf16.mxu0 0
    %548 = vmatmul.mubr.bf16.gmra.mrb[0].mxu0 %v111
    %v549 = vpop.f32.mrb[0].mxu0
    %v550 = vadd.f32 %v308, %v549
    %v551 = vpop.f32.mrb[0].mxu0
    %v552 = vadd.f32 %v310, %v551
    %v553 = vpop.f32.mrb[0].mxu0
    %v554 = vpop.f32.mrb[0].mxu0
    %555 = vdwg.mxu0
    %556 = vmatprep.subr.bf16.mxu0 %v454
    %557 = vmatpush1.bf16.msra.mxu0 %v453
    %558 = vmatprep.subr.bf16.mxu0 %v458
    %559 = vmatpush1.bf16.msra.mxu0 %v457
    %560 = vmatprep.subr.bf16.mxu0 %v462
    %561 = vmatpush1.bf16.msra.mxu0 %v461
    %562 = vmatprep.subr.bf16.mxu0 %v466
    %563 = vmatpush1.bf16.msra.mxu0 %v465
    %564 = vmatprep.subr.bf16.mxu0 %v470
    %565 = vmatpush1.bf16.msra.mxu0 %v469
    %566 = vmatprep.subr.bf16.mxu0 %v474
    %567 = vmatpush1.bf16.msra.mxu0 %v473
    %568 = vmatprep.subr.bf16.mxu0 %v478
    %569 = vmatpush1.bf16.msra.mxu0 %v477
    %570 = vmatprep.subr.bf16.mxu0 %v482
    %571 = vmatpush1.bf16.msra.mxu0 %v481
    %572 = vmatprep.subr.bf16.mxu0 0
    %573 = vmatpush1.bf16.msra.mxu0 0
    %574 = vmatprep.subr.bf16.mxu0 0
    %575 = vmatpush1.bf16.msra.mxu0 0
    %576 = vmatprep.subr.bf16.mxu0 0
    %577 = vmatpush1.bf16.msra.mxu0 0
    %578 = vmatprep.subr.bf16.mxu0 0
    %579 = vmatpush1.bf16.msra.mxu0 0
    %580 = vmatprep.subr.bf16.mxu0 0
    %581 = vmatpush1.bf16.msra.mxu0 0
    %582 = vmatprep.subr.bf16.mxu0 0
    %583 = vmatpush1.bf16.msra.mxu0 0
    %584 = vmatprep.subr.bf16.mxu0 0
    %585 = vmatpush1.bf16.msra.mxu0 0
    %586 = vmatprep.subr.bf16.mxu0 0
    %587 = vmatpush1.bf16.msra.mxu0 0
    %588 = vmatprep.mubr.bf16.mxu0 0
    %589 = vmatmul.mubr.bf16.gmra.mrb[0].mxu0 %v111
    %v590 = vpop.f32.mrb[0].mxu0
    %v591 = vadd.f32 %v349, %v590
    %v592 = vpop.f32.mrb[0].mxu0
    %v593 = vadd.f32 %v351, %v592
    %v594 = vpop.f32.mrb[0].mxu0
    %v595 = vpop.f32.mrb[0].mxu0
    %596 = vdwg.mxu0
    %v598 = vlaneseq
    %v599 = vshrl.u32 %v598, 7
    %v600 = vsub.s32 0, %v599
    %v601 = vrot.slane %v108, %v600
    %v602 = vlaneseq
    %v603 = vshrl.u32 %v602, 7
    %v604 = vsub.s32 1, %v603
    %v605 = vrot.slane %v108, %v604
    %v606 = vlaneseq
    %v607 = vshrl.u32 %v606, 7
    %v608 = vsub.s32 2, %v607
    %v609 = vrot.slane %v108, %v608
    %v610 = vlaneseq
    %v611 = vshrl.u32 %v610, 7
    %v612 = vsub.s32 3, %v611
    %v613 = vrot.slane %v108, %v612
    %v618 = vadd.f32 %v550, %v601
    %v619 = vadd.f32 %v552, %v605
    %v620 = vadd.f32 %v591, %v609
    %v621 = vadd.f32 %v593, %v613
    %v622 = vxor.u32 %v618, 2147483648
    %v623 = vmul.f32 %v622, 1.442695
    %v624 = vpow.pop %v623
    %v625 = vadd.f32 %v624, 1.0
    %v626 = vrcp.pop %v625
    %v627 = vmul.f32 1.0, %v626
    %v628 = vxor.u32 %v619, 2147483648
    %v629 = vmul.f32 %v628, 1.442695
    %v630 = vpow.pop %v629
    %v631 = vadd.f32 %v630, 1.0
    %v632 = vrcp.pop %v631
    %v633 = vmul.f32 1.0, %v632
    %v634 = vtanh.pop %v620
    %v635 = vxor.u32 %v621, 2147483648
    %v636 = vmul.f32 %v635, 1.442695
    %v637 = vpow.pop %v636
    %v638 = vadd.f32 %v637, 1.0
    %v639 = vrcp.pop %v638
    %v640 = vmul.f32 1.0, %v639
    %v641 = vmul.f32 %v633, %v110
    %v642 = vmul.f32 %v627, %v634
    %v643 = vadd.f32 %v641, %v642
    %v644 = vtanh.pop %v643
    %v645 = vmul.f32 %v640, %v644
    %s646 = smul.u32 0, 8
    %p647 = scmp.lt.s32.totalorder %s646, 8
    %s648 = scalar_select %p647, 1, 0
    %v649 = vstv %s648
    %vm650 = vcmp.eq.s32.totalorder %v649, 1
    %v651 = vsel %vm650, %v643, %v110
    %v652 = vsel %vm650, %v645, %v109
    %s653 = scalar_lea.vmem %s0, 4
    %v654 = vld [vmem:[%s653] sm:$0xf]
    %v655 = vpack.c.bf16 %v652, %v652
    %656 = vmatprep.subr.bf16.mxu0 %v210
    %657 = vmatpush1.bf16.msra.mxu0 %v209
    %658 = vmatprep.subr.bf16.mxu0 %v214
    %659 = vmatpush1.bf16.msra.mxu0 %v213
    %660 = vmatprep.subr.bf16.mxu0 %v218
    %661 = vmatpush1.bf16.msra.mxu0 %v217
    %662 = vmatprep.subr.bf16.mxu0 %v222
    %663 = vmatpush1.bf16.msra.mxu0 %v221
    %664 = vmatprep.subr.bf16.mxu0 %v226
    %665 = vmatpush1.bf16.msra.mxu0 %v225
    %666 = vmatprep.subr.bf16.mxu0 %v230
    %667 = vmatpush1.bf16.msra.mxu0 %v229
    %668 = vmatprep.subr.bf16.mxu0 %v234
    %669 = vmatpush1.bf16.msra.mxu0 %v233
    %670 = vmatprep.subr.bf16.mxu0 %v238
    %671 = vmatpush1.bf16.msra.mxu0 %v237
    %672 = vmatprep.subr.bf16.mxu0 0
    %673 = vmatpush1.bf16.msra.mxu0 0
    %674 = vmatprep.subr.bf16.mxu0 0
    %675 = vmatpush1.bf16.msra.mxu0 0
    %676 = vmatprep.subr.bf16.mxu0 0
    %677 = vmatpush1.bf16.msra.mxu0 0
    %678 = vmatprep.subr.bf16.mxu0 0
    %679 = vmatpush1.bf16.msra.mxu0 0
    %680 = vmatprep.subr.bf16.mxu0 0
    %681 = vmatpush1.bf16.msra.mxu0 0
    %682 = vmatprep.subr.bf16.mxu0 0
    %683 = vmatpush1.bf16.msra.mxu0 0
    %684 = vmatprep.subr.bf16.mxu0 0
    %685 = vmatpush1.bf16.msra.mxu0 0
    %686 = vmatprep.subr.bf16.mxu0 0
    %687 = vmatpush1.bf16.msra.mxu0 0
    %688 = vmatprep.mubr.bf16.mxu0 0
    %689 = vmatmul.mubr.bf16.gmra.mrb[0].mxu0 %v655
    %v690 = vpop.f32.mrb[0].mxu0
    %v691 = vadd.f32 0.0, %v690
    %v692 = vpop.f32.mrb[0].mxu0
    %v693 = vadd.f32 0.0, %v692
    %v694 = vpop.f32.mrb[0].mxu0
    %v695 = vpop.f32.mrb[0].mxu0
    %696 = vdwg.mxu0
    %697 = vmatprep.subr.bf16.mxu0 %v212
    %698 = vmatpush1.bf16.msra.mxu0 %v211
    %699 = vmatprep.subr.bf16.mxu0 %v216
    %700 = vmatpush1.bf16.msra.mxu0 %v215
    %701 = vmatprep.subr.bf16.mxu0 %v220
    %702 = vmatpush1.bf16.msra.mxu0 %v219
    %703 = vmatprep.subr.bf16.mxu0 %v224
    %704 = vmatpush1.bf16.msra.mxu0 %v223
    %705 = vmatprep.subr.bf16.mxu0 %v228
    %706 = vmatpush1.bf16.msra.mxu0 %v227
    %707 = vmatprep.subr.bf16.mxu0 %v232
    %708 = vmatpush1.bf16.msra.mxu0 %v231
    %709 = vmatprep.subr.bf16.mxu0 %v236
    %710 = vmatpush1.bf16.msra.mxu0 %v235
    %711 = vmatprep.subr.bf16.mxu0 %v240
    %712 = vmatpush1.bf16.msra.mxu0 %v239
    %713 = vmatprep.subr.bf16.mxu0 0
    %714 = vmatpush1.bf16.msra.mxu0 0
    %715 = vmatprep.subr.bf16.mxu0 0
    %716 = vmatpush1.bf16.msra.mxu0 0
    %717 = vmatprep.subr.bf16.mxu0 0
    %718 = vmatpush1.bf16.msra.mxu0 0
    %719 = vmatprep.subr.bf16.mxu0 0
    %720 = vmatpush1.bf16.msra.mxu0 0
    %721 = vmatprep.subr.bf16.mxu0 0
    %722 = vmatpush1.bf16.msra.mxu0 0
    %723 = vmatprep.subr.bf16.mxu0 0
    %724 = vmatpush1.bf16.msra.mxu0 0
    %725 = vmatprep.subr.bf16.mxu0 0
    %726 = vmatpush1.bf16.msra.mxu0 0
    %727 = vmatprep.subr.bf16.mxu0 0
    %728 = vmatpush1.bf16.msra.mxu0 0
    %729 = vmatprep.mubr.bf16.mxu0 0
    %730 = vmatmul.mubr.bf16.gmra.mrb[0].mxu0 %v655
    %v731 = vpop.f32.mrb[0].mxu0
    %v732 = vadd.f32 0.0, %v731
    %v733 = vpop.f32.mrb[0].mxu0
    %v734 = vadd.f32 0.0, %v733
    %v735 = vpop.f32.mrb[0].mxu0
    %v736 = vpop.f32.mrb[0].mxu0
    %737 = vdwg.mxu0
    %738 = vmatprep.subr.bf16.mxu0 %v452
    %739 = vmatpush1.bf16.msra.mxu0 %v451
    %740 = vmatprep.subr.bf16.mxu0 %v456
    %741 = vmatpush1.bf16.msra.mxu0 %v455
    %742 = vmatprep.subr.bf16.mxu0 %v460
    %743 = vmatpush1.bf16.msra.mxu0 %v459
    %744 = vmatprep.subr.bf16.mxu0 %v464
    %745 = vmatpush1.bf16.msra.mxu0 %v463
    %746 = vmatprep.subr.bf16.mxu0 %v468
    %747 = vmatpush1.bf16.msra.mxu0 %v467
    %748 = vmatprep.subr.bf16.mxu0 %v472
    %749 = vmatpush1.bf16.msra.mxu0 %v471
    %750 = vmatprep.subr.bf16.mxu0 %v476
    %751 = vmatpush1.bf16.msra.mxu0 %v475
    %752 = vmatprep.subr.bf16.mxu0 %v480
    %753 = vmatpush1.bf16.msra.mxu0 %v479
    %754 = vmatprep.subr.bf16.mxu0 0
    %755 = vmatpush1.bf16.msra.mxu0 0
    %756 = vmatprep.subr.bf16.mxu0 0
    %757 = vmatpush1.bf16.msra.mxu0 0
    %758 = vmatprep.subr.bf16.mxu0 0
    %759 = vmatpush1.bf16.msra.mxu0 0
    %760 = vmatprep.subr.bf16.mxu0 0
    %761 = vmatpush1.bf16.msra.mxu0 0
    %762 = vmatprep.subr.bf16.mxu0 0
    %763 = vmatpush1.bf16.msra.mxu0 0
    %764 = vmatprep.subr.bf16.mxu0 0
    %765 = vmatpush1.bf16.msra.mxu0 0
    %766 = vmatprep.subr.bf16.mxu0 0
    %767 = vmatpush1.bf16.msra.mxu0 0
    %768 = vmatprep.subr.bf16.mxu0 0
    %769 = vmatpush1.bf16.msra.mxu0 0
    %770 = vmatprep.mubr.bf16.mxu0 0
    %771 = vmatmul.mubr.bf16.gmra.mrb[0].mxu0 %v654
    %v772 = vpop.f32.mrb[0].mxu0
    %v773 = vadd.f32 %v691, %v772
    %v774 = vpop.f32.mrb[0].mxu0
    %v775 = vadd.f32 %v693, %v774
    %v776 = vpop.f32.mrb[0].mxu0
    %v777 = vpop.f32.mrb[0].mxu0
    %778 = vdwg.mxu0
    %779 = vmatprep.subr.bf16.mxu0 %v454
    %780 = vmatpush1.bf16.msra.mxu0 %v453
    %781 = vmatprep.subr.bf16.mxu0 %v458
    %782 = vmatpush1.bf16.msra.mxu0 %v457
    %783 = vmatprep.subr.bf16.mxu0 %v462
    %784 = vmatpush1.bf16.msra.mxu0 %v461
    %785 = vmatprep.subr.bf16.mxu0 %v466
    %786 = vmatpush1.bf16.msra.mxu0 %v465
    %787 = vmatprep.subr.bf16.mxu0 %v470
    %788 = vmatpush1.bf16.msra.mxu0 %v469
    %789 = vmatprep.subr.bf16.mxu0 %v474
    %790 = vmatpush1.bf16.msra.mxu0 %v473
    %791 = vmatprep.subr.bf16.mxu0 %v478
    %792 = vmatpush1.bf16.msra.mxu0 %v477
    %793 = vmatprep.subr.bf16.mxu0 %v482
    %794 = vmatpush1.bf16.msra.mxu0 %v481
    %795 = vmatprep.subr.bf16.mxu0 0
    %796 = vmatpush1.bf16.msra.mxu0 0
    %797 = vmatprep.subr.bf16.mxu0 0
    %798 = vmatpush1.bf16.msra.mxu0 0
    %799 = vmatprep.subr.bf16.mxu0 0
    %800 = vmatpush1.bf16.msra.mxu0 0
    %801 = vmatprep.subr.bf16.mxu0 0
    %802 = vmatpush1.bf16.msra.mxu0 0
    %803 = vmatprep.subr.bf16.mxu0 0
    %804 = vmatpush1.bf16.msra.mxu0 0
    %805 = vmatprep.subr.bf16.mxu0 0
    %806 = vmatpush1.bf16.msra.mxu0 0
    %807 = vmatprep.subr.bf16.mxu0 0
    %808 = vmatpush1.bf16.msra.mxu0 0
    %809 = vmatprep.subr.bf16.mxu0 0
    %810 = vmatpush1.bf16.msra.mxu0 0
    %811 = vmatprep.mubr.bf16.mxu0 0
    %812 = vmatmul.mubr.bf16.gmra.mrb[0].mxu0 %v654
    %v813 = vpop.f32.mrb[0].mxu0
    %v814 = vadd.f32 %v732, %v813
    %v815 = vpop.f32.mrb[0].mxu0
    %v816 = vadd.f32 %v734, %v815
    %v817 = vpop.f32.mrb[0].mxu0
    %v818 = vpop.f32.mrb[0].mxu0
    %819 = vdwg.mxu0
    %v820 = vadd.f32 %v773, %v601
    %v821 = vadd.f32 %v775, %v605
    %v822 = vadd.f32 %v814, %v609
    %v823 = vadd.f32 %v816, %v613
    %v824 = vxor.u32 %v820, 2147483648
    %v825 = vmul.f32 %v824, 1.442695
    %v826 = vpow.pop %v825
    %v827 = vadd.f32 %v826, 1.0
    %v828 = vrcp.pop %v827
    %v829 = vmul.f32 1.0, %v828
    %v830 = vxor.u32 %v821, 2147483648
    %v831 = vmul.f32 %v830, 1.442695
    %v832 = vpow.pop %v831
    %v833 = vadd.f32 %v832, 1.0
    %v834 = vrcp.pop %v833
    %v835 = vmul.f32 1.0, %v834
    %v836 = vtanh.pop %v822
    %v837 = vxor.u32 %v823, 2147483648
    %v838 = vmul.f32 %v837, 1.442695
    %v839 = vpow.pop %v838
    %v840 = vadd.f32 %v839, 1.0
    %v841 = vrcp.pop %v840
    %v842 = vmul.f32 1.0, %v841
    %v843 = vmul.f32 %v835, %v651
    %v844 = vmul.f32 %v829, %v836
    %v845 = vadd.f32 %v843, %v844
    %v846 = vtanh.pop %v845
    %v847 = vmul.f32 %v842, %v846
    %s848 = sadd.s32 %s646, 1
    %p849 = scmp.lt.s32.totalorder %s848, 8
    %s850 = scalar_select %p849, 1, 0
    %v851 = vstv %s850
    %vm852 = vcmp.eq.s32.totalorder %v851, 1
    %v853 = vsel %vm852, %v845, %v651
    %v854 = vsel %vm852, %v847, %v652
    %s855 = scalar_lea.vmem %s0, 8
    %v856 = vld [vmem:[%s855] sm:$0xf]
    %v857 = vpack.c.bf16 %v854, %v854
    %858 = vmatprep.subr.bf16.mxu0 %v210
    %859 = vmatpush1.bf16.msra.mxu0 %v209
    %860 = vmatprep.subr.bf16.mxu0 %v214
    %861 = vmatpush1.bf16.msra.mxu0 %v213
    %862 = vmatprep.subr.bf16.mxu0 %v218
    %863 = vmatpush1.bf16.msra.mxu0 %v217
    %864 = vmatprep.subr.bf16.mxu0 %v222
    %865 = vmatpush1.bf16.msra.mxu0 %v221
    %866 = vmatprep.subr.bf16.mxu0 %v226
    %867 = vmatpush1.bf16.msra.mxu0 %v225
    %868 = vmatprep.subr.bf16.mxu0 %v230
    %869 = vmatpush1.bf16.msra.mxu0 %v229
    %870 = vmatprep.subr.bf16.mxu0 %v234
    %871 = vmatpush1.bf16.msra.mxu0 %v233
    %872 = vmatprep.subr.bf16.mxu0 %v238
    %873 = vmatpush1.bf16.msra.mxu0 %v237
    %874 = vmatprep.subr.bf16.mxu0 0
    %875 = vmatpush1.bf16.msra.mxu0 0
    %876 = vmatprep.subr.bf16.mxu0 0
    %877 = vmatpush1.bf16.msra.mxu0 0
    %878 = vmatprep.subr.bf16.mxu0 0
    %879 = vmatpush1.bf16.msra.mxu0 0
    %880 = vmatprep.subr.bf16.mxu0 0
    %881 = vmatpush1.bf16.msra.mxu0 0
    %882 = vmatprep.subr.bf16.mxu0 0
    %883 = vmatpush1.bf16.msra.mxu0 0
    %884 = vmatprep.subr.bf16.mxu0 0
    %885 = vmatpush1.bf16.msra.mxu0 0
    %886 = vmatprep.subr.bf16.mxu0 0
    %887 = vmatpush1.bf16.msra.mxu0 0
    %888 = vmatprep.subr.bf16.mxu0 0
    %889 = vmatpush1.bf16.msra.mxu0 0
    %890 = vmatprep.mubr.bf16.mxu0 0
    %891 = vmatmul.mubr.bf16.gmra.mrb[0].mxu0 %v857
    %v892 = vpop.f32.mrb[0].mxu0
    %v893 = vadd.f32 0.0, %v892
    %v894 = vpop.f32.mrb[0].mxu0
    %v895 = vadd.f32 0.0, %v894
    %v896 = vpop.f32.mrb[0].mxu0
    %v897 = vpop.f32.mrb[0].mxu0
    %898 = vdwg.mxu0
    %899 = vmatprep.subr.bf16.mxu0 %v212
    %900 = vmatpush1.bf16.msra.mxu0 %v211
    %901 = vmatprep.subr.bf16.mxu0 %v216
    %902 = vmatpush1.bf16.msra.mxu0 %v215
    %903 = vmatprep.subr.bf16.mxu0 %v220
    %904 = vmatpush1.bf16.msra.mxu0 %v219
    %905 = vmatprep.subr.bf16.mxu0 %v224
    %906 = vmatpush1.bf16.msra.mxu0 %v223
    %907 = vmatprep.subr.bf16.mxu0 %v228
    %908 = vmatpush1.bf16.msra.mxu0 %v227
    %909 = vmatprep.subr.bf16.mxu0 %v232
    %910 = vmatpush1.bf16.msra.mxu0 %v231
    %911 = vmatprep.subr.bf16.mxu0 %v236
    %912 = vmatpush1.bf16.msra.mxu0 %v235
    %913 = vmatprep.subr.bf16.mxu0 %v240
    %914 = vmatpush1.bf16.msra.mxu0 %v239
    %915 = vmatprep.subr.bf16.mxu0 0
    %916 = vmatpush1.bf16.msra.mxu0 0
    %917 = vmatprep.subr.bf16.mxu0 0
    %918 = vmatpush1.bf16.msra.mxu0 0
    %919 = vmatprep.subr.bf16.mxu0 0
    %920 = vmatpush1.bf16.msra.mxu0 0
    %921 = vmatprep.subr.bf16.mxu0 0
    %922 = vmatpush1.bf16.msra.mxu0 0
    %923 = vmatprep.subr.bf16.mxu0 0
    %924 = vmatpush1.bf16.msra.mxu0 0
    %925 = vmatprep.subr.bf16.mxu0 0
    %926 = vmatpush1.bf16.msra.mxu0 0
    %927 = vmatprep.subr.bf16.mxu0 0
    %928 = vmatpush1.bf16.msra.mxu0 0
    %929 = vmatprep.subr.bf16.mxu0 0
    %930 = vmatpush1.bf16.msra.mxu0 0
    %931 = vmatprep.mubr.bf16.mxu0 0
    %932 = vmatmul.mubr.bf16.gmra.mrb[0].mxu0 %v857
    %v933 = vpop.f32.mrb[0].mxu0
    %v934 = vadd.f32 0.0, %v933
    %v935 = vpop.f32.mrb[0].mxu0
    %v936 = vadd.f32 0.0, %v935
    %v937 = vpop.f32.mrb[0].mxu0
    %v938 = vpop.f32.mrb[0].mxu0
    %939 = vdwg.mxu0
    %940 = vmatprep.subr.bf16.mxu0 %v452
    %941 = vmatpush1.bf16.msra.mxu0 %v451
    %942 = vmatprep.subr.bf16.mxu0 %v456
    %943 = vmatpush1.bf16.msra.mxu0 %v455
    %944 = vmatprep.subr.bf16.mxu0 %v460
    %945 = vmatpush1.bf16.msra.mxu0 %v459
    %946 = vmatprep.subr.bf16.mxu0 %v464
    %947 = vmatpush1.bf16.msra.mxu0 %v463
    %948 = vmatprep.subr.bf16.mxu0 %v468
    %949 = vmatpush1.bf16.msra.mxu0 %v467
    %950 = vmatprep.subr.bf16.mxu0 %v472
    %951 = vmatpush1.bf16.msra.mxu0 %v471
    %952 = vmatprep.subr.bf16.mxu0 %v476
    %953 = vmatpush1.bf16.msra.mxu0 %v475
    %954 = vmatprep.subr.bf16.mxu0 %v480
    %955 = vmatpush1.bf16.msra.mxu0 %v479
    %956 = vmatprep.subr.bf16.mxu0 0
    %957 = vmatpush1.bf16.msra.mxu0 0
    %958 = vmatprep.subr.bf16.mxu0 0
    %959 = vmatpush1.bf16.msra.mxu0 0
    %960 = vmatprep.subr.bf16.mxu0 0
    %961 = vmatpush1.bf16.msra.mxu0 0
    %962 = vmatprep.subr.bf16.mxu0 0
    %963 = vmatpush1.bf16.msra.mxu0 0
    %964 = vmatprep.subr.bf16.mxu0 0
    %965 = vmatpush1.bf16.msra.mxu0 0
    %966 = vmatprep.subr.bf16.mxu0 0
    %967 = vmatpush1.bf16.msra.mxu0 0
    %968 = vmatprep.subr.bf16.mxu0 0
    %969 = vmatpush1.bf16.msra.mxu0 0
    %970 = vmatprep.subr.bf16.mxu0 0
    %971 = vmatpush1.bf16.msra.mxu0 0
    %972 = vmatprep.mubr.bf16.mxu0 0
    %973 = vmatmul.mubr.bf16.gmra.mrb[0].mxu0 %v856
    %v974 = vpop.f32.mrb[0].mxu0
    %v975 = vadd.f32 %v893, %v974
    %v976 = vpop.f32.mrb[0].mxu0
    %v977 = vadd.f32 %v895, %v976
    %v978 = vpop.f32.mrb[0].mxu0
    %v979 = vpop.f32.mrb[0].mxu0
    %980 = vdwg.mxu0
    %981 = vmatprep.subr.bf16.mxu0 %v454
    %982 = vmatpush1.bf16.msra.mxu0 %v453
    %983 = vmatprep.subr.bf16.mxu0 %v458
    %984 = vmatpush1.bf16.msra.mxu0 %v457
    %985 = vmatprep.subr.bf16.mxu0 %v462
    %986 = vmatpush1.bf16.msra.mxu0 %v461
    %987 = vmatprep.subr.bf16.mxu0 %v466
    %988 = vmatpush1.bf16.msra.mxu0 %v465
    %989 = vmatprep.subr.bf16.mxu0 %v470
    %990 = vmatpush1.bf16.msra.mxu0 %v469
    %991 = vmatprep.subr.bf16.mxu0 %v474
    %992 = vmatpush1.bf16.msra.mxu0 %v473
    %993 = vmatprep.subr.bf16.mxu0 %v478
    %994 = vmatpush1.bf16.msra.mxu0 %v477
    %995 = vmatprep.subr.bf16.mxu0 %v482
    %996 = vmatpush1.bf16.msra.mxu0 %v481
    %997 = vmatprep.subr.bf16.mxu0 0
    %998 = vmatpush1.bf16.msra.mxu0 0
    %999 = vmatprep.subr.bf16.mxu0 0
    %1000 = vmatpush1.bf16.msra.mxu0 0
    %1001 = vmatprep.subr.bf16.mxu0 0
    %1002 = vmatpush1.bf16.msra.mxu0 0
    %1003 = vmatprep.subr.bf16.mxu0 0
    %1004 = vmatpush1.bf16.msra.mxu0 0
    %1005 = vmatprep.subr.bf16.mxu0 0
    %1006 = vmatpush1.bf16.msra.mxu0 0
    %1007 = vmatprep.subr.bf16.mxu0 0
    %1008 = vmatpush1.bf16.msra.mxu0 0
    %1009 = vmatprep.subr.bf16.mxu0 0
    %1010 = vmatpush1.bf16.msra.mxu0 0
    %1011 = vmatprep.subr.bf16.mxu0 0
    %1012 = vmatpush1.bf16.msra.mxu0 0
    %1013 = vmatprep.mubr.bf16.mxu0 0
    %1014 = vmatmul.mubr.bf16.gmra.mrb[0].mxu0 %v856
    %v1015 = vpop.f32.mrb[0].mxu0
    %v1016 = vadd.f32 %v934, %v1015
    %v1017 = vpop.f32.mrb[0].mxu0
    %v1018 = vadd.f32 %v936, %v1017
    %v1019 = vpop.f32.mrb[0].mxu0
    %v1020 = vpop.f32.mrb[0].mxu0
    %1021 = vdwg.mxu0
    %v1022 = vadd.f32 %v975, %v601
    %v1023 = vadd.f32 %v977, %v605
    %v1024 = vadd.f32 %v1016, %v609
    %v1025 = vadd.f32 %v1018, %v613
    %v1026 = vxor.u32 %v1022, 2147483648
    %v1027 = vmul.f32 %v1026, 1.442695
    %v1028 = vpow.pop %v1027
    %v1029 = vadd.f32 %v1028, 1.0
    %v1030 = vrcp.pop %v1029
    %v1031 = vmul.f32 1.0, %v1030
    %v1032 = vxor.u32 %v1023, 2147483648
    %v1033 = vmul.f32 %v1032, 1.442695
    %v1034 = vpow.pop %v1033
    %v1035 = vadd.f32 %v1034, 1.0
    %v1036 = vrcp.pop %v1035
    %v1037 = vmul.f32 1.0, %v1036
    %v1038 = vtanh.pop %v1024
    %v1039 = vxor.u32 %v1025, 2147483648
    %v1040 = vmul.f32 %v1039, 1.442695
    %v1041 = vpow.pop %v1040
    %v1042 = vadd.f32 %v1041, 1.0
    %v1043 = vrcp.pop %v1042
    %v1044 = vmul.f32 1.0, %v1043
    %v1045 = vmul.f32 %v1037, %v853
    %v1046 = vmul.f32 %v1031, %v1038
    %v1047 = vadd.f32 %v1045, %v1046
    %v1048 = vtanh.pop %v1047
    %v1049 = vmul.f32 %v1044, %v1048
    %s1050 = sadd.s32 %s646, 2
    %p1051 = scmp.lt.s32.totalorder %s1050, 8
    %s1052 = scalar_select %p1051, 1, 0
    %v1053 = vstv %s1052
    %vm1054 = vcmp.eq.s32.totalorder %v1053, 1
    %v1055 = vsel %vm1054, %v1047, %v853
    %v1056 = vsel %vm1054, %v1049, %v854
    %s1057 = scalar_lea.vmem %s0, 12
    %v1058 = vld [vmem:[%s1057] sm:$0xf]
    %v1059 = vpack.c.bf16 %v1056, %v1056
    %1060 = vmatprep.subr.bf16.mxu0 %v210
    %1061 = vmatpush1.bf16.msra.mxu0 %v209
    %1062 = vmatprep.subr.bf16.mxu0 %v214
    %1063 = vmatpush1.bf16.msra.mxu0 %v213
    %1064 = vmatprep.subr.bf16.mxu0 %v218
    %1065 = vmatpush1.bf16.msra.mxu0 %v217
    %1066 = vmatprep.subr.bf16.mxu0 %v222
    %1067 = vmatpush1.bf16.msra.mxu0 %v221
    %1068 = vmatprep.subr.bf16.mxu0 %v226
    %1069 = vmatpush1.bf16.msra.mxu0 %v225
    %1070 = vmatprep.subr.bf16.mxu0 %v230
    %1071 = vmatpush1.bf16.msra.mxu0 %v229
    %1072 = vmatprep.subr.bf16.mxu0 %v234
    %1073 = vmatpush1.bf16.msra.mxu0 %v233
    %1074 = vmatprep.subr.bf16.mxu0 %v238
    %1075 = vmatpush1.bf16.msra.mxu0 %v237
    %1076 = vmatprep.subr.bf16.mxu0 0
    %1077 = vmatpush1.bf16.msra.mxu0 0
    %1078 = vmatprep.subr.bf16.mxu0 0
    %1079 = vmatpush1.bf16.msra.mxu0 0
    %1080 = vmatprep.subr.bf16.mxu0 0
    %1081 = vmatpush1.bf16.msra.mxu0 0
    %1082 = vmatprep.subr.bf16.mxu0 0
    %1083 = vmatpush1.bf16.msra.mxu0 0
    %1084 = vmatprep.subr.bf16.mxu0 0
    %1085 = vmatpush1.bf16.msra.mxu0 0
    %1086 = vmatprep.subr.bf16.mxu0 0
    %1087 = vmatpush1.bf16.msra.mxu0 0
    %1088 = vmatprep.subr.bf16.mxu0 0
    %1089 = vmatpush1.bf16.msra.mxu0 0
    %1090 = vmatprep.subr.bf16.mxu0 0
    %1091 = vmatpush1.bf16.msra.mxu0 0
    %1092 = vmatprep.mubr.bf16.mxu0 0
    %1093 = vmatmul.mubr.bf16.gmra.mrb[0].mxu0 %v1059
    %v1094 = vpop.f32.mrb[0].mxu0
    %v1095 = vadd.f32 0.0, %v1094
    %v1096 = vpop.f32.mrb[0].mxu0
    %v1097 = vadd.f32 0.0, %v1096
    %v1098 = vpop.f32.mrb[0].mxu0
    %v1099 = vpop.f32.mrb[0].mxu0
    %1100 = vdwg.mxu0
    %1101 = vmatprep.subr.bf16.mxu0 %v212
    %1102 = vmatpush1.bf16.msra.mxu0 %v211
    %1103 = vmatprep.subr.bf16.mxu0 %v216
    %1104 = vmatpush1.bf16.msra.mxu0 %v215
    %1105 = vmatprep.subr.bf16.mxu0 %v220
    %1106 = vmatpush1.bf16.msra.mxu0 %v219
    %1107 = vmatprep.subr.bf16.mxu0 %v224
    %1108 = vmatpush1.bf16.msra.mxu0 %v223
    %1109 = vmatprep.subr.bf16.mxu0 %v228
    %1110 = vmatpush1.bf16.msra.mxu0 %v227
    %1111 = vmatprep.subr.bf16.mxu0 %v232
    %1112 = vmatpush1.bf16.msra.mxu0 %v231
    %1113 = vmatprep.subr.bf16.mxu0 %v236
    %1114 = vmatpush1.bf16.msra.mxu0 %v235
    %1115 = vmatprep.subr.bf16.mxu0 %v240
    %1116 = vmatpush1.bf16.msra.mxu0 %v239
    %1117 = vmatprep.subr.bf16.mxu0 0
    %1118 = vmatpush1.bf16.msra.mxu0 0
    %1119 = vmatprep.subr.bf16.mxu0 0
    %1120 = vmatpush1.bf16.msra.mxu0 0
    %1121 = vmatprep.subr.bf16.mxu0 0
    %1122 = vmatpush1.bf16.msra.mxu0 0
    %1123 = vmatprep.subr.bf16.mxu0 0
    %1124 = vmatpush1.bf16.msra.mxu0 0
    %1125 = vmatprep.subr.bf16.mxu0 0
    %1126 = vmatpush1.bf16.msra.mxu0 0
    %1127 = vmatprep.subr.bf16.mxu0 0
    %1128 = vmatpush1.bf16.msra.mxu0 0
    %1129 = vmatprep.subr.bf16.mxu0 0
    %1130 = vmatpush1.bf16.msra.mxu0 0
    %1131 = vmatprep.subr.bf16.mxu0 0
    %1132 = vmatpush1.bf16.msra.mxu0 0
    %1133 = vmatprep.mubr.bf16.mxu0 0
    %1134 = vmatmul.mubr.bf16.gmra.mrb[0].mxu0 %v1059
    %v1135 = vpop.f32.mrb[0].mxu0
    %v1136 = vadd.f32 0.0, %v1135
    %v1137 = vpop.f32.mrb[0].mxu0
    %v1138 = vadd.f32 0.0, %v1137
    %v1139 = vpop.f32.mrb[0].mxu0
    %v1140 = vpop.f32.mrb[0].mxu0
    %1141 = vdwg.mxu0
    %1142 = vmatprep.subr.bf16.mxu0 %v452
    %1143 = vmatpush1.bf16.msra.mxu0 %v451
    %1144 = vmatprep.subr.bf16.mxu0 %v456
    %1145 = vmatpush1.bf16.msra.mxu0 %v455
    %1146 = vmatprep.subr.bf16.mxu0 %v460
    %1147 = vmatpush1.bf16.msra.mxu0 %v459
    %1148 = vmatprep.subr.bf16.mxu0 %v464
    %1149 = vmatpush1.bf16.msra.mxu0 %v463
    %1150 = vmatprep.subr.bf16.mxu0 %v468
    %1151 = vmatpush1.bf16.msra.mxu0 %v467
    %1152 = vmatprep.subr.bf16.mxu0 %v472
    %1153 = vmatpush1.bf16.msra.mxu0 %v471
    %1154 = vmatprep.subr.bf16.mxu0 %v476
    %1155 = vmatpush1.bf16.msra.mxu0 %v475
    %1156 = vmatprep.subr.bf16.mxu0 %v480
    %1157 = vmatpush1.bf16.msra.mxu0 %v479
    %1158 = vmatprep.subr.bf16.mxu0 0
    %1159 = vmatpush1.bf16.msra.mxu0 0
    %1160 = vmatprep.subr.bf16.mxu0 0
    %1161 = vmatpush1.bf16.msra.mxu0 0
    %1162 = vmatprep.subr.bf16.mxu0 0
    %1163 = vmatpush1.bf16.msra.mxu0 0
    %1164 = vmatprep.subr.bf16.mxu0 0
    %1165 = vmatpush1.bf16.msra.mxu0 0
    %1166 = vmatprep.subr.bf16.mxu0 0
    %1167 = vmatpush1.bf16.msra.mxu0 0
    %1168 = vmatprep.subr.bf16.mxu0 0
    %1169 = vmatpush1.bf16.msra.mxu0 0
    %1170 = vmatprep.subr.bf16.mxu0 0
    %1171 = vmatpush1.bf16.msra.mxu0 0
    %1172 = vmatprep.subr.bf16.mxu0 0
    %1173 = vmatpush1.bf16.msra.mxu0 0
    %1174 = vmatprep.mubr.bf16.mxu0 0
    %1175 = vmatmul.mubr.bf16.gmra.mrb[0].mxu0 %v1058
    %v1176 = vpop.f32.mrb[0].mxu0
    %v1177 = vadd.f32 %v1095, %v1176
    %v1178 = vpop.f32.mrb[0].mxu0
    %v1179 = vadd.f32 %v1097, %v1178
    %v1180 = vpop.f32.mrb[0].mxu0
    %v1181 = vpop.f32.mrb[0].mxu0
    %1182 = vdwg.mxu0
    %1183 = vmatprep.subr.bf16.mxu0 %v454
    %1184 = vmatpush1.bf16.msra.mxu0 %v453
    %1185 = vmatprep.subr.bf16.mxu0 %v458
    %1186 = vmatpush1.bf16.msra.mxu0 %v457
    %1187 = vmatprep.subr.bf16.mxu0 %v462
    %1188 = vmatpush1.bf16.msra.mxu0 %v461
    %1189 = vmatprep.subr.bf16.mxu0 %v466
    %1190 = vmatpush1.bf16.msra.mxu0 %v465
    %1191 = vmatprep.subr.bf16.mxu0 %v470
    %1192 = vmatpush1.bf16.msra.mxu0 %v469
    %1193 = vmatprep.subr.bf16.mxu0 %v474
    %1194 = vmatpush1.bf16.msra.mxu0 %v473
    %1195 = vmatprep.subr.bf16.mxu0 %v478
    %1196 = vmatpush1.bf16.msra.mxu0 %v477
    %1197 = vmatprep.subr.bf16.mxu0 %v482
    %1198 = vmatpush1.bf16.msra.mxu0 %v481
    %1199 = vmatprep.subr.bf16.mxu0 0
    %1200 = vmatpush1.bf16.msra.mxu0 0
    %1201 = vmatprep.subr.bf16.mxu0 0
    %1202 = vmatpush1.bf16.msra.mxu0 0
    %1203 = vmatprep.subr.bf16.mxu0 0
    %1204 = vmatpush1.bf16.msra.mxu0 0
    %1205 = vmatprep.subr.bf16.mxu0 0
    %1206 = vmatpush1.bf16.msra.mxu0 0
    %1207 = vmatprep.subr.bf16.mxu0 0
    %1208 = vmatpush1.bf16.msra.mxu0 0
    %1209 = vmatprep.subr.bf16.mxu0 0
    %1210 = vmatpush1.bf16.msra.mxu0 0
    %1211 = vmatprep.subr.bf16.mxu0 0
    %1212 = vmatpush1.bf16.msra.mxu0 0
    %1213 = vmatprep.subr.bf16.mxu0 0
    %1214 = vmatpush1.bf16.msra.mxu0 0
    %1215 = vmatprep.mubr.bf16.mxu0 0
    %1216 = vmatmul.mubr.bf16.gmra.mrb[0].mxu0 %v1058
    %v1217 = vpop.f32.mrb[0].mxu0
    %v1218 = vadd.f32 %v1136, %v1217
    %v1219 = vpop.f32.mrb[0].mxu0
    %v1220 = vadd.f32 %v1138, %v1219
    %v1221 = vpop.f32.mrb[0].mxu0
    %v1222 = vpop.f32.mrb[0].mxu0
    %1223 = vdwg.mxu0
    %v1224 = vadd.f32 %v1177, %v601
    %v1225 = vadd.f32 %v1179, %v605
    %v1226 = vadd.f32 %v1218, %v609
    %v1227 = vadd.f32 %v1220, %v613
    %v1228 = vxor.u32 %v1224, 2147483648
    %v1229 = vmul.f32 %v1228, 1.442695
    %v1230 = vpow.pop %v1229
    %v1231 = vadd.f32 %v1230, 1.0
    %v1232 = vrcp.pop %v1231
    %v1233 = vmul.f32 1.0, %v1232
    %v1234 = vxor.u32 %v1225, 2147483648
    %v1235 = vmul.f32 %v1234, 1.442695
    %v1236 = vpow.pop %v1235
    %v1237 = vadd.f32 %v1236, 1.0
    %v1238 = vrcp.pop %v1237
    %v1239 = vmul.f32 1.0, %v1238
    %v1240 = vtanh.pop %v1226
    %v1241 = vxor.u32 %v1227, 2147483648
    %v1242 = vmul.f32 %v1241, 1.442695
    %v1243 = vpow.pop %v1242
    %v1244 = vadd.f32 %v1243, 1.0
    %v1245 = vrcp.pop %v1244
    %v1246 = vmul.f32 1.0, %v1245
    %v1247 = vmul.f32 %v1239, %v1055
    %v1248 = vmul.f32 %v1233, %v1240
    %v1249 = vadd.f32 %v1247, %v1248
    %v1250 = vtanh.pop %v1249
    %v1251 = vmul.f32 %v1246, %v1250
    %s1252 = sadd.s32 %s646, 3
    %p1253 = scmp.lt.s32.totalorder %s1252, 8
    %s1254 = scalar_select %p1253, 1, 0
    %v1255 = vstv %s1254
    %vm1256 = vcmp.eq.s32.totalorder %v1255, 1
    %v1257 = vsel %vm1256, %v1249, %v1055
    %v1258 = vsel %vm1256, %v1251, %v1056
    %s1259 = scalar_lea.vmem %s0, 16
    %v1260 = vld [vmem:[%s1259] sm:$0xf]
    %v1261 = vpack.c.bf16 %v1258, %v1258
    %1262 = vmatprep.subr.bf16.mxu0 %v210
    %1263 = vmatpush1.bf16.msra.mxu0 %v209
    %1264 = vmatprep.subr.bf16.mxu0 %v214
    %1265 = vmatpush1.bf16.msra.mxu0 %v213
    %1266 = vmatprep.subr.bf16.mxu0 %v218
    %1267 = vmatpush1.bf16.msra.mxu0 %v217
    %1268 = vmatprep.subr.bf16.mxu0 %v222
    %1269 = vmatpush1.bf16.msra.mxu0 %v221
    %1270 = vmatprep.subr.bf16.mxu0 %v226
    %1271 = vmatpush1.bf16.msra.mxu0 %v225
    %1272 = vmatprep.subr.bf16.mxu0 %v230
    %1273 = vmatpush1.bf16.msra.mxu0 %v229
    %1274 = vmatprep.subr.bf16.mxu0 %v234
    %1275 = vmatpush1.bf16.msra.mxu0 %v233
    %1276 = vmatprep.subr.bf16.mxu0 %v238
    %1277 = vmatpush1.bf16.msra.mxu0 %v237
    %1278 = vmatprep.subr.bf16.mxu0 0
    %1279 = vmatpush1.bf16.msra.mxu0 0
    %1280 = vmatprep.subr.bf16.mxu0 0
    %1281 = vmatpush1.bf16.msra.mxu0 0
    %1282 = vmatprep.subr.bf16.mxu0 0
    %1283 = vmatpush1.bf16.msra.mxu0 0
    %1284 = vmatprep.subr.bf16.mxu0 0
    %1285 = vmatpush1.bf16.msra.mxu0 0
    %1286 = vmatprep.subr.bf16.mxu0 0
    %1287 = vmatpush1.bf16.msra.mxu0 0
    %1288 = vmatprep.subr.bf16.mxu0 0
    %1289 = vmatpush1.bf16.msra.mxu0 0
    %1290 = vmatprep.subr.bf16.mxu0 0
    %1291 = vmatpush1.bf16.msra.mxu0 0
    %1292 = vmatprep.subr.bf16.mxu0 0
    %1293 = vmatpush1.bf16.msra.mxu0 0
    %1294 = vmatprep.mubr.bf16.mxu0 0
    %1295 = vmatmul.mubr.bf16.gmra.mrb[0].mxu0 %v1261
    %v1296 = vpop.f32.mrb[0].mxu0
    %v1297 = vadd.f32 0.0, %v1296
    %v1298 = vpop.f32.mrb[0].mxu0
    %v1299 = vadd.f32 0.0, %v1298
    %v1300 = vpop.f32.mrb[0].mxu0
    %v1301 = vpop.f32.mrb[0].mxu0
    %1302 = vdwg.mxu0
    %1303 = vmatprep.subr.bf16.mxu0 %v212
    %1304 = vmatpush1.bf16.msra.mxu0 %v211
    %1305 = vmatprep.subr.bf16.mxu0 %v216
    %1306 = vmatpush1.bf16.msra.mxu0 %v215
    %1307 = vmatprep.subr.bf16.mxu0 %v220
    %1308 = vmatpush1.bf16.msra.mxu0 %v219
    %1309 = vmatprep.subr.bf16.mxu0 %v224
    %1310 = vmatpush1.bf16.msra.mxu0 %v223
    %1311 = vmatprep.subr.bf16.mxu0 %v228
    %1312 = vmatpush1.bf16.msra.mxu0 %v227
    %1313 = vmatprep.subr.bf16.mxu0 %v232
    %1314 = vmatpush1.bf16.msra.mxu0 %v231
    %1315 = vmatprep.subr.bf16.mxu0 %v236
    %1316 = vmatpush1.bf16.msra.mxu0 %v235
    %1317 = vmatprep.subr.bf16.mxu0 %v240
    %1318 = vmatpush1.bf16.msra.mxu0 %v239
    %1319 = vmatprep.subr.bf16.mxu0 0
    %1320 = vmatpush1.bf16.msra.mxu0 0
    %1321 = vmatprep.subr.bf16.mxu0 0
    %1322 = vmatpush1.bf16.msra.mxu0 0
    %1323 = vmatprep.subr.bf16.mxu0 0
    %1324 = vmatpush1.bf16.msra.mxu0 0
    %1325 = vmatprep.subr.bf16.mxu0 0
    %1326 = vmatpush1.bf16.msra.mxu0 0
    %1327 = vmatprep.subr.bf16.mxu0 0
    %1328 = vmatpush1.bf16.msra.mxu0 0
    %1329 = vmatprep.subr.bf16.mxu0 0
    %1330 = vmatpush1.bf16.msra.mxu0 0
    %1331 = vmatprep.subr.bf16.mxu0 0
    %1332 = vmatpush1.bf16.msra.mxu0 0
    %1333 = vmatprep.subr.bf16.mxu0 0
    %1334 = vmatpush1.bf16.msra.mxu0 0
    %1335 = vmatprep.mubr.bf16.mxu0 0
    %1336 = vmatmul.mubr.bf16.gmra.mrb[0].mxu0 %v1261
    %v1337 = vpop.f32.mrb[0].mxu0
    %v1338 = vadd.f32 0.0, %v1337
    %v1339 = vpop.f32.mrb[0].mxu0
    %v1340 = vadd.f32 0.0, %v1339
    %v1341 = vpop.f32.mrb[0].mxu0
    %v1342 = vpop.f32.mrb[0].mxu0
    %1343 = vdwg.mxu0
    %1344 = vmatprep.subr.bf16.mxu0 %v452
    %1345 = vmatpush1.bf16.msra.mxu0 %v451
    %1346 = vmatprep.subr.bf16.mxu0 %v456
    %1347 = vmatpush1.bf16.msra.mxu0 %v455
    %1348 = vmatprep.subr.bf16.mxu0 %v460
    %1349 = vmatpush1.bf16.msra.mxu0 %v459
    %1350 = vmatprep.subr.bf16.mxu0 %v464
    %1351 = vmatpush1.bf16.msra.mxu0 %v463
    %1352 = vmatprep.subr.bf16.mxu0 %v468
    %1353 = vmatpush1.bf16.msra.mxu0 %v467
    %1354 = vmatprep.subr.bf16.mxu0 %v472
    %1355 = vmatpush1.bf16.msra.mxu0 %v471
    %1356 = vmatprep.subr.bf16.mxu0 %v476
    %1357 = vmatpush1.bf16.msra.mxu0 %v475
    %1358 = vmatprep.subr.bf16.mxu0 %v480
    %1359 = vmatpush1.bf16.msra.mxu0 %v479
    %1360 = vmatprep.subr.bf16.mxu0 0
    %1361 = vmatpush1.bf16.msra.mxu0 0
    %1362 = vmatprep.subr.bf16.mxu0 0
    %1363 = vmatpush1.bf16.msra.mxu0 0
    %1364 = vmatprep.subr.bf16.mxu0 0
    %1365 = vmatpush1.bf16.msra.mxu0 0
    %1366 = vmatprep.subr.bf16.mxu0 0
    %1367 = vmatpush1.bf16.msra.mxu0 0
    %1368 = vmatprep.subr.bf16.mxu0 0
    %1369 = vmatpush1.bf16.msra.mxu0 0
    %1370 = vmatprep.subr.bf16.mxu0 0
    %1371 = vmatpush1.bf16.msra.mxu0 0
    %1372 = vmatprep.subr.bf16.mxu0 0
    %1373 = vmatpush1.bf16.msra.mxu0 0
    %1374 = vmatprep.subr.bf16.mxu0 0
    %1375 = vmatpush1.bf16.msra.mxu0 0
    %1376 = vmatprep.mubr.bf16.mxu0 0
    %1377 = vmatmul.mubr.bf16.gmra.mrb[0].mxu0 %v1260
    %v1378 = vpop.f32.mrb[0].mxu0
    %v1379 = vadd.f32 %v1297, %v1378
    %v1380 = vpop.f32.mrb[0].mxu0
    %v1381 = vadd.f32 %v1299, %v1380
    %v1382 = vpop.f32.mrb[0].mxu0
    %v1383 = vpop.f32.mrb[0].mxu0
    %1384 = vdwg.mxu0
    %1385 = vmatprep.subr.bf16.mxu0 %v454
    %1386 = vmatpush1.bf16.msra.mxu0 %v453
    %1387 = vmatprep.subr.bf16.mxu0 %v458
    %1388 = vmatpush1.bf16.msra.mxu0 %v457
    %1389 = vmatprep.subr.bf16.mxu0 %v462
    %1390 = vmatpush1.bf16.msra.mxu0 %v461
    %1391 = vmatprep.subr.bf16.mxu0 %v466
    %1392 = vmatpush1.bf16.msra.mxu0 %v465
    %1393 = vmatprep.subr.bf16.mxu0 %v470
    %1394 = vmatpush1.bf16.msra.mxu0 %v469
    %1395 = vmatprep.subr.bf16.mxu0 %v474
    %1396 = vmatpush1.bf16.msra.mxu0 %v473
    %1397 = vmatprep.subr.bf16.mxu0 %v478
    %1398 = vmatpush1.bf16.msra.mxu0 %v477
    %1399 = vmatprep.subr.bf16.mxu0 %v482
    %1400 = vmatpush1.bf16.msra.mxu0 %v481
    %1401 = vmatprep.subr.bf16.mxu0 0
    %1402 = vmatpush1.bf16.msra.mxu0 0
    %1403 = vmatprep.subr.bf16.mxu0 0
    %1404 = vmatpush1.bf16.msra.mxu0 0
    %1405 = vmatprep.subr.bf16.mxu0 0
    %1406 = vmatpush1.bf16.msra.mxu0 0
    %1407 = vmatprep.subr.bf16.mxu0 0
    %1408 = vmatpush1.bf16.msra.mxu0 0
    %1409 = vmatprep.subr.bf16.mxu0 0
    %1410 = vmatpush1.bf16.msra.mxu0 0
    %1411 = vmatprep.subr.bf16.mxu0 0
    %1412 = vmatpush1.bf16.msra.mxu0 0
    %1413 = vmatprep.subr.bf16.mxu0 0
    %1414 = vmatpush1.bf16.msra.mxu0 0
    %1415 = vmatprep.subr.bf16.mxu0 0
    %1416 = vmatpush1.bf16.msra.mxu0 0
    %1417 = vmatprep.mubr.bf16.mxu0 0
    %1418 = vmatmul.mubr.bf16.gmra.mrb[0].mxu0 %v1260
    %v1419 = vpop.f32.mrb[0].mxu0
    %v1420 = vadd.f32 %v1338, %v1419
    %v1421 = vpop.f32.mrb[0].mxu0
    %v1422 = vadd.f32 %v1340, %v1421
    %v1423 = vpop.f32.mrb[0].mxu0
    %v1424 = vpop.f32.mrb[0].mxu0
    %1425 = vdwg.mxu0
    %v1426 = vadd.f32 %v1379, %v601
    %v1427 = vadd.f32 %v1381, %v605
    %v1428 = vadd.f32 %v1420, %v609
    %v1429 = vadd.f32 %v1422, %v613
    %v1430 = vxor.u32 %v1426, 2147483648
    %v1431 = vmul.f32 %v1430, 1.442695
    %v1432 = vpow.pop %v1431
    %v1433 = vadd.f32 %v1432, 1.0
    %v1434 = vrcp.pop %v1433
    %v1435 = vmul.f32 1.0, %v1434
    %v1436 = vxor.u32 %v1427, 2147483648
    %v1437 = vmul.f32 %v1436, 1.442695
    %v1438 = vpow.pop %v1437
    %v1439 = vadd.f32 %v1438, 1.0
    %v1440 = vrcp.pop %v1439
    %v1441 = vmul.f32 1.0, %v1440
    %v1442 = vtanh.pop %v1428
    %v1443 = vxor.u32 %v1429, 2147483648
    %v1444 = vmul.f32 %v1443, 1.442695
    %v1445 = vpow.pop %v1444
    %v1446 = vadd.f32 %v1445, 1.0
    %v1447 = vrcp.pop %v1446
    %v1448 = vmul.f32 1.0, %v1447
    %v1449 = vmul.f32 %v1441, %v1257
    %v1450 = vmul.f32 %v1435, %v1442
    %v1451 = vadd.f32 %v1449, %v1450
    %v1452 = vtanh.pop %v1451
    %v1453 = vmul.f32 %v1448, %v1452
    %s1454 = sadd.s32 %s646, 4
    %p1455 = scmp.lt.s32.totalorder %s1454, 8
    %s1456 = scalar_select %p1455, 1, 0
    %v1457 = vstv %s1456
    %vm1458 = vcmp.eq.s32.totalorder %v1457, 1
    %v1459 = vsel %vm1458, %v1451, %v1257
    %v1460 = vsel %vm1458, %v1453, %v1258
    %s1461 = scalar_lea.vmem %s0, 20
    %v1462 = vld [vmem:[%s1461] sm:$0xf]
    %v1463 = vpack.c.bf16 %v1460, %v1460
    %1464 = vmatprep.subr.bf16.mxu0 %v210
    %1465 = vmatpush1.bf16.msra.mxu0 %v209
    %1466 = vmatprep.subr.bf16.mxu0 %v214
    %1467 = vmatpush1.bf16.msra.mxu0 %v213
    %1468 = vmatprep.subr.bf16.mxu0 %v218
    %1469 = vmatpush1.bf16.msra.mxu0 %v217
    %1470 = vmatprep.subr.bf16.mxu0 %v222
    %1471 = vmatpush1.bf16.msra.mxu0 %v221
    %1472 = vmatprep.subr.bf16.mxu0 %v226
    %1473 = vmatpush1.bf16.msra.mxu0 %v225
    %1474 = vmatprep.subr.bf16.mxu0 %v230
    %1475 = vmatpush1.bf16.msra.mxu0 %v229
    %1476 = vmatprep.subr.bf16.mxu0 %v234
    %1477 = vmatpush1.bf16.msra.mxu0 %v233
    %1478 = vmatprep.subr.bf16.mxu0 %v238
    %1479 = vmatpush1.bf16.msra.mxu0 %v237
    %1480 = vmatprep.subr.bf16.mxu0 0
    %1481 = vmatpush1.bf16.msra.mxu0 0
    %1482 = vmatprep.subr.bf16.mxu0 0
    %1483 = vmatpush1.bf16.msra.mxu0 0
    %1484 = vmatprep.subr.bf16.mxu0 0
    %1485 = vmatpush1.bf16.msra.mxu0 0
    %1486 = vmatprep.subr.bf16.mxu0 0
    %1487 = vmatpush1.bf16.msra.mxu0 0
    %1488 = vmatprep.subr.bf16.mxu0 0
    %1489 = vmatpush1.bf16.msra.mxu0 0
    %1490 = vmatprep.subr.bf16.mxu0 0
    %1491 = vmatpush1.bf16.msra.mxu0 0
    %1492 = vmatprep.subr.bf16.mxu0 0
    %1493 = vmatpush1.bf16.msra.mxu0 0
    %1494 = vmatprep.subr.bf16.mxu0 0
    %1495 = vmatpush1.bf16.msra.mxu0 0
    %1496 = vmatprep.mubr.bf16.mxu0 0
    %1497 = vmatmul.mubr.bf16.gmra.mrb[0].mxu0 %v1463
    %v1498 = vpop.f32.mrb[0].mxu0
    %v1499 = vadd.f32 0.0, %v1498
    %v1500 = vpop.f32.mrb[0].mxu0
    %v1501 = vadd.f32 0.0, %v1500
    %v1502 = vpop.f32.mrb[0].mxu0
    %v1503 = vpop.f32.mrb[0].mxu0
    %1504 = vdwg.mxu0
    %1505 = vmatprep.subr.bf16.mxu0 %v212
    %1506 = vmatpush1.bf16.msra.mxu0 %v211
    %1507 = vmatprep.subr.bf16.mxu0 %v216
    %1508 = vmatpush1.bf16.msra.mxu0 %v215
    %1509 = vmatprep.subr.bf16.mxu0 %v220
    %1510 = vmatpush1.bf16.msra.mxu0 %v219
    %1511 = vmatprep.subr.bf16.mxu0 %v224
    %1512 = vmatpush1.bf16.msra.mxu0 %v223
    %1513 = vmatprep.subr.bf16.mxu0 %v228
    %1514 = vmatpush1.bf16.msra.mxu0 %v227
    %1515 = vmatprep.subr.bf16.mxu0 %v232
    %1516 = vmatpush1.bf16.msra.mxu0 %v231
    %1517 = vmatprep.subr.bf16.mxu0 %v236
    %1518 = vmatpush1.bf16.msra.mxu0 %v235
    %1519 = vmatprep.subr.bf16.mxu0 %v240
    %1520 = vmatpush1.bf16.msra.mxu0 %v239
    %1521 = vmatprep.subr.bf16.mxu0 0
    %1522 = vmatpush1.bf16.msra.mxu0 0
    %1523 = vmatprep.subr.bf16.mxu0 0
    %1524 = vmatpush1.bf16.msra.mxu0 0
    %1525 = vmatprep.subr.bf16.mxu0 0
    %1526 = vmatpush1.bf16.msra.mxu0 0
    %1527 = vmatprep.subr.bf16.mxu0 0
    %1528 = vmatpush1.bf16.msra.mxu0 0
    %1529 = vmatprep.subr.bf16.mxu0 0
    %1530 = vmatpush1.bf16.msra.mxu0 0
    %1531 = vmatprep.subr.bf16.mxu0 0
    %1532 = vmatpush1.bf16.msra.mxu0 0
    %1533 = vmatprep.subr.bf16.mxu0 0
    %1534 = vmatpush1.bf16.msra.mxu0 0
    %1535 = vmatprep.subr.bf16.mxu0 0
    %1536 = vmatpush1.bf16.msra.mxu0 0
    %1537 = vmatprep.mubr.bf16.mxu0 0
    %1538 = vmatmul.mubr.bf16.gmra.mrb[0].mxu0 %v1463
    %v1539 = vpop.f32.mrb[0].mxu0
    %v1540 = vadd.f32 0.0, %v1539
    %v1541 = vpop.f32.mrb[0].mxu0
    %v1542 = vadd.f32 0.0, %v1541
    %v1543 = vpop.f32.mrb[0].mxu0
    %v1544 = vpop.f32.mrb[0].mxu0
    %1545 = vdwg.mxu0
    %1546 = vmatprep.subr.bf16.mxu0 %v452
    %1547 = vmatpush1.bf16.msra.mxu0 %v451
    %1548 = vmatprep.subr.bf16.mxu0 %v456
    %1549 = vmatpush1.bf16.msra.mxu0 %v455
    %1550 = vmatprep.subr.bf16.mxu0 %v460
    %1551 = vmatpush1.bf16.msra.mxu0 %v459
    %1552 = vmatprep.subr.bf16.mxu0 %v464
    %1553 = vmatpush1.bf16.msra.mxu0 %v463
    %1554 = vmatprep.subr.bf16.mxu0 %v468
    %1555 = vmatpush1.bf16.msra.mxu0 %v467
    %1556 = vmatprep.subr.bf16.mxu0 %v472
    %1557 = vmatpush1.bf16.msra.mxu0 %v471
    %1558 = vmatprep.subr.bf16.mxu0 %v476
    %1559 = vmatpush1.bf16.msra.mxu0 %v475
    %1560 = vmatprep.subr.bf16.mxu0 %v480
    %1561 = vmatpush1.bf16.msra.mxu0 %v479
    %1562 = vmatprep.subr.bf16.mxu0 0
    %1563 = vmatpush1.bf16.msra.mxu0 0
    %1564 = vmatprep.subr.bf16.mxu0 0
    %1565 = vmatpush1.bf16.msra.mxu0 0
    %1566 = vmatprep.subr.bf16.mxu0 0
    %1567 = vmatpush1.bf16.msra.mxu0 0
    %1568 = vmatprep.subr.bf16.mxu0 0
    %1569 = vmatpush1.bf16.msra.mxu0 0
    %1570 = vmatprep.subr.bf16.mxu0 0
    %1571 = vmatpush1.bf16.msra.mxu0 0
    %1572 = vmatprep.subr.bf16.mxu0 0
    %1573 = vmatpush1.bf16.msra.mxu0 0
    %1574 = vmatprep.subr.bf16.mxu0 0
    %1575 = vmatpush1.bf16.msra.mxu0 0
    %1576 = vmatprep.subr.bf16.mxu0 0
    %1577 = vmatpush1.bf16.msra.mxu0 0
    %1578 = vmatprep.mubr.bf16.mxu0 0
    %1579 = vmatmul.mubr.bf16.gmra.mrb[0].mxu0 %v1462
    %v1580 = vpop.f32.mrb[0].mxu0
    %v1581 = vadd.f32 %v1499, %v1580
    %v1582 = vpop.f32.mrb[0].mxu0
    %v1583 = vadd.f32 %v1501, %v1582
    %v1584 = vpop.f32.mrb[0].mxu0
    %v1585 = vpop.f32.mrb[0].mxu0
    %1586 = vdwg.mxu0
    %1587 = vmatprep.subr.bf16.mxu0 %v454
    %1588 = vmatpush1.bf16.msra.mxu0 %v453
    %1589 = vmatprep.subr.bf16.mxu0 %v458
    %1590 = vmatpush1.bf16.msra.mxu0 %v457
    %1591 = vmatprep.subr.bf16.mxu0 %v462
    %1592 = vmatpush1.bf16.msra.mxu0 %v461
    %1593 = vmatprep.subr.bf16.mxu0 %v466
    %1594 = vmatpush1.bf16.msra.mxu0 %v465
    %1595 = vmatprep.subr.bf16.mxu0 %v470
    %1596 = vmatpush1.bf16.msra.mxu0 %v469
    %1597 = vmatprep.subr.bf16.mxu0 %v474
    %1598 = vmatpush1.bf16.msra.mxu0 %v473
    %1599 = vmatprep.subr.bf16.mxu0 %v478
    %1600 = vmatpush1.bf16.msra.mxu0 %v477
    %1601 = vmatprep.subr.bf16.mxu0 %v482
    %1602 = vmatpush1.bf16.msra.mxu0 %v481
    %1603 = vmatprep.subr.bf16.mxu0 0
    %1604 = vmatpush1.bf16.msra.mxu0 0
    %1605 = vmatprep.subr.bf16.mxu0 0
    %1606 = vmatpush1.bf16.msra.mxu0 0
    %1607 = vmatprep.subr.bf16.mxu0 0
    %1608 = vmatpush1.bf16.msra.mxu0 0
    %1609 = vmatprep.subr.bf16.mxu0 0
    %1610 = vmatpush1.bf16.msra.mxu0 0
    %1611 = vmatprep.subr.bf16.mxu0 0
    %1612 = vmatpush1.bf16.msra.mxu0 0
    %1613 = vmatprep.subr.bf16.mxu0 0
    %1614 = vmatpush1.bf16.msra.mxu0 0
    %1615 = vmatprep.subr.bf16.mxu0 0
    %1616 = vmatpush1.bf16.msra.mxu0 0
    %1617 = vmatprep.subr.bf16.mxu0 0
    %1618 = vmatpush1.bf16.msra.mxu0 0
    %1619 = vmatprep.mubr.bf16.mxu0 0
    %1620 = vmatmul.mubr.bf16.gmra.mrb[0].mxu0 %v1462
    %v1621 = vpop.f32.mrb[0].mxu0
    %v1622 = vadd.f32 %v1540, %v1621
    %v1623 = vpop.f32.mrb[0].mxu0
    %v1624 = vadd.f32 %v1542, %v1623
    %v1625 = vpop.f32.mrb[0].mxu0
    %v1626 = vpop.f32.mrb[0].mxu0
    %1627 = vdwg.mxu0
    %v1628 = vadd.f32 %v1581, %v601
    %v1629 = vadd.f32 %v1583, %v605
    %v1630 = vadd.f32 %v1622, %v609
    %v1631 = vadd.f32 %v1624, %v613
    %v1632 = vxor.u32 %v1628, 2147483648
    %v1633 = vmul.f32 %v1632, 1.442695
    %v1634 = vpow.pop %v1633
    %v1635 = vadd.f32 %v1634, 1.0
    %v1636 = vrcp.pop %v1635
    %v1637 = vmul.f32 1.0, %v1636
    %v1638 = vxor.u32 %v1629, 2147483648
    %v1639 = vmul.f32 %v1638, 1.442695
    %v1640 = vpow.pop %v1639
    %v1641 = vadd.f32 %v1640, 1.0
    %v1642 = vrcp.pop %v1641
    %v1643 = vmul.f32 1.0, %v1642
    %v1644 = vtanh.pop %v1630
    %v1645 = vxor.u32 %v1631, 2147483648
    %v1646 = vmul.f32 %v1645, 1.442695
    %v1647 = vpow.pop %v1646
    %v1648 = vadd.f32 %v1647, 1.0
    %v1649 = vrcp.pop %v1648
    %v1650 = vmul.f32 1.0, %v1649
    %v1651 = vmul.f32 %v1643, %v1459
    %v1652 = vmul.f32 %v1637, %v1644
    %v1653 = vadd.f32 %v1651, %v1652
    %v1654 = vtanh.pop %v1653
    %v1655 = vmul.f32 %v1650, %v1654
    %s1656 = sadd.s32 %s646, 5
    %p1657 = scmp.lt.s32.totalorder %s1656, 8
    %s1658 = scalar_select %p1657, 1, 0
    %v1659 = vstv %s1658
    %vm1660 = vcmp.eq.s32.totalorder %v1659, 1
    %v1661 = vsel %vm1660, %v1653, %v1459
    %v1662 = vsel %vm1660, %v1655, %v1460
    %s1663 = scalar_lea.vmem %s0, 24
    %v1664 = vld [vmem:[%s1663] sm:$0xf]
    %v1665 = vpack.c.bf16 %v1662, %v1662
    %1666 = vmatprep.subr.bf16.mxu0 %v210
    %1667 = vmatpush1.bf16.msra.mxu0 %v209
    %1668 = vmatprep.subr.bf16.mxu0 %v214
    %1669 = vmatpush1.bf16.msra.mxu0 %v213
    %1670 = vmatprep.subr.bf16.mxu0 %v218
    %1671 = vmatpush1.bf16.msra.mxu0 %v217
    %1672 = vmatprep.subr.bf16.mxu0 %v222
    %1673 = vmatpush1.bf16.msra.mxu0 %v221
    %1674 = vmatprep.subr.bf16.mxu0 %v226
    %1675 = vmatpush1.bf16.msra.mxu0 %v225
    %1676 = vmatprep.subr.bf16.mxu0 %v230
    %1677 = vmatpush1.bf16.msra.mxu0 %v229
    %1678 = vmatprep.subr.bf16.mxu0 %v234
    %1679 = vmatpush1.bf16.msra.mxu0 %v233
    %1680 = vmatprep.subr.bf16.mxu0 %v238
    %1681 = vmatpush1.bf16.msra.mxu0 %v237
    %1682 = vmatprep.subr.bf16.mxu0 0
    %1683 = vmatpush1.bf16.msra.mxu0 0
    %1684 = vmatprep.subr.bf16.mxu0 0
    %1685 = vmatpush1.bf16.msra.mxu0 0
    %1686 = vmatprep.subr.bf16.mxu0 0
    %1687 = vmatpush1.bf16.msra.mxu0 0
    %1688 = vmatprep.subr.bf16.mxu0 0
    %1689 = vmatpush1.bf16.msra.mxu0 0
    %1690 = vmatprep.subr.bf16.mxu0 0
    %1691 = vmatpush1.bf16.msra.mxu0 0
    %1692 = vmatprep.subr.bf16.mxu0 0
    %1693 = vmatpush1.bf16.msra.mxu0 0
    %1694 = vmatprep.subr.bf16.mxu0 0
    %1695 = vmatpush1.bf16.msra.mxu0 0
    %1696 = vmatprep.subr.bf16.mxu0 0
    %1697 = vmatpush1.bf16.msra.mxu0 0
    %1698 = vmatprep.mubr.bf16.mxu0 0
    %1699 = vmatmul.mubr.bf16.gmra.mrb[0].mxu0 %v1665
    %v1700 = vpop.f32.mrb[0].mxu0
    %v1701 = vadd.f32 0.0, %v1700
    %v1702 = vpop.f32.mrb[0].mxu0
    %v1703 = vadd.f32 0.0, %v1702
    %v1704 = vpop.f32.mrb[0].mxu0
    %v1705 = vpop.f32.mrb[0].mxu0
    %1706 = vdwg.mxu0
    %1707 = vmatprep.subr.bf16.mxu0 %v212
    %1708 = vmatpush1.bf16.msra.mxu0 %v211
    %1709 = vmatprep.subr.bf16.mxu0 %v216
    %1710 = vmatpush1.bf16.msra.mxu0 %v215
    %1711 = vmatprep.subr.bf16.mxu0 %v220
    %1712 = vmatpush1.bf16.msra.mxu0 %v219
    %1713 = vmatprep.subr.bf16.mxu0 %v224
    %1714 = vmatpush1.bf16.msra.mxu0 %v223
    %1715 = vmatprep.subr.bf16.mxu0 %v228
    %1716 = vmatpush1.bf16.msra.mxu0 %v227
    %1717 = vmatprep.subr.bf16.mxu0 %v232
    %1718 = vmatpush1.bf16.msra.mxu0 %v231
    %1719 = vmatprep.subr.bf16.mxu0 %v236
    %1720 = vmatpush1.bf16.msra.mxu0 %v235
    %1721 = vmatprep.subr.bf16.mxu0 %v240
    %1722 = vmatpush1.bf16.msra.mxu0 %v239
    %1723 = vmatprep.subr.bf16.mxu0 0
    %1724 = vmatpush1.bf16.msra.mxu0 0
    %1725 = vmatprep.subr.bf16.mxu0 0
    %1726 = vmatpush1.bf16.msra.mxu0 0
    %1727 = vmatprep.subr.bf16.mxu0 0
    %1728 = vmatpush1.bf16.msra.mxu0 0
    %1729 = vmatprep.subr.bf16.mxu0 0
    %1730 = vmatpush1.bf16.msra.mxu0 0
    %1731 = vmatprep.subr.bf16.mxu0 0
    %1732 = vmatpush1.bf16.msra.mxu0 0
    %1733 = vmatprep.subr.bf16.mxu0 0
    %1734 = vmatpush1.bf16.msra.mxu0 0
    %1735 = vmatprep.subr.bf16.mxu0 0
    %1736 = vmatpush1.bf16.msra.mxu0 0
    %1737 = vmatprep.subr.bf16.mxu0 0
    %1738 = vmatpush1.bf16.msra.mxu0 0
    %1739 = vmatprep.mubr.bf16.mxu0 0
    %1740 = vmatmul.mubr.bf16.gmra.mrb[0].mxu0 %v1665
    %v1741 = vpop.f32.mrb[0].mxu0
    %v1742 = vadd.f32 0.0, %v1741
    %v1743 = vpop.f32.mrb[0].mxu0
    %v1744 = vadd.f32 0.0, %v1743
    %v1745 = vpop.f32.mrb[0].mxu0
    %v1746 = vpop.f32.mrb[0].mxu0
    %1747 = vdwg.mxu0
    %1748 = vmatprep.subr.bf16.mxu0 %v452
    %1749 = vmatpush1.bf16.msra.mxu0 %v451
    %1750 = vmatprep.subr.bf16.mxu0 %v456
    %1751 = vmatpush1.bf16.msra.mxu0 %v455
    %1752 = vmatprep.subr.bf16.mxu0 %v460
    %1753 = vmatpush1.bf16.msra.mxu0 %v459
    %1754 = vmatprep.subr.bf16.mxu0 %v464
    %1755 = vmatpush1.bf16.msra.mxu0 %v463
    %1756 = vmatprep.subr.bf16.mxu0 %v468
    %1757 = vmatpush1.bf16.msra.mxu0 %v467
    %1758 = vmatprep.subr.bf16.mxu0 %v472
    %1759 = vmatpush1.bf16.msra.mxu0 %v471
    %1760 = vmatprep.subr.bf16.mxu0 %v476
    %1761 = vmatpush1.bf16.msra.mxu0 %v475
    %1762 = vmatprep.subr.bf16.mxu0 %v480
    %1763 = vmatpush1.bf16.msra.mxu0 %v479
    %1764 = vmatprep.subr.bf16.mxu0 0
    %1765 = vmatpush1.bf16.msra.mxu0 0
    %1766 = vmatprep.subr.bf16.mxu0 0
    %1767 = vmatpush1.bf16.msra.mxu0 0
    %1768 = vmatprep.subr.bf16.mxu0 0
    %1769 = vmatpush1.bf16.msra.mxu0 0
    %1770 = vmatprep.subr.bf16.mxu0 0
    %1771 = vmatpush1.bf16.msra.mxu0 0
    %1772 = vmatprep.subr.bf16.mxu0 0
    %1773 = vmatpush1.bf16.msra.mxu0 0
    %1774 = vmatprep.subr.bf16.mxu0 0
    %1775 = vmatpush1.bf16.msra.mxu0 0
    %1776 = vmatprep.subr.bf16.mxu0 0
    %1777 = vmatpush1.bf16.msra.mxu0 0
    %1778 = vmatprep.subr.bf16.mxu0 0
    %1779 = vmatpush1.bf16.msra.mxu0 0
    %1780 = vmatprep.mubr.bf16.mxu0 0
    %1781 = vmatmul.mubr.bf16.gmra.mrb[0].mxu0 %v1664
    %v1782 = vpop.f32.mrb[0].mxu0
    %v1783 = vadd.f32 %v1701, %v1782
    %v1784 = vpop.f32.mrb[0].mxu0
    %v1785 = vadd.f32 %v1703, %v1784
    %v1786 = vpop.f32.mrb[0].mxu0
    %v1787 = vpop.f32.mrb[0].mxu0
    %1788 = vdwg.mxu0
    %1789 = vmatprep.subr.bf16.mxu0 %v454
    %1790 = vmatpush1.bf16.msra.mxu0 %v453
    %1791 = vmatprep.subr.bf16.mxu0 %v458
    %1792 = vmatpush1.bf16.msra.mxu0 %v457
    %1793 = vmatprep.subr.bf16.mxu0 %v462
    %1794 = vmatpush1.bf16.msra.mxu0 %v461
    %1795 = vmatprep.subr.bf16.mxu0 %v466
    %1796 = vmatpush1.bf16.msra.mxu0 %v465
    %1797 = vmatprep.subr.bf16.mxu0 %v470
    %1798 = vmatpush1.bf16.msra.mxu0 %v469
    %1799 = vmatprep.subr.bf16.mxu0 %v474
    %1800 = vmatpush1.bf16.msra.mxu0 %v473
    %1801 = vmatprep.subr.bf16.mxu0 %v478
    %1802 = vmatpush1.bf16.msra.mxu0 %v477
    %1803 = vmatprep.subr.bf16.mxu0 %v482
    %1804 = vmatpush1.bf16.msra.mxu0 %v481
    %1805 = vmatprep.subr.bf16.mxu0 0
    %1806 = vmatpush1.bf16.msra.mxu0 0
    %1807 = vmatprep.subr.bf16.mxu0 0
    %1808 = vmatpush1.bf16.msra.mxu0 0
    %1809 = vmatprep.subr.bf16.mxu0 0
    %1810 = vmatpush1.bf16.msra.mxu0 0
    %1811 = vmatprep.subr.bf16.mxu0 0
    %1812 = vmatpush1.bf16.msra.mxu0 0
    %1813 = vmatprep.subr.bf16.mxu0 0
    %1814 = vmatpush1.bf16.msra.mxu0 0
    %1815 = vmatprep.subr.bf16.mxu0 0
    %1816 = vmatpush1.bf16.msra.mxu0 0
    %1817 = vmatprep.subr.bf16.mxu0 0
    %1818 = vmatpush1.bf16.msra.mxu0 0
    %1819 = vmatprep.subr.bf16.mxu0 0
    %1820 = vmatpush1.bf16.msra.mxu0 0
    %1821 = vmatprep.mubr.bf16.mxu0 0
    %1822 = vmatmul.mubr.bf16.gmra.mrb[0].mxu0 %v1664
    %v1823 = vpop.f32.mrb[0].mxu0
    %v1824 = vadd.f32 %v1742, %v1823
    %v1825 = vpop.f32.mrb[0].mxu0
    %v1826 = vadd.f32 %v1744, %v1825
    %v1827 = vpop.f32.mrb[0].mxu0
    %v1828 = vpop.f32.mrb[0].mxu0
    %1829 = vdwg.mxu0
    %v1830 = vadd.f32 %v1783, %v601
    %v1831 = vadd.f32 %v1785, %v605
    %v1832 = vadd.f32 %v1824, %v609
    %v1833 = vadd.f32 %v1826, %v613
    %v1834 = vxor.u32 %v1830, 2147483648
    %v1835 = vmul.f32 %v1834, 1.442695
    %v1836 = vpow.pop %v1835
    %v1837 = vadd.f32 %v1836, 1.0
    %v1838 = vrcp.pop %v1837
    %v1839 = vmul.f32 1.0, %v1838
    %v1840 = vxor.u32 %v1831, 2147483648
    %v1841 = vmul.f32 %v1840, 1.442695
    %v1842 = vpow.pop %v1841
    %v1843 = vadd.f32 %v1842, 1.0
    %v1844 = vrcp.pop %v1843
    %v1845 = vmul.f32 1.0, %v1844
    %v1846 = vtanh.pop %v1832
    %v1847 = vxor.u32 %v1833, 2147483648
    %v1848 = vmul.f32 %v1847, 1.442695
    %v1849 = vpow.pop %v1848
    %v1850 = vadd.f32 %v1849, 1.0
    %v1851 = vrcp.pop %v1850
    %v1852 = vmul.f32 1.0, %v1851
    %v1853 = vmul.f32 %v1845, %v1661
    %v1854 = vmul.f32 %v1839, %v1846
    %v1855 = vadd.f32 %v1853, %v1854
    %v1856 = vtanh.pop %v1855
    %v1857 = vmul.f32 %v1852, %v1856
    %s1858 = sadd.s32 %s646, 6
    %p1859 = scmp.lt.s32.totalorder %s1858, 8
    %s1860 = scalar_select %p1859, 1, 0
    %v1861 = vstv %s1860
    %vm1862 = vcmp.eq.s32.totalorder %v1861, 1
    %v1863 = vsel %vm1862, %v1855, %v1661
    %v1864 = vsel %vm1862, %v1857, %v1662
    %s1865 = scalar_lea.vmem %s0, 28
    %v1866 = vld [vmem:[%s1865] sm:$0xf]
    %v1867 = vpack.c.bf16 %v1864, %v1864
    %1868 = vmatprep.subr.bf16.mxu0 %v210
    %1869 = vmatpush1.bf16.msra.mxu0 %v209
    %1870 = vmatprep.subr.bf16.mxu0 %v214
    %1871 = vmatpush1.bf16.msra.mxu0 %v213
    %1872 = vmatprep.subr.bf16.mxu0 %v218
    %1873 = vmatpush1.bf16.msra.mxu0 %v217
    %1874 = vmatprep.subr.bf16.mxu0 %v222
    %1875 = vmatpush1.bf16.msra.mxu0 %v221
    %1876 = vmatprep.subr.bf16.mxu0 %v226
    %1877 = vmatpush1.bf16.msra.mxu0 %v225
    %1878 = vmatprep.subr.bf16.mxu0 %v230
    %1879 = vmatpush1.bf16.msra.mxu0 %v229
    %1880 = vmatprep.subr.bf16.mxu0 %v234
    %1881 = vmatpush1.bf16.msra.mxu0 %v233
    %1882 = vmatprep.subr.bf16.mxu0 %v238
    %1883 = vmatpush1.bf16.msra.mxu0 %v237
    %1884 = vmatprep.subr.bf16.mxu0 0
    %1885 = vmatpush1.bf16.msra.mxu0 0
    %1886 = vmatprep.subr.bf16.mxu0 0
    %1887 = vmatpush1.bf16.msra.mxu0 0
    %1888 = vmatprep.subr.bf16.mxu0 0
    %1889 = vmatpush1.bf16.msra.mxu0 0
    %1890 = vmatprep.subr.bf16.mxu0 0
    %1891 = vmatpush1.bf16.msra.mxu0 0
    %1892 = vmatprep.subr.bf16.mxu0 0
    %1893 = vmatpush1.bf16.msra.mxu0 0
    %1894 = vmatprep.subr.bf16.mxu0 0
    %1895 = vmatpush1.bf16.msra.mxu0 0
    %1896 = vmatprep.subr.bf16.mxu0 0
    %1897 = vmatpush1.bf16.msra.mxu0 0
    %1898 = vmatprep.subr.bf16.mxu0 0
    %1899 = vmatpush1.bf16.msra.mxu0 0
    %1900 = vmatprep.mubr.bf16.mxu0 0
    %1901 = vmatmul.mubr.bf16.gmra.mrb[0].mxu0 %v1867
    %v1902 = vpop.f32.mrb[0].mxu0
    %v1903 = vadd.f32 0.0, %v1902
    %v1904 = vpop.f32.mrb[0].mxu0
    %v1905 = vadd.f32 0.0, %v1904
    %v1906 = vpop.f32.mrb[0].mxu0
    %v1907 = vpop.f32.mrb[0].mxu0
    %1908 = vdwg.mxu0
    %1909 = vmatprep.subr.bf16.mxu0 %v212
    %1910 = vmatpush1.bf16.msra.mxu0 %v211
    %1911 = vmatprep.subr.bf16.mxu0 %v216
    %1912 = vmatpush1.bf16.msra.mxu0 %v215
    %1913 = vmatprep.subr.bf16.mxu0 %v220
    %1914 = vmatpush1.bf16.msra.mxu0 %v219
    %1915 = vmatprep.subr.bf16.mxu0 %v224
    %1916 = vmatpush1.bf16.msra.mxu0 %v223
    %1917 = vmatprep.subr.bf16.mxu0 %v228
    %1918 = vmatpush1.bf16.msra.mxu0 %v227
    %1919 = vmatprep.subr.bf16.mxu0 %v232
    %1920 = vmatpush1.bf16.msra.mxu0 %v231
    %1921 = vmatprep.subr.bf16.mxu0 %v236
    %1922 = vmatpush1.bf16.msra.mxu0 %v235
    %1923 = vmatprep.subr.bf16.mxu0 %v240
    %1924 = vmatpush1.bf16.msra.mxu0 %v239
    %1925 = vmatprep.subr.bf16.mxu0 0
    %1926 = vmatpush1.bf16.msra.mxu0 0
    %1927 = vmatprep.subr.bf16.mxu0 0
    %1928 = vmatpush1.bf16.msra.mxu0 0
    %1929 = vmatprep.subr.bf16.mxu0 0
    %1930 = vmatpush1.bf16.msra.mxu0 0
    %1931 = vmatprep.subr.bf16.mxu0 0
    %1932 = vmatpush1.bf16.msra.mxu0 0
    %1933 = vmatprep.subr.bf16.mxu0 0
    %1934 = vmatpush1.bf16.msra.mxu0 0
    %1935 = vmatprep.subr.bf16.mxu0 0
    %1936 = vmatpush1.bf16.msra.mxu0 0
    %1937 = vmatprep.subr.bf16.mxu0 0
    %1938 = vmatpush1.bf16.msra.mxu0 0
    %1939 = vmatprep.subr.bf16.mxu0 0
    %1940 = vmatpush1.bf16.msra.mxu0 0
    %1941 = vmatprep.mubr.bf16.mxu0 0
    %1942 = vmatmul.mubr.bf16.gmra.mrb[0].mxu0 %v1867
    %v1943 = vpop.f32.mrb[0].mxu0
    %v1944 = vadd.f32 0.0, %v1943
    %v1945 = vpop.f32.mrb[0].mxu0
    %v1946 = vadd.f32 0.0, %v1945
    %v1947 = vpop.f32.mrb[0].mxu0
    %v1948 = vpop.f32.mrb[0].mxu0
    %1949 = vdwg.mxu0
    %1950 = vmatprep.subr.bf16.mxu0 %v452
    %1951 = vmatpush1.bf16.msra.mxu0 %v451
    %1952 = vmatprep.subr.bf16.mxu0 %v456
    %1953 = vmatpush1.bf16.msra.mxu0 %v455
    %1954 = vmatprep.subr.bf16.mxu0 %v460
    %1955 = vmatpush1.bf16.msra.mxu0 %v459
    %1956 = vmatprep.subr.bf16.mxu0 %v464
    %1957 = vmatpush1.bf16.msra.mxu0 %v463
    %1958 = vmatprep.subr.bf16.mxu0 %v468
    %1959 = vmatpush1.bf16.msra.mxu0 %v467
    %1960 = vmatprep.subr.bf16.mxu0 %v472
    %1961 = vmatpush1.bf16.msra.mxu0 %v471
    %1962 = vmatprep.subr.bf16.mxu0 %v476
    %1963 = vmatpush1.bf16.msra.mxu0 %v475
    %1964 = vmatprep.subr.bf16.mxu0 %v480
    %1965 = vmatpush1.bf16.msra.mxu0 %v479
    %1966 = vmatprep.subr.bf16.mxu0 0
    %1967 = vmatpush1.bf16.msra.mxu0 0
    %1968 = vmatprep.subr.bf16.mxu0 0
    %1969 = vmatpush1.bf16.msra.mxu0 0
    %1970 = vmatprep.subr.bf16.mxu0 0
    %1971 = vmatpush1.bf16.msra.mxu0 0
    %1972 = vmatprep.subr.bf16.mxu0 0
    %1973 = vmatpush1.bf16.msra.mxu0 0
    %1974 = vmatprep.subr.bf16.mxu0 0
    %1975 = vmatpush1.bf16.msra.mxu0 0
    %1976 = vmatprep.subr.bf16.mxu0 0
    %1977 = vmatpush1.bf16.msra.mxu0 0
    %1978 = vmatprep.subr.bf16.mxu0 0
    %1979 = vmatpush1.bf16.msra.mxu0 0
    %1980 = vmatprep.subr.bf16.mxu0 0
    %1981 = vmatpush1.bf16.msra.mxu0 0
    %1982 = vmatprep.mubr.bf16.mxu0 0
    %1983 = vmatmul.mubr.bf16.gmra.mrb[0].mxu0 %v1866
    %v1984 = vpop.f32.mrb[0].mxu0
    %v1985 = vadd.f32 %v1903, %v1984
    %v1986 = vpop.f32.mrb[0].mxu0
    %v1987 = vadd.f32 %v1905, %v1986
    %v1988 = vpop.f32.mrb[0].mxu0
    %v1989 = vpop.f32.mrb[0].mxu0
    %1990 = vdwg.mxu0
    %1991 = vmatprep.subr.bf16.mxu0 %v454
    %1992 = vmatpush1.bf16.msra.mxu0 %v453
    %1993 = vmatprep.subr.bf16.mxu0 %v458
    %1994 = vmatpush1.bf16.msra.mxu0 %v457
    %1995 = vmatprep.subr.bf16.mxu0 %v462
    %1996 = vmatpush1.bf16.msra.mxu0 %v461
    %1997 = vmatprep.subr.bf16.mxu0 %v466
    %1998 = vmatpush1.bf16.msra.mxu0 %v465
    %1999 = vmatprep.subr.bf16.mxu0 %v470
    %2000 = vmatpush1.bf16.msra.mxu0 %v469
    %2001 = vmatprep.subr.bf16.mxu0 %v474
    %2002 = vmatpush1.bf16.msra.mxu0 %v473
    %2003 = vmatprep.subr.bf16.mxu0 %v478
    %2004 = vmatpush1.bf16.msra.mxu0 %v477
    %2005 = vmatprep.subr.bf16.mxu0 %v482
    %2006 = vmatpush1.bf16.msra.mxu0 %v481
    %2007 = vmatprep.subr.bf16.mxu0 0
    %2008 = vmatpush1.bf16.msra.mxu0 0
    %2009 = vmatprep.subr.bf16.mxu0 0
    %2010 = vmatpush1.bf16.msra.mxu0 0
    %2011 = vmatprep.subr.bf16.mxu0 0
    %2012 = vmatpush1.bf16.msra.mxu0 0
    %2013 = vmatprep.subr.bf16.mxu0 0
    %2014 = vmatpush1.bf16.msra.mxu0 0
    %2015 = vmatprep.subr.bf16.mxu0 0
    %2016 = vmatpush1.bf16.msra.mxu0 0
    %2017 = vmatprep.subr.bf16.mxu0 0
    %2018 = vmatpush1.bf16.msra.mxu0 0
    %2019 = vmatprep.subr.bf16.mxu0 0
    %2020 = vmatpush1.bf16.msra.mxu0 0
    %2021 = vmatprep.subr.bf16.mxu0 0
    %2022 = vmatpush1.bf16.msra.mxu0 0
    %2023 = vmatprep.mubr.bf16.mxu0 0
    %2024 = vmatmul.mubr.bf16.gmra.mrb[0].mxu0 %v1866
    %v2025 = vpop.f32.mrb[0].mxu0
    %v2026 = vadd.f32 %v1944, %v2025
    %v2027 = vpop.f32.mrb[0].mxu0
    %v2028 = vadd.f32 %v1946, %v2027
    %v2029 = vpop.f32.mrb[0].mxu0
    %v2030 = vpop.f32.mrb[0].mxu0
    %2031 = vdwg.mxu0
    %v2032 = vadd.f32 %v1985, %v601
    %v2033 = vadd.f32 %v1987, %v605
    %v2034 = vadd.f32 %v2026, %v609
    %v2035 = vadd.f32 %v2028, %v613
    %v2036 = vxor.u32 %v2032, 2147483648
    %v2037 = vmul.f32 %v2036, 1.442695
    %v2038 = vpow.pop %v2037
    %v2039 = vadd.f32 %v2038, 1.0
    %v2040 = vrcp.pop %v2039
    %v2041 = vmul.f32 1.0, %v2040
    %v2042 = vxor.u32 %v2033, 2147483648
    %v2043 = vmul.f32 %v2042, 1.442695
    %v2044 = vpow.pop %v2043
    %v2045 = vadd.f32 %v2044, 1.0
    %v2046 = vrcp.pop %v2045
    %v2047 = vmul.f32 1.0, %v2046
    %v2048 = vtanh.pop %v2034
    %v2049 = vxor.u32 %v2035, 2147483648
    %v2050 = vmul.f32 %v2049, 1.442695
    %v2051 = vpow.pop %v2050
    %v2052 = vadd.f32 %v2051, 1.0
    %v2053 = vrcp.pop %v2052
    %v2054 = vmul.f32 1.0, %v2053
    %v2055 = vmul.f32 %v2047, %v1863
    %v2056 = vmul.f32 %v2041, %v2048
    %v2057 = vadd.f32 %v2055, %v2056
    %v2058 = vtanh.pop %v2057
    %v2059 = vmul.f32 %v2054, %v2058
    %s2060 = sadd.s32 %s646, 7
    %p2061 = scmp.lt.s32.totalorder %s2060, 8
    %s2062 = scalar_select %p2061, 1, 0
    %v2063 = vstv %s2062
    %vm2064 = vcmp.eq.s32.totalorder %v2063, 1
    %v2065 = vsel %vm2064, %v2057, %v1863
    %v2066 = vsel %vm2064, %v2059, %v1864
    %2067 = vst [vmem:[#allocation2] sm:$0xff] %v2066
    %2068 = vst [vmem:[#allocation3] sm:$0xff] %v2065
    // Predicated region
    $region34: #{forward.3} parent=1 // pred_check
      %p2069 = pneg %p38
    $region35: #{forward.3} parent=1 // pred_check_branch
      %2071 = sbr.rel (%p2069) target = $region37
    $region36: #{forward.3} parent=1 // pred_region
      %v2072 = vld [vmem:[#allocation2] sm:$0xff]
      %v2073 = vpack.c.bf16 %v2072, %v2072
      %v2074 = vld [vmem:[%s4] sm:$0xf]
      %v2075 = vld [vmem:[%s4 + $0x4] sm:$0xf]
      %v2076 = vld [vmem:[%s4 + $0x8] sm:$0xf]
      %v2077 = vld [vmem:[%s4 + $0xc] sm:$0xf]
      %v2078 = vld [vmem:[%s4 + $0x10] sm:$0xf]
      %v2079 = vld [vmem:[%s4 + $0x14] sm:$0xf]
      %v2080 = vld [vmem:[%s4 + $0x18] sm:$0xf]
      %v2081 = vld [vmem:[%s4 + $0x1c] sm:$0xf]
      %v2082 = vld [vmem:[%s4 + $0x20] sm:$0xf]
      %v2083 = vld [vmem:[%s4 + $0x24] sm:$0xf]
      %v2084 = vld [vmem:[%s4 + $0x28] sm:$0xf]
      %v2085 = vld [vmem:[%s4 + $0x2c] sm:$0xf]
      %v2086 = vld [vmem:[%s4 + $0x30] sm:$0xf]
      %v2087 = vld [vmem:[%s4 + $0x34] sm:$0xf]
      %v2088 = vld [vmem:[%s4 + $0x38] sm:$0xf]
      %v2089 = vld [vmem:[%s4 + $0x3c] sm:$0xf]
      %v2090 = vld [vmem:[%s5] sm:$0x1]
      %v2092 = vlaneseq
      %v2093 = vshrl.u32 %v2092, 7
      %v2094 = vsub.s32 0, %v2093
      %v2095 = vrot.slane %v2090, %v2094
      %v2113 = vunpack.c.l.b16 %v2074
      %v2114 = vunpack.c.l.b16 %v2075
      %v2115 = vunpack.c.l.b16 %v2076
      %v2116 = vunpack.c.l.b16 %v2077
      %v2117 = vunpack.c.l.b16 %v2078
      %v2118 = vunpack.c.l.b16 %v2079
      %v2119 = vunpack.c.l.b16 %v2080
      %v2120 = vunpack.c.l.b16 %v2081
      %v2121 = vunpack.c.l.b16 %v2082
      %v2122 = vunpack.c.l.b16 %v2083
      %v2123 = vunpack.c.l.b16 %v2084
      %v2124 = vunpack.c.l.b16 %v2085
      %v2125 = vunpack.c.l.b16 %v2086
      %v2126 = vunpack.c.l.b16 %v2087
      %v2127 = vunpack.c.l.b16 %v2088
      %v2128 = vunpack.c.l.b16 %v2089
      %v2129 = vpack.c.b16 %v2114, %v2113
      %v2130 = vpack.c.b16 %v2116, %v2115
      %v2131 = vpack.c.b16 %v2118, %v2117
      %v2132 = vpack.c.b16 %v2120, %v2119
      %v2133 = vpack.c.b16 %v2122, %v2121
      %v2134 = vpack.c.b16 %v2124, %v2123
      %v2135 = vpack.c.b16 %v2126, %v2125
      %v2136 = vpack.c.b16 %v2128, %v2127
      %2145 = vmatprep.subr.bf16.mxu0 0
      %2146 = vmatpush1.bf16.msra.mxu0 %v2129
      %2147 = vmatprep.subr.bf16.mxu0 0
      %2148 = vmatpush1.bf16.msra.mxu0 %v2130
      %2149 = vmatprep.subr.bf16.mxu0 0
      %2150 = vmatpush1.bf16.msra.mxu0 %v2131
      %2151 = vmatprep.subr.bf16.mxu0 0
      %2152 = vmatpush1.bf16.msra.mxu0 %v2132
      %2153 = vmatprep.subr.bf16.mxu0 0
      %2154 = vmatpush1.bf16.msra.mxu0 %v2133
      %2155 = vmatprep.subr.bf16.mxu0 0
      %2156 = vmatpush1.bf16.msra.mxu0 %v2134
      %2157 = vmatprep.subr.bf16.mxu0 0
      %2158 = vmatpush1.bf16.msra.mxu0 %v2135
      %2159 = vmatprep.subr.bf16.mxu0 0
      %2160 = vmatpush1.bf16.msra.mxu0 %v2136
      %2161 = vmatprep.subr.bf16.mxu0 0
      %2162 = vmatpush1.bf16.msra.mxu0 0
      %2163 = vmatprep.subr.bf16.mxu0 0
      %2164 = vmatpush1.bf16.msra.mxu0 0
      %2165 = vmatprep.subr.bf16.mxu0 0
      %2166 = vmatpush1.bf16.msra.mxu0 0
      %2167 = vmatprep.subr.bf16.mxu0 0
      %2168 = vmatpush1.bf16.msra.mxu0 0
      %2169 = vmatprep.subr.bf16.mxu0 0
      %2170 = vmatpush1.bf16.msra.mxu0 0
      %2171 = vmatprep.subr.bf16.mxu0 0
      %2172 = vmatpush1.bf16.msra.mxu0 0
      %2173 = vmatprep.subr.bf16.mxu0 0
      %2174 = vmatpush1.bf16.msra.mxu0 0
      %2175 = vmatprep.subr.bf16.mxu0 0
      %2176 = vmatpush1.bf16.msra.mxu0 0
      %2177 = vmatprep.mubr.bf16.mxu0 0
      %2178 = vmatmul.mubr.bf16.gmra.mrb[0].mxu0 %v2073
      %v2179 = vpop.f32.mrb[0].mxu0
      %v2180 = vadd.f32 %v2095, %v2179
      %v2181 = vpop.f32.mrb[0].mxu0
      %v2182 = vpop.f32.mrb[0].mxu0
      %v2183 = vpop.f32.mrb[0].mxu0
      %2184 = vdwg.mxu0
      %v2185 = vxor.u32 %v2180, 2147483648
      %v2186 = vmul.f32 %v2185, 1.442695
      %v2187 = vpow.pop %v2186
      %v2188 = vadd.f32 %v2187, 1.0
      %v2189 = vrcp.pop %v2188
      %v2190 = vmul.f32 1.0, %v2189
      %2191 = vst [vmem:[%s6] sm:$0xff] %v2190
    $region37: #{forward.3} parent=1 // pred_fallthru
      _
    // Predicated region
    $region38: #{forward.3} parent=1 // pred_check
      _
    $region39: #{forward.3} parent=1 // pred_check_branch
      %2193 = sbr.rel (0) target = $region41
    $region40: #{forward.3} parent=1 // pred_region
      _
    $region41: #{forward.3} parent=1 // pred_fallthru
      _
    // Predicated region
    $region42: #{forward.3} parent=1 // pred_check
      _
    $region43: #{forward.3} parent=1 // pred_check_branch
      %2195 = sbr.rel (0) target = $region45
    $region44: #{forward.3} parent=1 // pred_region
      _
    $region45: #{forward.3} parent=1 // pred_fallthru
      _
    %2196 = vsyncpa [#allocation5], 1

</llo_original>
